<compile_context>
chip_gen: v7x
topology: tpu7x:2x2x1
jax: 0.10.0
libtpu: 0.0.40
codegen_flags: <defaults>
</compile_context>

<pallas_src>
import math
import numpy as np
import jax
import jax.numpy as jnp
from jax.experimental import pallas as pl
from jax.experimental.pallas import tpu as pltpu

# ------------------------- module hyper-parameters -------------------------
NUM_LEVELS = 16          # hashgrid levels
LEVEL_DIM = 2            # features per level
BASE_RES = 16
LOG2_HASHMAP = 19
DESIRED_RES = 2048       # 2048 * bound, bound = 1
BOUND = 1.0

IN_DIM = NUM_LEVELS * LEVEL_DIM      # 32  (hashgrid encoder output)
IN_DIM_DIR = 16                      # SH degree 4
IN_DIM_LIGHT = 16                    # SH degree 4
HIDDEN = 64                          # hidden_dim (== hidden_dim_color)
GEO_FEAT = 15                        # geo_feat_dim
HIDDEN_COLOR = 64
NUM_LAYERS = 2                       # sigma / vis loop length in forward()
NUM_LAYERS_COLOR = 3

# kernel feature row k = 16*f + l  <->  torch encoder channel t = 2*l + f
_HX_PERM_T_FROM_K = np.asarray(
    [2 * (k % NUM_LEVELS) + k // NUM_LEVELS for k in range(IN_DIM)])
_HX_PERM_K_FROM_T = np.argsort(_HX_PERM_T_FROM_K)


# --------------------------- hash-grid encoder ------------------------------
def _hashgrid_meta():
    per_level_scale = 2.0 ** (math.log2(DESIRED_RES / BASE_RES) / (NUM_LEVELS - 1))
    max_params = 2 ** LOG2_HASHMAP
    scales, resolutions, offsets = [], [], [0]
    for lvl in range(NUM_LEVELS):
        scale = BASE_RES * per_level_scale ** lvl - 1.0
        res = int(math.ceil(scale)) + 1
        scales.append(scale)
        resolutions.append(res)
        params = min(max_params, res ** 3)
        params = int(math.ceil(params / 8) * 8)
        offsets.append(offsets[-1] + params)
    return scales, resolutions, offsets


def hashgrid_encode_fm(x, table, meta, bound=BOUND):
    """x: [N, 3] in [-bound, bound]; table: [2, R] bf16 (feature-split).

    Returns features-major [32, N] bf16 where row k = 16*f + l (feature-major
    level order); the packed MLP weights are permuted to match, so no
    transpose/relayout is needed between the encoder and the kernel.

    TODO(synk): fuse this data-dependent gather into Pallas (VMEM-resident
    bf16 table, ~24 MiB); it dominates end-to-end wall time.  Indexing may
    differ from tiny-cuda-nn / torch-ngp in corner cases (align_corners /
    coarse-level hashing).
    """
    scales, resolutions, offsets = meta
    f32, u32 = jnp.float32, jnp.uint32

    scales_a = jnp.asarray(scales, f32)[:, None, None]                      # [L,1,1]
    stride_np = np.asarray([r + 1 for r in resolutions], np.uint32)         # align_corners=False
    hsize_np = np.asarray([offsets[l + 1] - offsets[l] for l in range(NUM_LEVELS)],
                          np.uint32)
    base_np = np.asarray(offsets[:-1], np.int32)
    use_hash_np = np.asarray([(int(stride_np[l]) ** 3) > int(hsize_np[l])
                              for l in range(NUM_LEVELS)], bool)

    u = ((x + bound) / (2.0 * bound)).T                                     # [3, N]
    pos = u[None, :, :] * scales_a + 0.5                                    # [L,3,N]
    pos_f = jnp.floor(pos)
    frac = pos - pos_f
    pg = pos_f.astype(u32)

    cb = np.asarray([[(c >> dd) & 1 for dd in range(3)] for c in range(8)],
                    np.uint32)                                              # [8,3]
    cp = pg[:, None, :, :] + jnp.asarray(cb)[None, :, :, None]              # [L,8,3,N]
    sel = jnp.asarray(cb.astype(bool))[None, :, :, None]
    w = jnp.where(sel, frac[:, None, :, :], 1.0 - frac[:, None, :, :]).prod(axis=2)  # [L,8,N]

    p1, p2 = np.uint32(2654435761), np.uint32(805459861)
    idx_hash = cp[:, :, 0] ^ (cp[:, :, 1] * p1) ^ (cp[:, :, 2] * p2)        # [L,8,N]
    st = jnp.asarray(stride_np)[:, None, None]
    idx_dense = cp[:, :, 0] + cp[:, :, 1] * st + cp[:, :, 2] * (st * st)
    idx = jnp.where(jnp.asarray(use_hash_np)[:, None, None], idx_hash, idx_dense)
    idx = (idx % jnp.asarray(hsize_np)[:, None, None]).astype(jnp.int32) \
        + jnp.asarray(base_np)[:, None, None]                               # [L,8,N]

    v0 = jnp.take(table[0], idx, axis=0).astype(f32)                        # [L,8,N]
    v1 = jnp.take(table[1], idx, axis=0).astype(f32)
    f0 = (w * v0).sum(axis=1)                                               # [L,N]
    f1 = (w * v1).sum(axis=1)
    return jnp.concatenate([f0, f1], axis=0).astype(jnp.bfloat16)           # [32, N]


# --------------- spherical harmonics (degree 4), reference path --------------
def sh_encode_deg4(v):
    x, y, z = v[:, 0], v[:, 1], v[:, 2]
    xy, xz, yz = x * y, x * z, y * z
    x2, y2, z2 = x * x, y * y, z * z
    comps = [
        jnp.full_like(x, 0.28209479177387814),
        -0.48860251190291987 * y,
        0.48860251190291987 * z,
        -0.48860251190291987 * x,
        1.0925484305920792 * xy,
        -1.0925484305920792 * yz,
        0.94617469575755997 * z2 - 0.31539156525251999,
        -1.0925484305920792 * xz,
        0.54627421529603959 * (x2 - y2),
        0.59004358992664352 * y * (-3.0 * x2 + y2),
        2.8906114426405538 * xy * z,
        0.45704579946446572 * y * (1.0 - 5.0 * z2),
        0.3731763325901154 * z * (5.0 * z2 - 3.0),
        0.45704579946446572 * x * (1.0 - 5.0 * z2),
        1.4453057213202769 * z * (x2 - y2),
        0.59004358992664352 * x * (-x2 + 3.0 * y2),
    ]
    return jnp.stack(comps, axis=-1).astype(jnp.float32)


# ------------------------------ Pallas kernel -------------------------------
def _nerf_mlp_kernel(hx_ref, dl_ref, w1_ref, w2_ref, w3_ref, w4_ref, out_ref):
    f32, bf16 = jnp.float32, jnp.bfloat16
    H = HIDDEN

    hx = hx_ref[...]                        # [32, TN] bf16, feature-major hashgrid
    dl = dl_ref[...]                        # [8, TN] f32: [dx,lx,dy,ly,dz,lz,0,0]

    # SH degree-4 for dir AND light at once: each VPU op works on a [2, TN]
    # slab (row 0 = dir, row 1 = light) -> half the ops / concat pieces of a
    # per-vector encoding.  Keeps raw d/lig as the only extra HBM input.
    x, y, z = dl[0:2, :], dl[2:4, :], dl[4:6, :]
    xy, xz, yz = x * y, x * z, y * z
    x2, y2, z2 = x * x, y * y, z * z
    comps = [
        jnp.full_like(x, 0.28209479177387814),
        -0.48860251190291987 * y,
        0.48860251190291987 * z,
        -0.48860251190291987 * x,
        1.0925484305920792 * xy,
        -1.0925484305920792 * yz,
        0.94617469575755997 * z2 - 0.31539156525251999,
        -1.0925484305920792 * xz,
        0.54627421529603959 * (x2 - y2),
        0.59004358992664352 * y * (-3.0 * x2 + y2),
        2.8906114426405538 * xy * z,
        0.45704579946446572 * y * (1.0 - 5.0 * z2),
        0.3731763325901154 * z * (5.0 * z2 - 3.0),
        0.45704579946446572 * x * (1.0 - 5.0 * z2),
        1.4453057213202769 * z * (x2 - y2),
        0.59004358992664352 * x * (-x2 + 3.0 * y2),
    ]
    sh = jnp.concatenate(comps, axis=0).astype(bf16)       # [32, TN]; row 2i=dir_i, 2i+1=light_i

    # fused layer-0 operand: rows = [hx(32) | SH interleaved(32)]
    feat = jnp.concatenate([hx, sh], axis=0)               # [64, TN] bf16

    # fused L0 (color | sigma | vis) -> one MXU pass, shared ReLU.
    s1 = jnp.maximum(jnp.dot(w1_ref[...], feat, preferred_element_type=f32), 0.0)  # [192, TN]
    s1b = s1.astype(bf16)

    # fused L1 of sigma-net & vis-net; only the sigma/vis chunks of s1 feed it
    # (K = 128, the zero color-chunk columns of w2 were dropped).
    s2 = jnp.dot(w2_ref[...], s1b[H:3 * H, :], preferred_element_type=f32)          # [17, TN]
    h_geo = s2[0:1 + GEO_FEAT, :]                                                   # [16, TN]
    sigma = jnp.exp(s2[0:1, :])              # trunc_exp forward == exp (clamp is bwd-only)
    vis = jax.nn.sigmoid(s2[1 + GEO_FEAT:, :])                                      # [1, TN]

    # color L1: cat([color-L0 activation, sigma-net output]); the packed weight
    # column for the sigma channel is zero (matches geo_feat = h[..., 1:]).
    c_in = jnp.concatenate([s1b[0:H, :], h_geo.astype(bf16)], axis=0)               # [80, TN]
    c1 = jnp.maximum(jnp.dot(w3_ref[...], c_in, preferred_element_type=f32), 0.0)

    # color L2 + final ReLU (per reference forward), modulated by vis.
    color = jnp.maximum(
        jnp.dot(w4_ref[...], c1.astype(bf16), preferred_element_type=f32), 0.0)     # [3, TN]
    col = color * vis

    # 8-row sublane-dense output slab: [r, g, b, sigma, vis, 0, 0, 0]
    out_ref[...] = jnp.concatenate(
        [col, sigma, vis, jnp.zeros_like(col)], axis=0).astype(out_ref.dtype)


# ----------------------------- weight packing --------------------------------
def pack_weights(params):
    """Pack the Linear weights (all bias=False) into 4 bf16 [out, in] matrices."""
    f32, bf16 = jnp.float32, jnp.bfloat16
    H = HIDDEN
    perm = _HX_PERM_T_FROM_K           # kernel hx row -> torch encoder channel

    # fused L0: rows = [color(0:64) | sigma(64:128) | vis(128:192)],
    #           cols = [hx feature-major (0:32) | SH interleaved (32:64)]
    #           SH col 32+2i = dir comp i, col 33+2i = light comp i.
    w1 = jnp.zeros((3 * H, IN_DIM + IN_DIM_LIGHT + IN_DIM_DIR), f32)
    w1 = w1.at[0:H, 0:IN_DIM].set(params["cw0x"].T[:, perm])
    w1 = w1.at[0:H, IN_DIM::2].set(params["cw0d"].T)
    w1 = w1.at[0:H, IN_DIM + 1::2].set(params["cw0l"].T)
    w1 = w1.at[H:2 * H, 0:IN_DIM].set(params["sw0"].T[:, perm])
    w1 = w1.at[2 * H:3 * H, 0:IN_DIM].set(params["vw0x"].T[:, perm])
    w1 = w1.at[2 * H:3 * H, IN_DIM + 1::2].set(params["vw0l"].T)

    # fused L1 (sigma-net L1 + vis-net L1): rows = [1+geo_feat | vis logit],
    # cols = s1 rows 64:192 = [sigma chunk (0:64) | vis chunk (64:128)].
    w2 = jnp.zeros((1 + GEO_FEAT + 1, 2 * H), f32)
    w2 = w2.at[0:1 + GEO_FEAT, 0:H].set(params["sw1"].T)
    w2 = w2.at[1 + GEO_FEAT:, H:2 * H].set(params["vw1"].T)

    # color L1: cols = [color-L0 chunk (64) | sigma channel (zero) | geo_feat (15)]
    w3 = jnp.concatenate(
        [params["cw1a"].T, jnp.zeros((HIDDEN_COLOR, 1), f32), params["cw1g"].T],
        axis=1)                                                             # [64, 80]

    # color L2
    w4 = params["cw2"].T                                                    # [3, 64]
    return w1.astype(bf16), w2.astype(bf16), w3.astype(bf16), w4.astype(bf16)


# ------------------------------- forward pass --------------------------------
def _pick_tile(n, max_tile=4096, min_tile=256):
    """Largest lane-aligned tile <= max_tile that still gives >=2 grid steps
    (so both v7x TensorCores get work via dimension_semantics=('parallel',))."""
    tile = max_tile
    while tile > min_tile and (n + tile - 1) // tile < 2:
        tile //= 2
    return max(tile, 128)


def nerf_forward(x, d, lig, params, meta, tile_n=None):
    n = x.shape[0]
    if tile_n is None:
        tile_n = _pick_tile(n)
    assert tile_n % 128 == 0, "row tile must be lane-aligned"
    n_pad = ((n + tile_n - 1) // tile_n) * tile_n
    pad = n_pad - n

    # Pad the tiny [N,3] inputs up front; the encoder then emits [32, n_pad]
    # bf16 features-major directly (no separate pad/transpose/cast of a big
    # [N,32] f32 array through HBM).
    xp = jnp.pad(x, ((0, pad), (0, 0)))
    hx_fm = hashgrid_encode_fm(xp, params["table"], meta)                   # [32, n_pad] bf16

    dp = jnp.pad(d, ((0, pad), (0, 0))).T                                   # [3, n_pad]
    lp = jnp.pad(lig, ((0, pad), (0, 0))).T
    dl = jnp.concatenate(
        [jnp.stack([dp, lp], axis=1).reshape(6, n_pad),                     # [dx,lx,dy,ly,dz,lz]
         jnp.zeros((2, n_pad), jnp.float32)], axis=0)                       # [8, n_pad]

    w1p, w2p, w3p, w4p = pack_weights(params)

    col_spec = lambda r: pl.BlockSpec((r, tile_n), lambda i: (0, i))
    w_spec = lambda w: pl.BlockSpec(w.shape, lambda i: (0, 0))              # resident weights

    out = pl.pallas_call(
        _nerf_mlp_kernel,
        out_shape=jax.ShapeDtypeStruct((8, n_pad), jnp.float32),
        grid=(n_pad // tile_n,),
        in_specs=[col_spec(IN_DIM), col_spec(8),
                  w_spec(w1p), w_spec(w2p), w_spec(w3p), w_spec(w4p)],
        out_specs=pl.BlockSpec((8, tile_n), lambda i: (0, i)),
        compiler_params=pltpu.CompilerParams(
            dimension_semantics=("parallel",),
            # tile_n=4096 fits easily in 32 MiB; raising the limit covers the
            # v5e 16 MiB default while staying well under v7x's 64 MiB VMEM.
            vmem_limit_bytes=32 * 1024 * 1024),
    )(hx_fm, dl, w1p, w2p, w3p, w4p)

    # rows 3 / 4 of `out` carry sigma / vis; forward() returns only col.
    return out[0:3, :n].T                                                   # [N, 3]


# --------------------------- pure-JAX reference ------------------------------
# Mirrors the torch forward layer-by-layer (unfused, torch channel order), with
# bf16 matmul operands and f32 accumulation to match the kernel's MXU numerics.
def nerf_forward_ref(x, d, lig, params, meta):
    bf16, f32 = jnp.bfloat16, jnp.float32
    mm = lambda a, w: jnp.dot(a.astype(bf16), w.astype(bf16),
                              preferred_element_type=f32)

    feat_fm = hashgrid_encode_fm(x, params["table"], meta)                  # [32, N] bf16
    hx = feat_fm[_HX_PERM_K_FROM_T].T.astype(f32)                           # [N, 32] torch order
    d_enc = sh_encode_deg4(d)
    l_enc = sh_encode_deg4(lig)

    h = jnp.maximum(mm(hx, params["sw0"]), 0.0)
    h = mm(h, params["sw1"])
    geo = h[:, 1:]

    cw0 = jnp.concatenate([params["cw0x"], params["cw0l"], params["cw0d"]], 0)
    c = jnp.maximum(mm(jnp.concatenate([hx, l_enc, d_enc], -1), cw0), 0.0)
    cw1 = jnp.concatenate([params["cw1a"], params["cw1g"]], 0)
    c = jnp.maximum(mm(jnp.concatenate([c, geo], -1), cw1), 0.0)
    color = jnp.maximum(mm(c, params["cw2"]), 0.0)

    vw0 = jnp.concatenate([params["vw0x"], params["vw0l"]], 0)
    v = jnp.maximum(mm(jnp.concatenate([hx, l_enc], -1), vw0), 0.0)
    vis = jax.nn.sigmoid(mm(v, params["vw1"]))
    return color * vis


# --------------------------- deterministic init ------------------------------
def init_params(key):
    ks = jax.random.split(key, 8)

    def lin(k, fan_in, fan_out):
        b = 1.0 / math.sqrt(fan_in)
        return jax.random.uniform(k, (fan_in, fan_out), jnp.float32, -b, b)

    params = {}
    # sigma_net: Linear(32, 64), Linear(64, 1 + 15)    (stored [in, out], bias=False)
    params["sw0"] = lin(ks[0], IN_DIM, HIDDEN)
    params["sw1"] = lin(ks[1], HIDDEN, 1 + GEO_FEAT)
    # color_net: Linear(64, 64), Linear(79, 64), Linear(64, 3)
    cw0 = lin(ks[2], IN_DIM + IN_DIM_LIGHT + IN_DIM_DIR, HIDDEN_COLOR)
    params["cw0x"] = cw0[:IN_DIM]
    params["cw0l"] = cw0[IN_DIM:IN_DIM + IN_DIM_LIGHT]
    params["cw0d"] = cw0[IN_DIM + IN_DIM_LIGHT:]
    cw1 = lin(ks[3], HIDDEN_COLOR + GEO_FEAT, HIDDEN_COLOR)
    params["cw1a"] = cw1[:HIDDEN_COLOR]                 # acts on color-L0 activation
    params["cw1g"] = cw1[HIDDEN_COLOR:]                 # acts on geo_feat (15 rows)
    params["cw2"] = lin(ks[4], HIDDEN_COLOR, 3)
    # vis_net: forward() only uses layers 0 and 1: Linear(48, 64), Linear(64, 1)
    vw0 = lin(ks[5], IN_DIM_LIGHT + IN_DIM, HIDDEN)
    params["vw0x"] = vw0[:IN_DIM]
    params["vw0l"] = vw0[IN_DIM:]
    params["vw1"] = lin(ks[6], HIDDEN, 1)

    meta = _hashgrid_meta()
    _, _, offsets = meta
    # torch-ngp init is U(-1e-4, 1e-4); larger synthetic scale so outputs are
    # non-trivial.  Stored feature-split [2, R] bf16 for lane-friendly gathers.
    params["table"] = jax.random.uniform(
        ks[7], (2, offsets[-1]), jnp.float32, -0.1, 0.1).astype(jnp.bfloat16)
    return params, meta


# ---------------------------------- main -------------------------------------
if __name__ == "__main__":
    key = jax.random.PRNGKey(0)
    kx, kd, kl, kp = jax.random.split(key, 4)

    N = 4096                      # auto tile -> 2048, grid = 2 (feeds both v7x TCs)
    x = jax.random.uniform(kx, (N, 3), jnp.float32, -BOUND, BOUND)
    d = jax.random.normal(kd, (N, 3), jnp.float32)
    d = d / jnp.linalg.norm(d, axis=-1, keepdims=True)
    lig = jax.random.normal(kl, (N, 3), jnp.float32)
    lig = lig / jnp.linalg.norm(lig, axis=-1, keepdims=True)

    params, meta = init_params(kp)

    fwd = jax.jit(lambda x, d, lig, p: nerf_forward(x, d, lig, p, meta))
    col = jax.block_until_ready(fwd(x, d, lig, params))

    assert col.shape == (N, 3)
    assert bool(jnp.all(jnp.isfinite(col)))

    ref = nerf_forward_ref(x, d, lig, params, meta)
    np.testing.assert_allclose(np.asarray(col), np.asarray(ref),
                               rtol=2e-2, atol=1e-3)
    print("KERNEL_OK")
</pallas_src>

<mosaic_0001>
module attributes {stable_mosaic.version = 11 : i64} {
  func.func private @main(%arg0: i32) attributes {dimension_semantics = [#tpu.dimension_semantics<core_parallel>], iteration_bounds = array<i64: 2>, tpu.core_type = #tpu.core_type<sc_scalar_subcore>, window_params = []} {
    return
  }
}

module attributes {stable_mosaic.version = 11 : i64} {
  func.func private @main(%arg0: i32) attributes {dimension_semantics = [#tpu.dimension_semantics<core_parallel>], iteration_bounds = array<i64: 2>, tpu.core_type = #tpu.core_type<sc_scalar_subcore>, window_params = []} {
    return
  }
}

module attributes {stable_mosaic.version = 11 : i64} {
  func.func @_nerf_mlp_kernel(%arg0: i32, %arg1: memref<32x2048xbf16, #tpu.memory_space<vmem>>, %arg2: memref<8x2048xf32, #tpu.memory_space<vmem>>, %arg3: memref<192x64xbf16, #tpu.memory_space<vmem>>, %arg4: memref<17x128xbf16, #tpu.memory_space<vmem>>, %arg5: memref<64x80xbf16, #tpu.memory_space<vmem>>, %arg6: memref<3x64xbf16, #tpu.memory_space<vmem>>, %arg7: memref<8x2048xf32, #tpu.memory_space<vmem>>) attributes {dimension_semantics = [#tpu.dimension_semantics<parallel>], iteration_bounds = array<i64: 2>, scalar_prefetch = 0 : i64, scratch_operands = 0 : i64, tpu.core_type = #tpu.core_type<tc>, window_params = [{transform_indices = @transform_0, window_bounds = array<i64: 32, 2048>}, {transform_indices = @transform_1, window_bounds = array<i64: 8, 2048>}, {pipeline_mode = #tpu.pipeline_mode<synchronous>, transform_indices = @transform_2, window_bounds = array<i64: 192, 64>}, {pipeline_mode = #tpu.pipeline_mode<synchronous>, transform_indices = @transform_3, window_bounds = array<i64: 17, 128>}, {pipeline_mode = #tpu.pipeline_mode<synchronous>, transform_indices = @transform_4, window_bounds = array<i64: 64, 80>}, {pipeline_mode = #tpu.pipeline_mode<synchronous>, transform_indices = @transform_5, window_bounds = array<i64: 3, 64>}, {transform_indices = @transform_6, window_bounds = array<i64: 8, 2048>}]} {
    %c0 = arith.constant 0 : index
    %c0_0 = arith.constant 0 : index
    %0 = vector.load %arg1[%c0, %c0_0] : memref<32x2048xbf16, #tpu.memory_space<vmem>>, vector<32x2048xbf16>
    %c0_1 = arith.constant 0 : index
    %c0_2 = arith.constant 0 : index
    %1 = vector.load %arg2[%c0_1, %c0_2] : memref<8x2048xf32, #tpu.memory_space<vmem>>, vector<8x2048xf32>
    %2 = vector.extract_strided_slice %1 {offsets = [0, 0], sizes = [2, 2048], strides = [1, 1]} : vector<8x2048xf32> to vector<2x2048xf32>
    %3 = vector.extract_strided_slice %1 {offsets = [2, 0], sizes = [2, 2048], strides = [1, 1]} : vector<8x2048xf32> to vector<2x2048xf32>
    %4 = vector.extract_strided_slice %1 {offsets = [4, 0], sizes = [2, 2048], strides = [1, 1]} : vector<8x2048xf32> to vector<2x2048xf32>
    %5 = arith.mulf %2, %3 : vector<2x2048xf32>
    %6 = arith.mulf %2, %4 : vector<2x2048xf32>
    %7 = arith.mulf %3, %4 : vector<2x2048xf32>
    %8 = arith.mulf %2, %2 : vector<2x2048xf32>
    %9 = arith.mulf %3, %3 : vector<2x2048xf32>
    %10 = arith.mulf %4, %4 : vector<2x2048xf32>
    %cst = arith.constant 0.282094806 : f32
    %11 = vector.broadcast %cst : f32 to vector<2x2048xf32>
    %cst_3 = arith.constant -0.488602519 : f32
    %12 = vector.broadcast %cst_3 : f32 to vector<2x2048xf32>
    %13 = arith.mulf %12, %3 : vector<2x2048xf32>
    %cst_4 = arith.constant 0.488602519 : f32
    %14 = vector.broadcast %cst_4 : f32 to vector<2x2048xf32>
    %15 = arith.mulf %14, %4 : vector<2x2048xf32>
    %cst_5 = arith.constant -0.488602519 : f32
    %16 = vector.broadcast %cst_5 : f32 to vector<2x2048xf32>
    %17 = arith.mulf %16, %2 : vector<2x2048xf32>
    %cst_6 = arith.constant 1.09254849 : f32
    %18 = vector.broadcast %cst_6 : f32 to vector<2x2048xf32>
    %19 = arith.mulf %18, %5 : vector<2x2048xf32>
    %cst_7 = arith.constant -1.09254849 : f32
    %20 = vector.broadcast %cst_7 : f32 to vector<2x2048xf32>
    %21 = arith.mulf %20, %7 : vector<2x2048xf32>
    %cst_8 = arith.constant 0.946174681 : f32
    %22 = vector.broadcast %cst_8 : f32 to vector<2x2048xf32>
    %23 = arith.mulf %22, %10 : vector<2x2048xf32>
    %cst_9 = arith.constant 0.31539157 : f32
    %24 = vector.broadcast %cst_9 : f32 to vector<2x2048xf32>
    %25 = arith.subf %23, %24 : vector<2x2048xf32>
    %cst_10 = arith.constant -1.09254849 : f32
    %26 = vector.broadcast %cst_10 : f32 to vector<2x2048xf32>
    %27 = arith.mulf %26, %6 : vector<2x2048xf32>
    %28 = arith.subf %8, %9 : vector<2x2048xf32>
    %cst_11 = arith.constant 0.546274245 : f32
    %29 = vector.broadcast %cst_11 : f32 to vector<2x2048xf32>
    %30 = arith.mulf %29, %28 : vector<2x2048xf32>
    %cst_12 = arith.constant 0.590043604 : f32
    %31 = vector.broadcast %cst_12 : f32 to vector<2x2048xf32>
    %32 = arith.mulf %31, %3 : vector<2x2048xf32>
    %cst_13 = arith.constant -3.000000e+00 : f32
    %33 = vector.broadcast %cst_13 : f32 to vector<2x2048xf32>
    %34 = arith.mulf %33, %8 : vector<2x2048xf32>
    %35 = arith.addf %34, %9 : vector<2x2048xf32>
    %36 = arith.mulf %32, %35 : vector<2x2048xf32>
    %cst_14 = arith.constant 2.89061141 : f32
    %37 = vector.broadcast %cst_14 : f32 to vector<2x2048xf32>
    %38 = arith.mulf %37, %5 : vector<2x2048xf32>
    %39 = arith.mulf %38, %4 : vector<2x2048xf32>
    %cst_15 = arith.constant 0.457045794 : f32
    %40 = vector.broadcast %cst_15 : f32 to vector<2x2048xf32>
    %41 = arith.mulf %40, %3 : vector<2x2048xf32>
    %cst_16 = arith.constant 5.000000e+00 : f32
    %42 = vector.broadcast %cst_16 : f32 to vector<2x2048xf32>
    %43 = arith.mulf %42, %10 : vector<2x2048xf32>
    %cst_17 = arith.constant 1.000000e+00 : f32
    %44 = vector.broadcast %cst_17 : f32 to vector<2x2048xf32>
    %45 = arith.subf %44, %43 : vector<2x2048xf32>
    %46 = arith.mulf %41, %45 : vector<2x2048xf32>
    %cst_18 = arith.constant 0.373176336 : f32
    %47 = vector.broadcast %cst_18 : f32 to vector<2x2048xf32>
    %48 = arith.mulf %47, %4 : vector<2x2048xf32>
    %cst_19 = arith.constant 5.000000e+00 : f32
    %49 = vector.broadcast %cst_19 : f32 to vector<2x2048xf32>
    %50 = arith.mulf %49, %10 : vector<2x2048xf32>
    %cst_20 = arith.constant 3.000000e+00 : f32
    %51 = vector.broadcast %cst_20 : f32 to vector<2x2048xf32>
    %52 = arith.subf %50, %51 : vector<2x2048xf32>
    %53 = arith.mulf %48, %52 : vector<2x2048xf32>
    %cst_21 = arith.constant 0.457045794 : f32
    %54 = vector.broadcast %cst_21 : f32 to vector<2x2048xf32>
    %55 = arith.mulf %54, %2 : vector<2x2048xf32>
    %cst_22 = arith.constant 5.000000e+00 : f32
    %56 = vector.broadcast %cst_22 : f32 to vector<2x2048xf32>
    %57 = arith.mulf %56, %10 : vector<2x2048xf32>
    %cst_23 = arith.constant 1.000000e+00 : f32
    %58 = vector.broadcast %cst_23 : f32 to vector<2x2048xf32>
    %59 = arith.subf %58, %57 : vector<2x2048xf32>
    %60 = arith.mulf %55, %59 : vector<2x2048xf32>
    %cst_24 = arith.constant 1.44530571 : f32
    %61 = vector.broadcast %cst_24 : f32 to vector<2x2048xf32>
    %62 = arith.mulf %61, %4 : vector<2x2048xf32>
    %63 = arith.subf %8, %9 : vector<2x2048xf32>
    %64 = arith.mulf %62, %63 : vector<2x2048xf32>
    %cst_25 = arith.constant 0.590043604 : f32
    %65 = vector.broadcast %cst_25 : f32 to vector<2x2048xf32>
    %66 = arith.mulf %65, %2 : vector<2x2048xf32>
    %cst_26 = arith.constant 0.000000e+00 : f32
    %67 = vector.broadcast %cst_26 : f32 to vector<2x2048xf32>
    %68 = arith.subf %67, %8 : vector<2x2048xf32>
    %cst_27 = arith.constant 3.000000e+00 : f32
    %69 = vector.broadcast %cst_27 : f32 to vector<2x2048xf32>
    %70 = arith.mulf %69, %9 : vector<2x2048xf32>
    %71 = arith.addf %68, %70 : vector<2x2048xf32>
    %72 = arith.mulf %66, %71 : vector<2x2048xf32>
    %73 = tpu.concatenate %11, %13, %15, %17, %19, %21, %25, %27, %30, %36, %39, %46, %53, %60, %64, %72 in 0 : vector<2x2048xf32>, vector<2x2048xf32>, vector<2x2048xf32>, vector<2x2048xf32>, vector<2x2048xf32>, vector<2x2048xf32>, vector<2x2048xf32>, vector<2x2048xf32>, vector<2x2048xf32>, vector<2x2048xf32>, vector<2x2048xf32>, vector<2x2048xf32>, vector<2x2048xf32>, vector<2x2048xf32>, vector<2x2048xf32>, vector<2x2048xf32> -> vector<32x2048xf32>
    %74 = arith.truncf %73 : vector<32x2048xf32> to vector<32x2048xbf16>
    %75 = tpu.concatenate %0, %74 in 0 : vector<32x2048xbf16>, vector<32x2048xbf16> -> vector<64x2048xbf16>
    %c0_28 = arith.constant 0 : index
    %c0_29 = arith.constant 0 : index
    %76 = vector.load %arg3[%c0_28, %c0_29] : memref<192x64xbf16, #tpu.memory_space<vmem>>, vector<192x64xbf16>
    %cst_30 = arith.constant dense<0.000000e+00> : vector<192x2048xf32>
    %77 = tpu.matmul %76, %75, %cst_30 {dimension_numbers = #tpu.dot_dimension_numbers<[1], [0], [0], [1], [0, 0, 1, 1], [], []>} : vector<192x64xbf16>, vector<64x2048xbf16>, vector<192x2048xf32> -> vector<192x2048xf32>
    %cst_31 = arith.constant 0.000000e+00 : f32
    %78 = vector.broadcast %cst_31 : f32 to vector<192x2048xf32>
    %79 = arith.maximumf %77, %78 : vector<192x2048xf32>
    %80 = arith.truncf %79 : vector<192x2048xf32> to vector<192x2048xbf16>
    %c0_32 = arith.constant 0 : index
    %c0_33 = arith.constant 0 : index
    %81 = vector.load %arg4[%c0_32, %c0_33] : memref<17x128xbf16, #tpu.memory_space<vmem>>, vector<17x128xbf16>
    %82 = vector.extract_strided_slice %80 {offsets = [64, 0], sizes = [128, 2048], strides = [1, 1]} : vector<192x2048xbf16> to vector<128x2048xbf16>
    %cst_34 = arith.constant dense<0.000000e+00> : vector<17x2048xf32>
    %83 = tpu.matmul %81, %82, %cst_34 {dimension_numbers = #tpu.dot_dimension_numbers<[1], [0], [0], [1], [0, 0, 1, 1], [], []>} : vector<17x128xbf16>, vector<128x2048xbf16>, vector<17x2048xf32> -> vector<17x2048xf32>
    %84 = vector.extract_strided_slice %83 {offsets = [0, 0], sizes = [16, 2048], strides = [1, 1]} : vector<17x2048xf32> to vector<16x2048xf32>
    %85 = vector.extract_strided_slice %83 {offsets = [0, 0], sizes = [1, 2048], strides = [1, 1]} : vector<17x2048xf32> to vector<1x2048xf32>
    %86 = math.exp %85 : vector<1x2048xf32>
    %87 = vector.extract_strided_slice %83 {offsets = [16, 0], sizes = [1, 2048], strides = [1, 1]} : vector<17x2048xf32> to vector<1x2048xf32>
    %88 = arith.negf %87 : vector<1x2048xf32>
    %89 = math.exp %88 : vector<1x2048xf32>
    %cst_35 = arith.constant 1.000000e+00 : f32
    %90 = vector.broadcast %cst_35 : f32 to vector<1x2048xf32>
    %91 = arith.addf %90, %89 : vector<1x2048xf32>
    %92 = arith.divf %90, %91 : vector<1x2048xf32>
    %93 = vector.extract_strided_slice %80 {offsets = [0, 0], sizes = [64, 2048], strides = [1, 1]} : vector<192x2048xbf16> to vector<64x2048xbf16>
    %94 = arith.truncf %84 : vector<16x2048xf32> to vector<16x2048xbf16>
    %95 = tpu.concatenate %93, %94 in 0 : vector<64x2048xbf16>, vector<16x2048xbf16> -> vector<80x2048xbf16>
    %c0_36 = arith.constant 0 : index
    %c0_37 = arith.constant 0 : index
    %96 = vector.load %arg5[%c0_36, %c0_37] : memref<64x80xbf16, #tpu.memory_space<vmem>>, vector<64x80xbf16>
    %cst_38 = arith.constant dense<0.000000e+00> : vector<64x2048xf32>
    %97 = tpu.matmul %96, %95, %cst_38 {dimension_numbers = #tpu.dot_dimension_numbers<[1], [0], [0], [1], [0, 0, 1, 1], [], []>} : vector<64x80xbf16>, vector<80x2048xbf16>, vector<64x2048xf32> -> vector<64x2048xf32>
    %cst_39 = arith.constant 0.000000e+00 : f32
    %98 = vector.broadcast %cst_39 : f32 to vector<64x2048xf32>
    %99 = arith.maximumf %97, %98 : vector<64x2048xf32>
    %c0_40 = arith.constant 0 : index
    %c0_41 = arith.constant 0 : index
    %100 = vector.load %arg6[%c0_40, %c0_41] : memref<3x64xbf16, #tpu.memory_space<vmem>>, vector<3x64xbf16>
    %101 = arith.truncf %99 : vector<64x2048xf32> to vector<64x2048xbf16>
    %cst_42 = arith.constant dense<0.000000e+00> : vector<3x2048xf32>
    %102 = tpu.matmul %100, %101, %cst_42 {dimension_numbers = #tpu.dot_dimension_numbers<[1], [0], [0], [1], [0, 0, 1, 1], [], []>} : vector<3x64xbf16>, vector<64x2048xbf16>, vector<3x2048xf32> -> vector<3x2048xf32>
    %cst_43 = arith.constant 0.000000e+00 : f32
    %103 = vector.broadcast %cst_43 : f32 to vector<3x2048xf32>
    %104 = arith.maximumf %102, %103 : vector<3x2048xf32>
    %105 = vector.broadcast %92 : vector<1x2048xf32> to vector<3x2048xf32>
    %106 = arith.mulf %104, %105 : vector<3x2048xf32>
    %cst_44 = arith.constant 0.000000e+00 : f32
    %107 = vector.broadcast %cst_44 : f32 to vector<3x2048xf32>
    %108 = tpu.concatenate %106, %86, %92, %107 in 0 : vector<3x2048xf32>, vector<1x2048xf32>, vector<1x2048xf32>, vector<3x2048xf32> -> vector<8x2048xf32>
    %c0_45 = arith.constant 0 : index
    %c0_46 = arith.constant 0 : index
    %109 = vector.load %arg7[%c0_45, %c0_46] : memref<8x2048xf32, #tpu.memory_space<vmem>>, vector<8x2048xf32>
    tpu.vector_store %arg7[%c0_45, %c0_46], %108 {strides = array<i32>} : memref<8x2048xf32, #tpu.memory_space<vmem>>, vector<8x2048xf32>,
    return
  }
  func.func @transform_0(%arg0: i32) -> (i32, i32) {
    %c0_i32 = arith.constant 0 : i32
    %c0_i32_0 = arith.constant 0 : i32
    return %c0_i32, %arg0 : i32, i32
  }
  func.func @transform_1(%arg0: i32) -> (i32, i32) {
    %c0_i32 = arith.constant 0 : i32
    %c0_i32_0 = arith.constant 0 : i32
    return %c0_i32, %arg0 : i32, i32
  }
  func.func @transform_2(%arg0: i32) -> (i32, i32) {
    %c0_i32 = arith.constant 0 : i32
    %c0_i32_0 = arith.constant 0 : i32
    %c0_i32_1 = arith.constant 0 : i32
    return %c0_i32, %c0_i32_0 : i32, i32
  }
  func.func @transform_3(%arg0: i32) -> (i32, i32) {
    %c0_i32 = arith.constant 0 : i32
    %c0_i32_0 = arith.constant 0 : i32
    %c0_i32_1 = arith.constant 0 : i32
    return %c0_i32, %c0_i32_0 : i32, i32
  }
  func.func @transform_4(%arg0: i32) -> (i32, i32) {
    %c0_i32 = arith.constant 0 : i32
    %c0_i32_0 = arith.constant 0 : i32
    %c0_i32_1 = arith.constant 0 : i32
    return %c0_i32, %c0_i32_0 : i32, i32
  }
  func.func @transform_5(%arg0: i32) -> (i32, i32) {
    %c0_i32 = arith.constant 0 : i32
    %c0_i32_0 = arith.constant 0 : i32
    %c0_i32_1 = arith.constant 0 : i32
    return %c0_i32, %c0_i32_0 : i32, i32
  }
  func.func @transform_6(%arg0: i32) -> (i32, i32) {
    %c0_i32 = arith.constant 0 : i32
    %c0_i32_0 = arith.constant 0 : i32
    return %c0_i32, %arg0 : i32, i32
  }
}

</mosaic_0001>

<llo_original>
// kernel: _lambda_.1
$region0: #{_lambda_.1}
  #allocation0 [shape = 'u32[]', space=smem, size = 0x4, offset = 0x4, fixed_abs, tag = 'smem constant byte address 0x4 - core index']
  #allocation1 [shape = 'u32[144,128]{1,0:T(1,128)}', space=vmem, size = 0x12000, scoped, tag = 'internal scratch']
  %s0 = inlined_call_operand.vmem [shape: bf16[32,4096], index: 0, kind: input, shape index: {}]
  %s1 = inlined_call_operand.vmem [shape: f32[8,4096], index: 1, kind: input, shape index: {}]
  %s2 = inlined_call_operand.vmem [shape: bf16[192,64], index: 2, kind: input, shape index: {}]
  %s3 = inlined_call_operand.vmem [shape: bf16[17,128], index: 3, kind: input, shape index: {}]
  %s4 = inlined_call_operand.vmem [shape: bf16[64,80], index: 4, kind: input, shape index: {}]
  %s5 = inlined_call_operand.vmem [shape: bf16[3,64], index: 5, kind: input, shape index: {}]
  %s6 = inlined_call_operand.vmem [shape: f32[8,4096], index: 6, kind: output, shape index: {}]
  %s7 = sld [smem:[#allocation0]]
  $region80: #{_lambda_.1} parent=0
    _
  %s9 = ssub.s32 1, %s7
  %s10 = scalar_select 0, %s9, %s7
  $region1: #{_lambda_.1} parent=0
    #allocation2 [shape = 'u8[262144]{0}', space=vmem, size = 0x40000, scoped, tag = 'input window, operand 0']
    loop: start=0, step=1, limit=4
    $region2: #{_lambda_.1} parent=1 // loop_pre_header
      _
    $region3: #{_lambda_.1} parent=1 // loop_header
      %s12 = sphi 0, %s16
      %p13 = scmp.ge.s32.totalorder %s12, 4
      %s22 = sphi 0, %s24
      %s25 = sphi 0, %s22
      %s26 = sphi 0, %s25
      %s42 = sphi 0, %s26
      %s48 = sphi 0, %s50
      %s51 = sphi 0, %s48
      %s52 = sphi 0, %s51
      %s68 = sphi 0, %s52
      %s72 = sphi 0, %s72
      %s74 = sphi 0, %s72
      %s75 = sphi 0, %s74
      %s89 = sphi 0, %s75
      %s93 = sphi 0, %s93
      %s95 = sphi 0, %s93
      %s96 = sphi 0, %s95
      %s110 = sphi 0, %s96
      %s114 = sphi 0, %s114
      %s116 = sphi 0, %s114
      %s117 = sphi 0, %s116
      %s131 = sphi 0, %s117
      %s135 = sphi 0, %s135
      %s137 = sphi 0, %s135
      %s138 = sphi 0, %s137
      %s152 = sphi 0, %s138
      %s158 = sphi 0, %s160
      %s161 = sphi 0, %s158
      %s162 = sphi 0, %s161
      %s178 = sphi 0, %s162
    $region4: #{_lambda_.1} parent=1 // loop_header_branch
      %15 = sbr.rel (%p13) target = $region8
    $region5: #{_lambda_.1} parent=1 // loop_body
      %s17 = ssub.s32 %s12, 1
      %s18 = ssub.s32 %s12, 2
      %s19 = sadd.s32 %s12, 1
      %s20 = ssub.s32 %s12, %s19
      %p21 = scmp.eq.s32.totalorder %s20, 0
      %s23 = sadd.s32 %s22, 1
      %s24 = scalar_select %p21, %s22, %s23
      %p27 = pneg %p21
      %p28 = scmp.eq.s32.totalorder %s12, 1
      %p29 = por %p27, %p28
      %p30 = scmp.ne.s32.totalorder %s22, %s25
      %p31 = scmp.eq.s32.totalorder %s12, 0
      %p32 = por %p30, %p31
      %p33 = scmp.ne.s32.totalorder %s22, %s25
      %p34 = scmp.eq.s32.totalorder %s17, 1
      %p35 = por %p33, %p34
      %p36 = scmp.ne.s32.totalorder %s25, %s26
      %p37 = scmp.eq.s32.totalorder %s17, 0
      %p38 = por %p36, %p37
      %p39 = scmp.ne.s32.totalorder %s25, %s26
      %p40 = scmp.eq.s32.totalorder %s18, 1
      %p41 = por %p39, %p40
      %p43 = scmp.ne.s32.totalorder %s26, %s42
      %p44 = scmp.eq.s32.totalorder %s18, 0
      %p45 = por %p43, %p44
      %s46 = ssub.s32 %s12, %s19
      %p47 = scmp.eq.s32.totalorder %s46, 0
      %s49 = sadd.s32 %s48, 1
      %s50 = scalar_select %p47, %s48, %s49
      %p53 = pneg %p47
      %p54 = scmp.eq.s32.totalorder %s12, 1
      %p55 = por %p53, %p54
      %p56 = scmp.ne.s32.totalorder %s48, %s51
      %p57 = scmp.eq.s32.totalorder %s12, 0
      %p58 = por %p56, %p57
      %p59 = scmp.ne.s32.totalorder %s48, %s51
      %p60 = scmp.eq.s32.totalorder %s17, 1
      %p61 = por %p59, %p60
      %p62 = scmp.ne.s32.totalorder %s51, %s52
      %p63 = scmp.eq.s32.totalorder %s17, 0
      %p64 = por %p62, %p63
      %p65 = scmp.ne.s32.totalorder %s51, %s52
      %p66 = scmp.eq.s32.totalorder %s18, 1
      %p67 = por %p65, %p66
      %p69 = scmp.ne.s32.totalorder %s52, %s68
      %p70 = scmp.eq.s32.totalorder %s18, 0
      %p71 = por %p69, %p70
      %s73 = sadd.s32 %s72, 1
      %p76 = scmp.eq.s32.totalorder %s12, 1
      %p77 = scmp.ne.s32.totalorder %s72, %s74
      %p78 = scmp.eq.s32.totalorder %s12, 0
      %p79 = por %p77, %p78
      %p80 = scmp.ne.s32.totalorder %s72, %s74
      %p81 = scmp.eq.s32.totalorder %s17, 1
      %p82 = por %p80, %p81
      %p83 = scmp.ne.s32.totalorder %s74, %s75
      %p84 = scmp.eq.s32.totalorder %s17, 0
      %p85 = por %p83, %p84
      %p86 = scmp.ne.s32.totalorder %s74, %s75
      %p87 = scmp.eq.s32.totalorder %s18, 1
      %p88 = por %p86, %p87
      %p90 = scmp.ne.s32.totalorder %s75, %s89
      %p91 = scmp.eq.s32.totalorder %s18, 0
      %p92 = por %p90, %p91
      %s94 = sadd.s32 %s93, 1
      %p97 = scmp.eq.s32.totalorder %s12, 1
      %p98 = scmp.ne.s32.totalorder %s93, %s95
      %p99 = scmp.eq.s32.totalorder %s12, 0
      %p100 = por %p98, %p99
      %p101 = scmp.ne.s32.totalorder %s93, %s95
      %p102 = scmp.eq.s32.totalorder %s17, 1
      %p103 = por %p101, %p102
      %p104 = scmp.ne.s32.totalorder %s95, %s96
      %p105 = scmp.eq.s32.totalorder %s17, 0
      %p106 = por %p104, %p105
      %p107 = scmp.ne.s32.totalorder %s95, %s96
      %p108 = scmp.eq.s32.totalorder %s18, 1
      %p109 = por %p107, %p108
      %p111 = scmp.ne.s32.totalorder %s96, %s110
      %p112 = scmp.eq.s32.totalorder %s18, 0
      %p113 = por %p111, %p112
      %s115 = sadd.s32 %s114, 1
      %p118 = scmp.eq.s32.totalorder %s12, 1
      %p119 = scmp.ne.s32.totalorder %s114, %s116
      %p120 = scmp.eq.s32.totalorder %s12, 0
      %p121 = por %p119, %p120
      %p122 = scmp.ne.s32.totalorder %s114, %s116
      %p123 = scmp.eq.s32.totalorder %s17, 1
      %p124 = por %p122, %p123
      %p125 = scmp.ne.s32.totalorder %s116, %s117
      %p126 = scmp.eq.s32.totalorder %s17, 0
      %p127 = por %p125, %p126
      %p128 = scmp.ne.s32.totalorder %s116, %s117
      %p129 = scmp.eq.s32.totalorder %s18, 1
      %p130 = por %p128, %p129
      %p132 = scmp.ne.s32.totalorder %s117, %s131
      %p133 = scmp.eq.s32.totalorder %s18, 0
      %p134 = por %p132, %p133
      %s136 = sadd.s32 %s135, 1
      %p139 = scmp.eq.s32.totalorder %s12, 1
      %p140 = scmp.ne.s32.totalorder %s135, %s137
      %p141 = scmp.eq.s32.totalorder %s12, 0
      %p142 = por %p140, %p141
      %p143 = scmp.ne.s32.totalorder %s135, %s137
      %p144 = scmp.eq.s32.totalorder %s17, 1
      %p145 = por %p143, %p144
      %p146 = scmp.ne.s32.totalorder %s137, %s138
      %p147 = scmp.eq.s32.totalorder %s17, 0
      %p148 = por %p146, %p147
      %p149 = scmp.ne.s32.totalorder %s137, %s138
      %p150 = scmp.eq.s32.totalorder %s18, 1
      %p151 = por %p149, %p150
      %p153 = scmp.ne.s32.totalorder %s138, %s152
      %p154 = scmp.eq.s32.totalorder %s18, 0
      %p155 = por %p153, %p154
      %s156 = ssub.s32 %s12, %s19
      %p157 = scmp.eq.s32.totalorder %s156, 0
      %s159 = sadd.s32 %s158, 1
      %s160 = scalar_select %p157, %s158, %s159
      %p163 = pneg %p157
      %p164 = scmp.eq.s32.totalorder %s12, 1
      %p165 = por %p163, %p164
      %p166 = scmp.ne.s32.totalorder %s158, %s161
      %p167 = scmp.eq.s32.totalorder %s12, 0
      %p168 = por %p166, %p167
      %p169 = scmp.ne.s32.totalorder %s158, %s161
      %p170 = scmp.eq.s32.totalorder %s17, 1
      %p171 = por %p169, %p170
      %p172 = scmp.ne.s32.totalorder %s161, %s162
      %p173 = scmp.eq.s32.totalorder %s17, 0
      %p174 = por %p172, %p173
      %p175 = scmp.ne.s32.totalorder %s161, %s162
      %p176 = scmp.eq.s32.totalorder %s18, 1
      %p177 = por %p175, %p176
      %p179 = scmp.ne.s32.totalorder %s162, %s178
      %p180 = scmp.eq.s32.totalorder %s18, 0
      %p181 = por %p179, %p180
      %p182 = scmp.le.s32.totalorder 1, %s12
      %p183 = scmp.lt.s32.totalorder %s12, 3
      %p184 = pnand %p182, %p183
      %p185 = pneg %p184
      // Predicated region
      $region9: #{_lambda_.1} parent=5 // pred_check
        _
      $region10: #{_lambda_.1} parent=5 // pred_check_branch
        %187 = sbr.rel (%p184) target = $region12
      $region11: #{_lambda_.1} parent=5 // pred_region
        %s188 = ssub.s32 %s12, 1
        // Predicated region
        $region13: #{_lambda_.1} parent=11 // pred_check
          %p189 = pneg %p85
        $region14: #{_lambda_.1} parent=11 // pred_check_branch
          %191 = sbr.rel (%p189) target = $region16
        $region15: #{_lambda_.1} parent=11 // pred_region
          _
        $region16: #{_lambda_.1} parent=11 // pred_fallthru
          _
        // Predicated region
        $region17: #{_lambda_.1} parent=11 // pred_check
          %p192 = pneg %p106
        $region18: #{_lambda_.1} parent=11 // pred_check_branch
          %194 = sbr.rel (%p192) target = $region20
        $region19: #{_lambda_.1} parent=11 // pred_region
          _
        $region20: #{_lambda_.1} parent=11 // pred_fallthru
          _
        // Predicated region
        $region21: #{_lambda_.1} parent=11 // pred_check
          %p195 = pneg %p127
        $region22: #{_lambda_.1} parent=11 // pred_check_branch
          %197 = sbr.rel (%p195) target = $region24
        $region23: #{_lambda_.1} parent=11 // pred_region
          _
        $region24: #{_lambda_.1} parent=11 // pred_fallthru
          _
        // Predicated region
        $region25: #{_lambda_.1} parent=11 // pred_check
          %p198 = pneg %p148
        $region26: #{_lambda_.1} parent=11 // pred_check_branch
          %200 = sbr.rel (%p198) target = $region28
        $region27: #{_lambda_.1} parent=11 // pred_region
          _
        $region28: #{_lambda_.1} parent=11 // pred_fallthru
          _
      $region12: #{_lambda_.1} parent=5 // pred_fallthru
        _
      %p201 = scmp.lt.s32.totalorder %s12, 2
      // Predicated region
      $region29: #{_lambda_.1} parent=5 // pred_check
        %p202 = pneg %p201
      $region30: #{_lambda_.1} parent=5 // pred_check_branch
        %204 = sbr.rel (%p202) target = $region32
      $region31: #{_lambda_.1} parent=5 // pred_region
        // Predicated region
        $region33: #{_lambda_.1} parent=31 // pred_check
          %p205 = pneg %p32
        $region34: #{_lambda_.1} parent=31 // pred_check_branch
          %207 = sbr.rel (%p205) target = $region36
        $region35: #{_lambda_.1} parent=31 // pred_region
          %s208 = sand.u32 %s22, 1
          %s209 = sand.u32 %s22, 1
          %s210 = smul.addr %s209, 256
          %s211 = scalar_lea.vmem [#allocation2], %s210
          %s212 = smul.u32 16, %s12
          %s213 = smul.addr %s212, 4
          %s214 = scalar_lea.vmem %s0, %s213
          // Predicated region
          $region37: #{_lambda_.1} parent=35 // pred_check
            _
          $region38: #{_lambda_.1} parent=35 // pred_check_branch
            %216 = sbr.rel (0) target = $region40
          $region39: #{_lambda_.1} parent=35 // pred_region
            // Predicated region
            $region41: #{_lambda_.1} parent=39 // pred_check
              _
            $region42: #{_lambda_.1} parent=39 // pred_check_branch
              %218 = sbr.rel (0) target = $region44
            $region43: #{_lambda_.1} parent=39 // pred_region
              loop: start=0, step=1, limit=1
              $region45: #{_lambda_.1} parent=43 // loop_pre_header
                _
              $region46: #{_lambda_.1} parent=43 // loop_header
                %s220 = sphi 0, %s224
                %p221 = scmp.ge.s32.totalorder %s220, 1
                %s225 = sphi %s214, %s214
                %s226 = sphi %s211, %s211
              $region47: #{_lambda_.1} parent=43 // loop_header_branch
                %223 = sbr.rel (%p221) target = $region51
              $region48: #{_lambda_.1} parent=43 // loop_body
                %v227 = vld [vmem:[%s225] sm:$0xff]
                %228 = vst [vmem:[%s226] sm:$0xff] %v227
                %v229 = vld [vmem:[%s225 + $0x8] sm:$0xff]
                %230 = vst [vmem:[%s226 + $0x8] sm:$0xff] %v229
                %v231 = vld [vmem:[%s225 + $0x10] sm:$0xff]
                %232 = vst [vmem:[%s226 + $0x10] sm:$0xff] %v231
                %v233 = vld [vmem:[%s225 + $0x18] sm:$0xff]
                %234 = vst [vmem:[%s226 + $0x18] sm:$0xff] %v233
                %v235 = vld [vmem:[%s225 + $0x20] sm:$0xff]
                %236 = vst [vmem:[%s226 + $0x20] sm:$0xff] %v235
                %v237 = vld [vmem:[%s225 + $0x28] sm:$0xff]
                %238 = vst [vmem:[%s226 + $0x28] sm:$0xff] %v237
                %v239 = vld [vmem:[%s225 + $0x30] sm:$0xff]
                %240 = vst [vmem:[%s226 + $0x30] sm:$0xff] %v239
                %v241 = vld [vmem:[%s225 + $0x38] sm:$0xff]
                %242 = vst [vmem:[%s226 + $0x38] sm:$0xff] %v241
                %v243 = vld [vmem:[%s225 + $0x80] sm:$0xff]
                %244 = vst [vmem:[%s226 + $0x40] sm:$0xff] %v243
                %v245 = vld [vmem:[%s225 + $0x88] sm:$0xff]
                %246 = vst [vmem:[%s226 + $0x48] sm:$0xff] %v245
                %v247 = vld [vmem:[%s225 + $0x90] sm:$0xff]
                %248 = vst [vmem:[%s226 + $0x50] sm:$0xff] %v247
                %v249 = vld [vmem:[%s225 + $0x98] sm:$0xff]
                %250 = vst [vmem:[%s226 + $0x58] sm:$0xff] %v249
                %v251 = vld [vmem:[%s225 + $0xa0] sm:$0xff]
                %252 = vst [vmem:[%s226 + $0x60] sm:$0xff] %v251
                %v253 = vld [vmem:[%s225 + $0xa8] sm:$0xff]
                %254 = vst [vmem:[%s226 + $0x68] sm:$0xff] %v253
                %v255 = vld [vmem:[%s225 + $0xb0] sm:$0xff]
                %256 = vst [vmem:[%s226 + $0x70] sm:$0xff] %v255
                %v257 = vld [vmem:[%s225 + $0xb8] sm:$0xff]
                %258 = vst [vmem:[%s226 + $0x78] sm:$0xff] %v257
                %v259 = vld [vmem:[%s225 + $0x100] sm:$0xff]
                %260 = vst [vmem:[%s226 + $0x80] sm:$0xff] %v259
                %v261 = vld [vmem:[%s225 + $0x108] sm:$0xff]
                %262 = vst [vmem:[%s226 + $0x88] sm:$0xff] %v261
                %v263 = vld [vmem:[%s225 + $0x110] sm:$0xff]
                %264 = vst [vmem:[%s226 + $0x90] sm:$0xff] %v263
                %v265 = vld [vmem:[%s225 + $0x118] sm:$0xff]
                %266 = vst [vmem:[%s226 + $0x98] sm:$0xff] %v265
                %v267 = vld [vmem:[%s225 + $0x120] sm:$0xff]
                %268 = vst [vmem:[%s226 + $0xa0] sm:$0xff] %v267
                %v269 = vld [vmem:[%s225 + $0x128] sm:$0xff]
                %270 = vst [vmem:[%s226 + $0xa8] sm:$0xff] %v269
                %v271 = vld [vmem:[%s225 + $0x130] sm:$0xff]
                %272 = vst [vmem:[%s226 + $0xb0] sm:$0xff] %v271
                %v273 = vld [vmem:[%s225 + $0x138] sm:$0xff]
                %274 = vst [vmem:[%s226 + $0xb8] sm:$0xff] %v273
                %v275 = vld [vmem:[%s225 + $0x180] sm:$0xff]
                %276 = vst [vmem:[%s226 + $0xc0] sm:$0xff] %v275
                %v277 = vld [vmem:[%s225 + $0x188] sm:$0xff]
                %278 = vst [vmem:[%s226 + $0xc8] sm:$0xff] %v277
                %v279 = vld [vmem:[%s225 + $0x190] sm:$0xff]
                %280 = vst [vmem:[%s226 + $0xd0] sm:$0xff] %v279
                %v281 = vld [vmem:[%s225 + $0x198] sm:$0xff]
                %282 = vst [vmem:[%s226 + $0xd8] sm:$0xff] %v281
                %v283 = vld [vmem:[%s225 + $0x1a0] sm:$0xff]
                %284 = vst [vmem:[%s226 + $0xe0] sm:$0xff] %v283
                %v285 = vld [vmem:[%s225 + $0x1a8] sm:$0xff]
                %286 = vst [vmem:[%s226 + $0xe8] sm:$0xff] %v285
                %v287 = vld [vmem:[%s225 + $0x1b0] sm:$0xff]
                %288 = vst [vmem:[%s226 + $0xf0] sm:$0xff] %v287
                %v289 = vld [vmem:[%s225 + $0x1b8] sm:$0xff]
                %290 = vst [vmem:[%s226 + $0xf8] sm:$0xff] %v289
              $region49: #{_lambda_.1} parent=43 // loop_footer
                %s224 = sadd.s32 1, %s220
              $region50: #{_lambda_.1} parent=43 // loop_footer_branch
                %219 = sbr.rel target = $region46
              $region51: #{_lambda_.1} parent=43 // loop_exit
                _
            $region44: #{_lambda_.1} parent=39 // pred_fallthru
              _
            // Predicated region
            $region52: #{_lambda_.1} parent=39 // pred_check
              _
            $region53: #{_lambda_.1} parent=39 // pred_check_branch
              %292 = sbr.rel target = $region55
            $region54: #{_lambda_.1} parent=39 // pred_region
              _
            $region55: #{_lambda_.1} parent=39 // pred_fallthru
              _
          $region40: #{_lambda_.1} parent=35 // pred_fallthru
            _
          %293 = vnop
        $region36: #{_lambda_.1} parent=31 // pred_fallthru
          _
        // Predicated region
        $region56: #{_lambda_.1} parent=31 // pred_check
          %p294 = pneg %p58
        $region57: #{_lambda_.1} parent=31 // pred_check_branch
          %296 = sbr.rel (%p294) target = $region59
        $region58: #{_lambda_.1} parent=31 // pred_region
          %s297 = smul.u32 16, %s12
          %p298 = scmp.lt.s32.totalorder %s297, 31
          %s299 = scalar_select %p298, %s297, 31
          %s300 = smul.addr %s299, 8
          %s301 = scalar_lea.vmem %s1, %s300
          %s302 = smul.u32 16, %s12
        $region59: #{_lambda_.1} parent=31 // pred_fallthru
          _
      $region32: #{_lambda_.1} parent=5 // pred_fallthru
        _
      %p303 = scmp.le.s32.totalorder 1, %s12
      %p304 = scmp.lt.s32.totalorder %s12, 3
      %p305 = pnand %p303, %p304
      %p306 = pneg %p305
      // Predicated region
      $region60: #{_lambda_.1} parent=5 // pred_check
        _
      $region61: #{_lambda_.1} parent=5 // pred_check_branch
        %308 = sbr.rel (%p305) target = $region63
      $region62: #{_lambda_.1} parent=5 // pred_region
        %s309 = ssub.s32 %s12, 1
        %s310 = sand.u32 %s25, 1
        %s311 = sand.u32 %s25, 1
        %s312 = smul.addr %s311, 256
        %s313 = scalar_lea.vmem [#allocation2], %s312
        // Predicated region
        $region64: #{_lambda_.1} parent=62 // pred_check
          %p314 = pneg %p38
        $region65: #{_lambda_.1} parent=62 // pred_check_branch
          %316 = sbr.rel (%p314) target = $region67
        $region66: #{_lambda_.1} parent=62 // pred_region
          _
        $region67: #{_lambda_.1} parent=62 // pred_fallthru
          _
        %s317 = sand.u32 %s25, 1
        %s318 = sand.u32 %s25, 1
        %s319 = smul.addr %s318, 256
        %s320 = scalar_lea.vmem [#allocation2], %s319
        %p321 = pneg %p38
        %p322 = pneg %p35
        %s323 = smul.u32 16, %s17
        %p324 = scmp.lt.s32.totalorder %s323, 31
        %s325 = scalar_select %p324, %s323, 31
        %s326 = smul.addr %s325, 8
        %s327 = scalar_lea.vmem %s1, %s326
        %p328 = pneg %p64
        %p329 = pneg %p61
        %p330 = pneg %p85
        %p331 = pneg %p82
        %p332 = pneg %p106
        %p333 = pneg %p103
        %p334 = pneg %p127
        %p335 = pneg %p124
        %p336 = pneg %p148
        %p337 = pneg %p145
        %p338 = pneg %p174
        %p339 = pneg %p171
        %s340 = smul.u32 16, %s17
        %p341 = scmp.lt.s32.totalorder %s340, 31
        %s342 = scalar_select %p341, %s340, 31
        %s343 = smul.addr %s342, 8
        %s344 = scalar_lea.vmem %s6, %s343
        %s345 = smul.u32 16, %s17
        %s346 = smul.u32 16, %s17
        %p347 = scmp.lt.s32.totalorder %s346, 31
        %s348 = scalar_select %p347, %s346, 31
        %s349 = smul.addr %s348, 8
        %s350 = scalar_lea.vmem %s1, %s349
        %s351 = smul.u32 16, %s17
        %s352 = smul.u32 16, %s17
        %p353 = scmp.lt.s32.totalorder %s352, 31
        %s354 = scalar_select %p353, %s352, 31
        %s355 = smul.addr %s354, 8
        %s356 = scalar_lea.vmem %s6, %s355
        %s357 = smul.u32 16, %s17
        %v359 = vld [vmem:[%s313] sm:$0xff]
        %v360 = vld [vmem:[%s313 + $0x8] sm:$0xff]
        %v361 = vld [vmem:[%s313 + $0x10] sm:$0xff]
        %v362 = vld [vmem:[%s313 + $0x18] sm:$0xff]
        %v363 = vld [vmem:[%s313 + $0x20] sm:$0xff]
        %v364 = vld [vmem:[%s313 + $0x28] sm:$0xff]
        %v365 = vld [vmem:[%s313 + $0x30] sm:$0xff]
        %v366 = vld [vmem:[%s313 + $0x38] sm:$0xff]
        %v367 = vld [vmem:[%s313 + $0x40] sm:$0xff]
        %v368 = vld [vmem:[%s313 + $0x48] sm:$0xff]
        %v369 = vld [vmem:[%s313 + $0x50] sm:$0xff]
        %v370 = vld [vmem:[%s313 + $0x58] sm:$0xff]
        %v371 = vld [vmem:[%s313 + $0x60] sm:$0xff]
        %v372 = vld [vmem:[%s313 + $0x68] sm:$0xff]
        %v373 = vld [vmem:[%s313 + $0x70] sm:$0xff]
        %v374 = vld [vmem:[%s313 + $0x78] sm:$0xff]
        %v375 = vld [vmem:[%s313 + $0x80] sm:$0xff]
        %v376 = vld [vmem:[%s313 + $0x88] sm:$0xff]
        %v377 = vld [vmem:[%s313 + $0x90] sm:$0xff]
        %v378 = vld [vmem:[%s313 + $0x98] sm:$0xff]
        %v379 = vld [vmem:[%s313 + $0xa0] sm:$0xff]
        %v380 = vld [vmem:[%s313 + $0xa8] sm:$0xff]
        %v381 = vld [vmem:[%s313 + $0xb0] sm:$0xff]
        %v382 = vld [vmem:[%s313 + $0xb8] sm:$0xff]
        %v383 = vld [vmem:[%s313 + $0xc0] sm:$0xff]
        %v384 = vld [vmem:[%s313 + $0xc8] sm:$0xff]
        %v385 = vld [vmem:[%s313 + $0xd0] sm:$0xff]
        %v386 = vld [vmem:[%s313 + $0xd8] sm:$0xff]
        %v387 = vld [vmem:[%s313 + $0xe0] sm:$0xff]
        %v388 = vld [vmem:[%s313 + $0xe8] sm:$0xff]
        %v389 = vld [vmem:[%s313 + $0xf0] sm:$0xff]
        %v390 = vld [vmem:[%s313 + $0xf8] sm:$0xff]
        %v391 = vld [vmem:[%s350] sm:$0xff]
        %v392 = vld [vmem:[%s350 + $0x8] sm:$0xff]
        %v393 = vld [vmem:[%s350 + $0x10] sm:$0xff]
        %v394 = vld [vmem:[%s350 + $0x18] sm:$0xff]
        %v395 = vld [vmem:[%s350 + $0x20] sm:$0xff]
        %v396 = vld [vmem:[%s350 + $0x28] sm:$0xff]
        %v397 = vld [vmem:[%s350 + $0x30] sm:$0xff]
        %v398 = vld [vmem:[%s350 + $0x38] sm:$0xff]
        %v399 = vld [vmem:[%s350 + $0x40] sm:$0xff]
        %v400 = vld [vmem:[%s350 + $0x48] sm:$0xff]
        %v401 = vld [vmem:[%s350 + $0x50] sm:$0xff]
        %v402 = vld [vmem:[%s350 + $0x58] sm:$0xff]
        %v403 = vld [vmem:[%s350 + $0x60] sm:$0xff]
        %v404 = vld [vmem:[%s350 + $0x68] sm:$0xff]
        %v405 = vld [vmem:[%s350 + $0x70] sm:$0xff]
        %v406 = vld [vmem:[%s350 + $0x78] sm:$0xff]
        %v423 = vrot.slane %v391, 2
        %v424 = vrot.slane %v392, 2
        %v425 = vrot.slane %v393, 2
        %v426 = vrot.slane %v394, 2
        %v427 = vrot.slane %v395, 2
        %v428 = vrot.slane %v396, 2
        %v429 = vrot.slane %v397, 2
        %v430 = vrot.slane %v398, 2
        %v431 = vrot.slane %v399, 2
        %v432 = vrot.slane %v400, 2
        %v433 = vrot.slane %v401, 2
        %v434 = vrot.slane %v402, 2
        %v435 = vrot.slane %v403, 2
        %v436 = vrot.slane %v404, 2
        %v437 = vrot.slane %v405, 2
        %v438 = vrot.slane %v406, 2
        %v455 = vmul.f32 %v391, %v423
        %v456 = vmul.f32 %v392, %v424
        %v457 = vmul.f32 %v393, %v425
        %v458 = vmul.f32 %v394, %v426
        %v459 = vmul.f32 %v395, %v427
        %v460 = vmul.f32 %v396, %v428
        %v461 = vmul.f32 %v397, %v429
        %v462 = vmul.f32 %v398, %v430
        %v463 = vmul.f32 %v399, %v431
        %v464 = vmul.f32 %v400, %v432
        %v465 = vmul.f32 %v401, %v433
        %v466 = vmul.f32 %v402, %v434
        %v467 = vmul.f32 %v403, %v435
        %v468 = vmul.f32 %v404, %v436
        %v469 = vmul.f32 %v405, %v437
        %v470 = vmul.f32 %v406, %v438
        %v471 = vrot.slane %v391, 4
        %v472 = vrot.slane %v392, 4
        %v473 = vrot.slane %v393, 4
        %v474 = vrot.slane %v394, 4
        %v475 = vrot.slane %v395, 4
        %v476 = vrot.slane %v396, 4
        %v477 = vrot.slane %v397, 4
        %v478 = vrot.slane %v398, 4
        %v479 = vrot.slane %v399, 4
        %v480 = vrot.slane %v400, 4
        %v481 = vrot.slane %v401, 4
        %v482 = vrot.slane %v402, 4
        %v483 = vrot.slane %v403, 4
        %v484 = vrot.slane %v404, 4
        %v485 = vrot.slane %v405, 4
        %v486 = vrot.slane %v406, 4
        %v503 = vmul.f32 %v391, %v471
        %v504 = vmul.f32 %v392, %v472
        %v505 = vmul.f32 %v393, %v473
        %v506 = vmul.f32 %v394, %v474
        %v507 = vmul.f32 %v395, %v475
        %v508 = vmul.f32 %v396, %v476
        %v509 = vmul.f32 %v397, %v477
        %v510 = vmul.f32 %v398, %v478
        %v511 = vmul.f32 %v399, %v479
        %v512 = vmul.f32 %v400, %v480
        %v513 = vmul.f32 %v401, %v481
        %v514 = vmul.f32 %v402, %v482
        %v515 = vmul.f32 %v403, %v483
        %v516 = vmul.f32 %v404, %v484
        %v517 = vmul.f32 %v405, %v485
        %v518 = vmul.f32 %v406, %v486
        %v519 = vmul.f32 %v391, %v391
        %v520 = vmul.f32 %v392, %v392
        %v521 = vmul.f32 %v393, %v393
        %v522 = vmul.f32 %v394, %v394
        %v523 = vmul.f32 %v395, %v395
        %v524 = vmul.f32 %v396, %v396
        %v525 = vmul.f32 %v397, %v397
        %v526 = vmul.f32 %v398, %v398
        %v527 = vmul.f32 %v399, %v399
        %v528 = vmul.f32 %v400, %v400
        %v529 = vmul.f32 %v401, %v401
        %v530 = vmul.f32 %v402, %v402
        %v531 = vmul.f32 %v403, %v403
        %v532 = vmul.f32 %v404, %v404
        %v533 = vmul.f32 %v405, %v405
        %v534 = vmul.f32 %v406, %v406
        %v535 = vmul.f32 %v391, -0.48860252
        %v536 = vmul.f32 %v392, -0.48860252
        %v537 = vmul.f32 %v393, -0.48860252
        %v538 = vmul.f32 %v394, -0.48860252
        %v539 = vmul.f32 %v395, -0.48860252
        %v540 = vmul.f32 %v396, -0.48860252
        %v541 = vmul.f32 %v397, -0.48860252
        %v542 = vmul.f32 %v398, -0.48860252
        %v543 = vmul.f32 %v399, -0.48860252
        %v544 = vmul.f32 %v400, -0.48860252
        %v545 = vmul.f32 %v401, -0.48860252
        %v546 = vmul.f32 %v402, -0.48860252
        %v547 = vmul.f32 %v403, -0.48860252
        %v548 = vmul.f32 %v404, -0.48860252
        %v549 = vmul.f32 %v405, -0.48860252
        %v550 = vmul.f32 %v406, -0.48860252
        %v551 = vmul.f32 %v391, 0.48860252
        %v552 = vmul.f32 %v392, 0.48860252
        %v553 = vmul.f32 %v393, 0.48860252
        %v554 = vmul.f32 %v394, 0.48860252
        %v555 = vmul.f32 %v395, 0.48860252
        %v556 = vmul.f32 %v396, 0.48860252
        %v557 = vmul.f32 %v397, 0.48860252
        %v558 = vmul.f32 %v398, 0.48860252
        %v559 = vmul.f32 %v399, 0.48860252
        %v560 = vmul.f32 %v400, 0.48860252
        %v561 = vmul.f32 %v401, 0.48860252
        %v562 = vmul.f32 %v402, 0.48860252
        %v563 = vmul.f32 %v403, 0.48860252
        %v564 = vmul.f32 %v404, 0.48860252
        %v565 = vmul.f32 %v405, 0.48860252
        %v566 = vmul.f32 %v406, 0.48860252
        %v567 = vmul.f32 %v455, 1.0925485
        %v568 = vmul.f32 %v456, 1.0925485
        %v569 = vmul.f32 %v457, 1.0925485
        %v570 = vmul.f32 %v458, 1.0925485
        %v571 = vmul.f32 %v459, 1.0925485
        %v572 = vmul.f32 %v460, 1.0925485
        %v573 = vmul.f32 %v461, 1.0925485
        %v574 = vmul.f32 %v462, 1.0925485
        %v575 = vmul.f32 %v463, 1.0925485
        %v576 = vmul.f32 %v464, 1.0925485
        %v577 = vmul.f32 %v465, 1.0925485
        %v578 = vmul.f32 %v466, 1.0925485
        %v579 = vmul.f32 %v467, 1.0925485
        %v580 = vmul.f32 %v468, 1.0925485
        %v581 = vmul.f32 %v469, 1.0925485
        %v582 = vmul.f32 %v470, 1.0925485
        %v583 = vmul.f32 %v455, -1.0925485
        %v584 = vmul.f32 %v456, -1.0925485
        %v585 = vmul.f32 %v457, -1.0925485
        %v586 = vmul.f32 %v458, -1.0925485
        %v587 = vmul.f32 %v459, -1.0925485
        %v588 = vmul.f32 %v460, -1.0925485
        %v589 = vmul.f32 %v461, -1.0925485
        %v590 = vmul.f32 %v462, -1.0925485
        %v591 = vmul.f32 %v463, -1.0925485
        %v592 = vmul.f32 %v464, -1.0925485
        %v593 = vmul.f32 %v465, -1.0925485
        %v594 = vmul.f32 %v466, -1.0925485
        %v595 = vmul.f32 %v467, -1.0925485
        %v596 = vmul.f32 %v468, -1.0925485
        %v597 = vmul.f32 %v469, -1.0925485
        %v598 = vmul.f32 %v470, -1.0925485
        %v599 = vmul.f32 %v519, 0.9461747
        %v600 = vmul.f32 %v520, 0.9461747
        %v601 = vmul.f32 %v521, 0.9461747
        %v602 = vmul.f32 %v522, 0.9461747
        %v603 = vmul.f32 %v523, 0.9461747
        %v604 = vmul.f32 %v524, 0.9461747
        %v605 = vmul.f32 %v525, 0.9461747
        %v606 = vmul.f32 %v526, 0.9461747
        %v607 = vmul.f32 %v527, 0.9461747
        %v608 = vmul.f32 %v528, 0.9461747
        %v609 = vmul.f32 %v529, 0.9461747
        %v610 = vmul.f32 %v530, 0.9461747
        %v611 = vmul.f32 %v531, 0.9461747
        %v612 = vmul.f32 %v532, 0.9461747
        %v613 = vmul.f32 %v533, 0.9461747
        %v614 = vmul.f32 %v534, 0.9461747
        %v615 = vsub.f32 %v599, 0.31539157
        %v616 = vsub.f32 %v600, 0.31539157
        %v617 = vsub.f32 %v601, 0.31539157
        %v618 = vsub.f32 %v602, 0.31539157
        %v619 = vsub.f32 %v603, 0.31539157
        %v620 = vsub.f32 %v604, 0.31539157
        %v621 = vsub.f32 %v605, 0.31539157
        %v622 = vsub.f32 %v606, 0.31539157
        %v623 = vsub.f32 %v607, 0.31539157
        %v624 = vsub.f32 %v608, 0.31539157
        %v625 = vsub.f32 %v609, 0.31539157
        %v626 = vsub.f32 %v610, 0.31539157
        %v627 = vsub.f32 %v611, 0.31539157
        %v628 = vsub.f32 %v612, 0.31539157
        %v629 = vsub.f32 %v613, 0.31539157
        %v630 = vsub.f32 %v614, 0.31539157
        %v631 = vmul.f32 %v503, -1.0925485
        %v632 = vmul.f32 %v504, -1.0925485
        %v633 = vmul.f32 %v505, -1.0925485
        %v634 = vmul.f32 %v506, -1.0925485
        %v635 = vmul.f32 %v507, -1.0925485
        %v636 = vmul.f32 %v508, -1.0925485
        %v637 = vmul.f32 %v509, -1.0925485
        %v638 = vmul.f32 %v510, -1.0925485
        %v639 = vmul.f32 %v511, -1.0925485
        %v640 = vmul.f32 %v512, -1.0925485
        %v641 = vmul.f32 %v513, -1.0925485
        %v642 = vmul.f32 %v514, -1.0925485
        %v643 = vmul.f32 %v515, -1.0925485
        %v644 = vmul.f32 %v516, -1.0925485
        %v645 = vmul.f32 %v517, -1.0925485
        %v646 = vmul.f32 %v518, -1.0925485
        %v663 = vrot.slane %v519, 2
        %v664 = vrot.slane %v520, 2
        %v665 = vrot.slane %v521, 2
        %v666 = vrot.slane %v522, 2
        %v667 = vrot.slane %v523, 2
        %v668 = vrot.slane %v524, 2
        %v669 = vrot.slane %v525, 2
        %v670 = vrot.slane %v526, 2
        %v671 = vrot.slane %v527, 2
        %v672 = vrot.slane %v528, 2
        %v673 = vrot.slane %v529, 2
        %v674 = vrot.slane %v530, 2
        %v675 = vrot.slane %v531, 2
        %v676 = vrot.slane %v532, 2
        %v677 = vrot.slane %v533, 2
        %v678 = vrot.slane %v534, 2
        %v695 = vsub.f32 %v519, %v663
        %v696 = vsub.f32 %v520, %v664
        %v697 = vsub.f32 %v521, %v665
        %v698 = vsub.f32 %v522, %v666
        %v699 = vsub.f32 %v523, %v667
        %v700 = vsub.f32 %v524, %v668
        %v701 = vsub.f32 %v525, %v669
        %v702 = vsub.f32 %v526, %v670
        %v703 = vsub.f32 %v527, %v671
        %v704 = vsub.f32 %v528, %v672
        %v705 = vsub.f32 %v529, %v673
        %v706 = vsub.f32 %v530, %v674
        %v707 = vsub.f32 %v531, %v675
        %v708 = vsub.f32 %v532, %v676
        %v709 = vsub.f32 %v533, %v677
        %v710 = vsub.f32 %v534, %v678
        %v711 = vmul.f32 %v695, 0.54627424
        %v712 = vmul.f32 %v696, 0.54627424
        %v713 = vmul.f32 %v697, 0.54627424
        %v714 = vmul.f32 %v698, 0.54627424
        %v715 = vmul.f32 %v699, 0.54627424
        %v716 = vmul.f32 %v700, 0.54627424
        %v717 = vmul.f32 %v701, 0.54627424
        %v718 = vmul.f32 %v702, 0.54627424
        %v719 = vmul.f32 %v703, 0.54627424
        %v720 = vmul.f32 %v704, 0.54627424
        %v721 = vmul.f32 %v705, 0.54627424
        %v722 = vmul.f32 %v706, 0.54627424
        %v723 = vmul.f32 %v707, 0.54627424
        %v724 = vmul.f32 %v708, 0.54627424
        %v725 = vmul.f32 %v709, 0.54627424
        %v726 = vmul.f32 %v710, 0.54627424
        %v727 = vmul.f32 %v391, 0.5900436
        %v728 = vmul.f32 %v392, 0.5900436
        %v729 = vmul.f32 %v393, 0.5900436
        %v730 = vmul.f32 %v394, 0.5900436
        %v731 = vmul.f32 %v395, 0.5900436
        %v732 = vmul.f32 %v396, 0.5900436
        %v733 = vmul.f32 %v397, 0.5900436
        %v734 = vmul.f32 %v398, 0.5900436
        %v735 = vmul.f32 %v399, 0.5900436
        %v736 = vmul.f32 %v400, 0.5900436
        %v737 = vmul.f32 %v401, 0.5900436
        %v738 = vmul.f32 %v402, 0.5900436
        %v739 = vmul.f32 %v403, 0.5900436
        %v740 = vmul.f32 %v404, 0.5900436
        %v741 = vmul.f32 %v405, 0.5900436
        %v742 = vmul.f32 %v406, 0.5900436
        %v743 = vmul.f32 %v519, -3.0
        %v744 = vmul.f32 %v520, -3.0
        %v745 = vmul.f32 %v521, -3.0
        %v746 = vmul.f32 %v522, -3.0
        %v747 = vmul.f32 %v523, -3.0
        %v748 = vmul.f32 %v524, -3.0
        %v749 = vmul.f32 %v525, -3.0
        %v750 = vmul.f32 %v526, -3.0
        %v751 = vmul.f32 %v527, -3.0
        %v752 = vmul.f32 %v528, -3.0
        %v753 = vmul.f32 %v529, -3.0
        %v754 = vmul.f32 %v530, -3.0
        %v755 = vmul.f32 %v531, -3.0
        %v756 = vmul.f32 %v532, -3.0
        %v757 = vmul.f32 %v533, -3.0
        %v758 = vmul.f32 %v534, -3.0
        %v759 = vadd.f32 %v743, %v663
        %v760 = vadd.f32 %v744, %v664
        %v761 = vadd.f32 %v745, %v665
        %v762 = vadd.f32 %v746, %v666
        %v763 = vadd.f32 %v747, %v667
        %v764 = vadd.f32 %v748, %v668
        %v765 = vadd.f32 %v749, %v669
        %v766 = vadd.f32 %v750, %v670
        %v767 = vadd.f32 %v751, %v671
        %v768 = vadd.f32 %v752, %v672
        %v769 = vadd.f32 %v753, %v673
        %v770 = vadd.f32 %v754, %v674
        %v771 = vadd.f32 %v755, %v675
        %v772 = vadd.f32 %v756, %v676
        %v773 = vadd.f32 %v757, %v677
        %v774 = vadd.f32 %v758, %v678
        %v791 = vrot.slane %v759, 6
        %v792 = vrot.slane %v760, 6
        %v793 = vrot.slane %v761, 6
        %v794 = vrot.slane %v762, 6
        %v795 = vrot.slane %v763, 6
        %v796 = vrot.slane %v764, 6
        %v797 = vrot.slane %v765, 6
        %v798 = vrot.slane %v766, 6
        %v799 = vrot.slane %v767, 6
        %v800 = vrot.slane %v768, 6
        %v801 = vrot.slane %v769, 6
        %v802 = vrot.slane %v770, 6
        %v803 = vrot.slane %v771, 6
        %v804 = vrot.slane %v772, 6
        %v805 = vrot.slane %v773, 6
        %v806 = vrot.slane %v774, 6
        %v823 = vmul.f32 %v727, %v791
        %v824 = vmul.f32 %v728, %v792
        %v825 = vmul.f32 %v729, %v793
        %v826 = vmul.f32 %v730, %v794
        %v827 = vmul.f32 %v731, %v795
        %v828 = vmul.f32 %v732, %v796
        %v829 = vmul.f32 %v733, %v797
        %v830 = vmul.f32 %v734, %v798
        %v831 = vmul.f32 %v735, %v799
        %v832 = vmul.f32 %v736, %v800
        %v833 = vmul.f32 %v737, %v801
        %v834 = vmul.f32 %v738, %v802
        %v835 = vmul.f32 %v739, %v803
        %v836 = vmul.f32 %v740, %v804
        %v837 = vmul.f32 %v741, %v805
        %v838 = vmul.f32 %v742, %v806
        %v839 = vmul.f32 %v455, 2.8906114
        %v840 = vmul.f32 %v456, 2.8906114
        %v841 = vmul.f32 %v457, 2.8906114
        %v842 = vmul.f32 %v458, 2.8906114
        %v843 = vmul.f32 %v459, 2.8906114
        %v844 = vmul.f32 %v460, 2.8906114
        %v845 = vmul.f32 %v461, 2.8906114
        %v846 = vmul.f32 %v462, 2.8906114
        %v847 = vmul.f32 %v463, 2.8906114
        %v848 = vmul.f32 %v464, 2.8906114
        %v849 = vmul.f32 %v465, 2.8906114
        %v850 = vmul.f32 %v466, 2.8906114
        %v851 = vmul.f32 %v467, 2.8906114
        %v852 = vmul.f32 %v468, 2.8906114
        %v853 = vmul.f32 %v469, 2.8906114
        %v854 = vmul.f32 %v470, 2.8906114
        %v855 = vmul.f32 %v839, %v471
        %v856 = vmul.f32 %v840, %v472
        %v857 = vmul.f32 %v841, %v473
        %v858 = vmul.f32 %v842, %v474
        %v859 = vmul.f32 %v843, %v475
        %v860 = vmul.f32 %v844, %v476
        %v861 = vmul.f32 %v845, %v477
        %v862 = vmul.f32 %v846, %v478
        %v863 = vmul.f32 %v847, %v479
        %v864 = vmul.f32 %v848, %v480
        %v865 = vmul.f32 %v849, %v481
        %v866 = vmul.f32 %v850, %v482
        %v867 = vmul.f32 %v851, %v483
        %v868 = vmul.f32 %v852, %v484
        %v869 = vmul.f32 %v853, %v485
        %v870 = vmul.f32 %v854, %v486
        %v871 = vmul.f32 %v391, 0.4570458
        %v872 = vmul.f32 %v392, 0.4570458
        %v873 = vmul.f32 %v393, 0.4570458
        %v874 = vmul.f32 %v394, 0.4570458
        %v875 = vmul.f32 %v395, 0.4570458
        %v876 = vmul.f32 %v396, 0.4570458
        %v877 = vmul.f32 %v397, 0.4570458
        %v878 = vmul.f32 %v398, 0.4570458
        %v879 = vmul.f32 %v399, 0.4570458
        %v880 = vmul.f32 %v400, 0.4570458
        %v881 = vmul.f32 %v401, 0.4570458
        %v882 = vmul.f32 %v402, 0.4570458
        %v883 = vmul.f32 %v403, 0.4570458
        %v884 = vmul.f32 %v404, 0.4570458
        %v885 = vmul.f32 %v405, 0.4570458
        %v886 = vmul.f32 %v406, 0.4570458
        %v887 = vmul.f32 %v519, 5.0
        %v888 = vmul.f32 %v520, 5.0
        %v889 = vmul.f32 %v521, 5.0
        %v890 = vmul.f32 %v522, 5.0
        %v891 = vmul.f32 %v523, 5.0
        %v892 = vmul.f32 %v524, 5.0
        %v893 = vmul.f32 %v525, 5.0
        %v894 = vmul.f32 %v526, 5.0
        %v895 = vmul.f32 %v527, 5.0
        %v896 = vmul.f32 %v528, 5.0
        %v897 = vmul.f32 %v529, 5.0
        %v898 = vmul.f32 %v530, 5.0
        %v899 = vmul.f32 %v531, 5.0
        %v900 = vmul.f32 %v532, 5.0
        %v901 = vmul.f32 %v533, 5.0
        %v902 = vmul.f32 %v534, 5.0
        %v903 = vsub.f32 1.0, %v887
        %v904 = vsub.f32 1.0, %v888
        %v905 = vsub.f32 1.0, %v889
        %v906 = vsub.f32 1.0, %v890
        %v907 = vsub.f32 1.0, %v891
        %v908 = vsub.f32 1.0, %v892
        %v909 = vsub.f32 1.0, %v893
        %v910 = vsub.f32 1.0, %v894
        %v911 = vsub.f32 1.0, %v895
        %v912 = vsub.f32 1.0, %v896
        %v913 = vsub.f32 1.0, %v897
        %v914 = vsub.f32 1.0, %v898
        %v915 = vsub.f32 1.0, %v899
        %v916 = vsub.f32 1.0, %v900
        %v917 = vsub.f32 1.0, %v901
        %v918 = vsub.f32 1.0, %v902
        %v935 = vrot.slane %v903, 2
        %v936 = vrot.slane %v904, 2
        %v937 = vrot.slane %v905, 2
        %v938 = vrot.slane %v906, 2
        %v939 = vrot.slane %v907, 2
        %v940 = vrot.slane %v908, 2
        %v941 = vrot.slane %v909, 2
        %v942 = vrot.slane %v910, 2
        %v943 = vrot.slane %v911, 2
        %v944 = vrot.slane %v912, 2
        %v945 = vrot.slane %v913, 2
        %v946 = vrot.slane %v914, 2
        %v947 = vrot.slane %v915, 2
        %v948 = vrot.slane %v916, 2
        %v949 = vrot.slane %v917, 2
        %v950 = vrot.slane %v918, 2
        %v967 = vmul.f32 %v871, %v935
        %v968 = vmul.f32 %v872, %v936
        %v969 = vmul.f32 %v873, %v937
        %v970 = vmul.f32 %v874, %v938
        %v971 = vmul.f32 %v875, %v939
        %v972 = vmul.f32 %v876, %v940
        %v973 = vmul.f32 %v877, %v941
        %v974 = vmul.f32 %v878, %v942
        %v975 = vmul.f32 %v879, %v943
        %v976 = vmul.f32 %v880, %v944
        %v977 = vmul.f32 %v881, %v945
        %v978 = vmul.f32 %v882, %v946
        %v979 = vmul.f32 %v883, %v947
        %v980 = vmul.f32 %v884, %v948
        %v981 = vmul.f32 %v885, %v949
        %v982 = vmul.f32 %v886, %v950
        %v983 = vmul.f32 %v391, 0.37317634
        %v984 = vmul.f32 %v392, 0.37317634
        %v985 = vmul.f32 %v393, 0.37317634
        %v986 = vmul.f32 %v394, 0.37317634
        %v987 = vmul.f32 %v395, 0.37317634
        %v988 = vmul.f32 %v396, 0.37317634
        %v989 = vmul.f32 %v397, 0.37317634
        %v990 = vmul.f32 %v398, 0.37317634
        %v991 = vmul.f32 %v399, 0.37317634
        %v992 = vmul.f32 %v400, 0.37317634
        %v993 = vmul.f32 %v401, 0.37317634
        %v994 = vmul.f32 %v402, 0.37317634
        %v995 = vmul.f32 %v403, 0.37317634
        %v996 = vmul.f32 %v404, 0.37317634
        %v997 = vmul.f32 %v405, 0.37317634
        %v998 = vmul.f32 %v406, 0.37317634
        %v999 = vsub.f32 %v887, 3.0
        %v1000 = vsub.f32 %v888, 3.0
        %v1001 = vsub.f32 %v889, 3.0
        %v1002 = vsub.f32 %v890, 3.0
        %v1003 = vsub.f32 %v891, 3.0
        %v1004 = vsub.f32 %v892, 3.0
        %v1005 = vsub.f32 %v893, 3.0
        %v1006 = vsub.f32 %v894, 3.0
        %v1007 = vsub.f32 %v895, 3.0
        %v1008 = vsub.f32 %v896, 3.0
        %v1009 = vsub.f32 %v897, 3.0
        %v1010 = vsub.f32 %v898, 3.0
        %v1011 = vsub.f32 %v899, 3.0
        %v1012 = vsub.f32 %v900, 3.0
        %v1013 = vsub.f32 %v901, 3.0
        %v1014 = vsub.f32 %v902, 3.0
        %v1015 = vmul.f32 %v983, %v999
        %v1016 = vmul.f32 %v984, %v1000
        %v1017 = vmul.f32 %v985, %v1001
        %v1018 = vmul.f32 %v986, %v1002
        %v1019 = vmul.f32 %v987, %v1003
        %v1020 = vmul.f32 %v988, %v1004
        %v1021 = vmul.f32 %v989, %v1005
        %v1022 = vmul.f32 %v990, %v1006
        %v1023 = vmul.f32 %v991, %v1007
        %v1024 = vmul.f32 %v992, %v1008
        %v1025 = vmul.f32 %v993, %v1009
        %v1026 = vmul.f32 %v994, %v1010
        %v1027 = vmul.f32 %v995, %v1011
        %v1028 = vmul.f32 %v996, %v1012
        %v1029 = vmul.f32 %v997, %v1013
        %v1030 = vmul.f32 %v998, %v1014
        %v1031 = vrot.slane %v903, 4
        %v1032 = vrot.slane %v904, 4
        %v1033 = vrot.slane %v905, 4
        %v1034 = vrot.slane %v906, 4
        %v1035 = vrot.slane %v907, 4
        %v1036 = vrot.slane %v908, 4
        %v1037 = vrot.slane %v909, 4
        %v1038 = vrot.slane %v910, 4
        %v1039 = vrot.slane %v911, 4
        %v1040 = vrot.slane %v912, 4
        %v1041 = vrot.slane %v913, 4
        %v1042 = vrot.slane %v914, 4
        %v1043 = vrot.slane %v915, 4
        %v1044 = vrot.slane %v916, 4
        %v1045 = vrot.slane %v917, 4
        %v1046 = vrot.slane %v918, 4
        %v1063 = vmul.f32 %v871, %v1031
        %v1064 = vmul.f32 %v872, %v1032
        %v1065 = vmul.f32 %v873, %v1033
        %v1066 = vmul.f32 %v874, %v1034
        %v1067 = vmul.f32 %v875, %v1035
        %v1068 = vmul.f32 %v876, %v1036
        %v1069 = vmul.f32 %v877, %v1037
        %v1070 = vmul.f32 %v878, %v1038
        %v1071 = vmul.f32 %v879, %v1039
        %v1072 = vmul.f32 %v880, %v1040
        %v1073 = vmul.f32 %v881, %v1041
        %v1074 = vmul.f32 %v882, %v1042
        %v1075 = vmul.f32 %v883, %v1043
        %v1076 = vmul.f32 %v884, %v1044
        %v1077 = vmul.f32 %v885, %v1045
        %v1078 = vmul.f32 %v886, %v1046
        %v1079 = vmul.f32 %v391, 1.4453057
        %v1080 = vmul.f32 %v392, 1.4453057
        %v1081 = vmul.f32 %v393, 1.4453057
        %v1082 = vmul.f32 %v394, 1.4453057
        %v1083 = vmul.f32 %v395, 1.4453057
        %v1084 = vmul.f32 %v396, 1.4453057
        %v1085 = vmul.f32 %v397, 1.4453057
        %v1086 = vmul.f32 %v398, 1.4453057
        %v1087 = vmul.f32 %v399, 1.4453057
        %v1088 = vmul.f32 %v400, 1.4453057
        %v1089 = vmul.f32 %v401, 1.4453057
        %v1090 = vmul.f32 %v402, 1.4453057
        %v1091 = vmul.f32 %v403, 1.4453057
        %v1092 = vmul.f32 %v404, 1.4453057
        %v1093 = vmul.f32 %v405, 1.4453057
        %v1094 = vmul.f32 %v406, 1.4453057
        %v1111 = vrot.slane %v695, 4
        %v1112 = vrot.slane %v696, 4
        %v1113 = vrot.slane %v697, 4
        %v1114 = vrot.slane %v698, 4
        %v1115 = vrot.slane %v699, 4
        %v1116 = vrot.slane %v700, 4
        %v1117 = vrot.slane %v701, 4
        %v1118 = vrot.slane %v702, 4
        %v1119 = vrot.slane %v703, 4
        %v1120 = vrot.slane %v704, 4
        %v1121 = vrot.slane %v705, 4
        %v1122 = vrot.slane %v706, 4
        %v1123 = vrot.slane %v707, 4
        %v1124 = vrot.slane %v708, 4
        %v1125 = vrot.slane %v709, 4
        %v1126 = vrot.slane %v710, 4
        %v1143 = vmul.f32 %v1079, %v1111
        %v1144 = vmul.f32 %v1080, %v1112
        %v1145 = vmul.f32 %v1081, %v1113
        %v1146 = vmul.f32 %v1082, %v1114
        %v1147 = vmul.f32 %v1083, %v1115
        %v1148 = vmul.f32 %v1084, %v1116
        %v1149 = vmul.f32 %v1085, %v1117
        %v1150 = vmul.f32 %v1086, %v1118
        %v1151 = vmul.f32 %v1087, %v1119
        %v1152 = vmul.f32 %v1088, %v1120
        %v1153 = vmul.f32 %v1089, %v1121
        %v1154 = vmul.f32 %v1090, %v1122
        %v1155 = vmul.f32 %v1091, %v1123
        %v1156 = vmul.f32 %v1092, %v1124
        %v1157 = vmul.f32 %v1093, %v1125
        %v1158 = vmul.f32 %v1094, %v1126
        %v1159 = vsub.f32 0.0, %v519
        %v1160 = vsub.f32 0.0, %v520
        %v1161 = vsub.f32 0.0, %v521
        %v1162 = vsub.f32 0.0, %v522
        %v1163 = vsub.f32 0.0, %v523
        %v1164 = vsub.f32 0.0, %v524
        %v1165 = vsub.f32 0.0, %v525
        %v1166 = vsub.f32 0.0, %v526
        %v1167 = vsub.f32 0.0, %v527
        %v1168 = vsub.f32 0.0, %v528
        %v1169 = vsub.f32 0.0, %v529
        %v1170 = vsub.f32 0.0, %v530
        %v1171 = vsub.f32 0.0, %v531
        %v1172 = vsub.f32 0.0, %v532
        %v1173 = vsub.f32 0.0, %v533
        %v1174 = vsub.f32 0.0, %v534
        %v1175 = vmul.f32 %v519, 3.0
        %v1176 = vmul.f32 %v520, 3.0
        %v1177 = vmul.f32 %v521, 3.0
        %v1178 = vmul.f32 %v522, 3.0
        %v1179 = vmul.f32 %v523, 3.0
        %v1180 = vmul.f32 %v524, 3.0
        %v1181 = vmul.f32 %v525, 3.0
        %v1182 = vmul.f32 %v526, 3.0
        %v1183 = vmul.f32 %v527, 3.0
        %v1184 = vmul.f32 %v528, 3.0
        %v1185 = vmul.f32 %v529, 3.0
        %v1186 = vmul.f32 %v530, 3.0
        %v1187 = vmul.f32 %v531, 3.0
        %v1188 = vmul.f32 %v532, 3.0
        %v1189 = vmul.f32 %v533, 3.0
        %v1190 = vmul.f32 %v534, 3.0
        %v1207 = vrot.slane %v1175, 2
        %v1208 = vrot.slane %v1176, 2
        %v1209 = vrot.slane %v1177, 2
        %v1210 = vrot.slane %v1178, 2
        %v1211 = vrot.slane %v1179, 2
        %v1212 = vrot.slane %v1180, 2
        %v1213 = vrot.slane %v1181, 2
        %v1214 = vrot.slane %v1182, 2
        %v1215 = vrot.slane %v1183, 2
        %v1216 = vrot.slane %v1184, 2
        %v1217 = vrot.slane %v1185, 2
        %v1218 = vrot.slane %v1186, 2
        %v1219 = vrot.slane %v1187, 2
        %v1220 = vrot.slane %v1188, 2
        %v1221 = vrot.slane %v1189, 2
        %v1222 = vrot.slane %v1190, 2
        %v1239 = vadd.f32 %v1159, %v1207
        %v1240 = vadd.f32 %v1160, %v1208
        %v1241 = vadd.f32 %v1161, %v1209
        %v1242 = vadd.f32 %v1162, %v1210
        %v1243 = vadd.f32 %v1163, %v1211
        %v1244 = vadd.f32 %v1164, %v1212
        %v1245 = vadd.f32 %v1165, %v1213
        %v1246 = vadd.f32 %v1166, %v1214
        %v1247 = vadd.f32 %v1167, %v1215
        %v1248 = vadd.f32 %v1168, %v1216
        %v1249 = vadd.f32 %v1169, %v1217
        %v1250 = vadd.f32 %v1170, %v1218
        %v1251 = vadd.f32 %v1171, %v1219
        %v1252 = vadd.f32 %v1172, %v1220
        %v1253 = vadd.f32 %v1173, %v1221
        %v1254 = vadd.f32 %v1174, %v1222
        %v1255 = vmul.f32 %v727, %v1239
        %v1256 = vmul.f32 %v728, %v1240
        %v1257 = vmul.f32 %v729, %v1241
        %v1258 = vmul.f32 %v730, %v1242
        %v1259 = vmul.f32 %v731, %v1243
        %v1260 = vmul.f32 %v732, %v1244
        %v1261 = vmul.f32 %v733, %v1245
        %v1262 = vmul.f32 %v734, %v1246
        %v1263 = vmul.f32 %v735, %v1247
        %v1264 = vmul.f32 %v736, %v1248
        %v1265 = vmul.f32 %v737, %v1249
        %v1266 = vmul.f32 %v738, %v1250
        %v1267 = vmul.f32 %v739, %v1251
        %v1268 = vmul.f32 %v740, %v1252
        %v1269 = vmul.f32 %v741, %v1253
        %v1270 = vmul.f32 %v742, %v1254
        %v1287 = vrot.slane %v535, 2
        %v1288 = vrot.slane %v536, 2
        %v1289 = vrot.slane %v537, 2
        %v1290 = vrot.slane %v538, 2
        %v1291 = vrot.slane %v539, 2
        %v1292 = vrot.slane %v540, 2
        %v1293 = vrot.slane %v541, 2
        %v1294 = vrot.slane %v542, 2
        %v1295 = vrot.slane %v543, 2
        %v1296 = vrot.slane %v544, 2
        %v1297 = vrot.slane %v545, 2
        %v1298 = vrot.slane %v546, 2
        %v1299 = vrot.slane %v547, 2
        %v1300 = vrot.slane %v548, 2
        %v1301 = vrot.slane %v549, 2
        %v1302 = vrot.slane %v550, 2
        %v1335 = vrot.slane %v631, 2
        %v1336 = vrot.slane %v632, 2
        %v1337 = vrot.slane %v633, 2
        %v1338 = vrot.slane %v634, 2
        %v1339 = vrot.slane %v635, 2
        %v1340 = vrot.slane %v636, 2
        %v1341 = vrot.slane %v637, 2
        %v1342 = vrot.slane %v638, 2
        %v1343 = vrot.slane %v639, 2
        %v1344 = vrot.slane %v640, 2
        %v1345 = vrot.slane %v641, 2
        %v1346 = vrot.slane %v642, 2
        %v1347 = vrot.slane %v643, 2
        %v1348 = vrot.slane %v644, 2
        %v1349 = vrot.slane %v645, 2
        %v1350 = vrot.slane %v646, 2
        %v1383 = vrot.slane %v855, 4
        %v1384 = vrot.slane %v856, 4
        %v1385 = vrot.slane %v857, 4
        %v1386 = vrot.slane %v858, 4
        %v1387 = vrot.slane %v859, 4
        %v1388 = vrot.slane %v860, 4
        %v1389 = vrot.slane %v861, 4
        %v1390 = vrot.slane %v862, 4
        %v1391 = vrot.slane %v863, 4
        %v1392 = vrot.slane %v864, 4
        %v1393 = vrot.slane %v865, 4
        %v1394 = vrot.slane %v866, 4
        %v1395 = vrot.slane %v867, 4
        %v1396 = vrot.slane %v868, 4
        %v1397 = vrot.slane %v869, 4
        %v1398 = vrot.slane %v870, 4
        %v1431 = vrot.slane %v967, 4
        %v1432 = vrot.slane %v968, 4
        %v1433 = vrot.slane %v969, 4
        %v1434 = vrot.slane %v970, 4
        %v1435 = vrot.slane %v971, 4
        %v1436 = vrot.slane %v972, 4
        %v1437 = vrot.slane %v973, 4
        %v1438 = vrot.slane %v974, 4
        %v1439 = vrot.slane %v975, 4
        %v1440 = vrot.slane %v976, 4
        %v1441 = vrot.slane %v977, 4
        %v1442 = vrot.slane %v978, 4
        %v1443 = vrot.slane %v979, 4
        %v1444 = vrot.slane %v980, 4
        %v1445 = vrot.slane %v981, 4
        %v1446 = vrot.slane %v982, 4
        %v1479 = vrot.slane %v1015, 4
        %v1480 = vrot.slane %v1016, 4
        %v1481 = vrot.slane %v1017, 4
        %v1482 = vrot.slane %v1018, 4
        %v1483 = vrot.slane %v1019, 4
        %v1484 = vrot.slane %v1020, 4
        %v1485 = vrot.slane %v1021, 4
        %v1486 = vrot.slane %v1022, 4
        %v1487 = vrot.slane %v1023, 4
        %v1488 = vrot.slane %v1024, 4
        %v1489 = vrot.slane %v1025, 4
        %v1490 = vrot.slane %v1026, 4
        %v1491 = vrot.slane %v1027, 4
        %v1492 = vrot.slane %v1028, 4
        %v1493 = vrot.slane %v1029, 4
        %v1494 = vrot.slane %v1030, 4
        %v1527 = vrot.slane %v1063, 6
        %v1528 = vrot.slane %v1064, 6
        %v1529 = vrot.slane %v1065, 6
        %v1530 = vrot.slane %v1066, 6
        %v1531 = vrot.slane %v1067, 6
        %v1532 = vrot.slane %v1068, 6
        %v1533 = vrot.slane %v1069, 6
        %v1534 = vrot.slane %v1070, 6
        %v1535 = vrot.slane %v1071, 6
        %v1536 = vrot.slane %v1072, 6
        %v1537 = vrot.slane %v1073, 6
        %v1538 = vrot.slane %v1074, 6
        %v1539 = vrot.slane %v1075, 6
        %v1540 = vrot.slane %v1076, 6
        %v1541 = vrot.slane %v1077, 6
        %v1542 = vrot.slane %v1078, 6
        %v1575 = vrot.slane %v1255, 2
        %v1576 = vrot.slane %v1256, 2
        %v1577 = vrot.slane %v1257, 2
        %v1578 = vrot.slane %v1258, 2
        %v1579 = vrot.slane %v1259, 2
        %v1580 = vrot.slane %v1260, 2
        %v1581 = vrot.slane %v1261, 2
        %v1582 = vrot.slane %v1262, 2
        %v1583 = vrot.slane %v1263, 2
        %v1584 = vrot.slane %v1264, 2
        %v1585 = vrot.slane %v1265, 2
        %v1586 = vrot.slane %v1266, 2
        %v1587 = vrot.slane %v1267, 2
        %v1588 = vrot.slane %v1268, 2
        %v1589 = vrot.slane %v1269, 2
        %v1590 = vrot.slane %v1270, 2
        %vm1607 = vcmask 1041408
        %v1608 = vsel %vm1607, 0.2820948, %v535
        %v1609 = vsel %vm1607, 0.2820948, %v536
        %v1610 = vsel %vm1607, 0.2820948, %v537
        %v1611 = vsel %vm1607, 0.2820948, %v538
        %v1612 = vsel %vm1607, 0.2820948, %v539
        %v1613 = vsel %vm1607, 0.2820948, %v540
        %v1614 = vsel %vm1607, 0.2820948, %v541
        %v1615 = vsel %vm1607, 0.2820948, %v542
        %v1616 = vsel %vm1607, 0.2820948, %v543
        %v1617 = vsel %vm1607, 0.2820948, %v544
        %v1618 = vsel %vm1607, 0.2820948, %v545
        %v1619 = vsel %vm1607, 0.2820948, %v546
        %v1620 = vsel %vm1607, 0.2820948, %v547
        %v1621 = vsel %vm1607, 0.2820948, %v548
        %v1622 = vsel %vm1607, 0.2820948, %v549
        %v1623 = vsel %vm1607, 0.2820948, %v550
        %vm1624 = vcmask 1043456
        %v1625 = vsel %vm1624, %v1608, %v551
        %v1626 = vsel %vm1624, %v1609, %v552
        %v1627 = vsel %vm1624, %v1610, %v553
        %v1628 = vsel %vm1624, %v1611, %v554
        %v1629 = vsel %vm1624, %v1612, %v555
        %v1630 = vsel %vm1624, %v1613, %v556
        %v1631 = vsel %vm1624, %v1614, %v557
        %v1632 = vsel %vm1624, %v1615, %v558
        %v1633 = vsel %vm1624, %v1616, %v559
        %v1634 = vsel %vm1624, %v1617, %v560
        %v1635 = vsel %vm1624, %v1618, %v561
        %v1636 = vsel %vm1624, %v1619, %v562
        %v1637 = vsel %vm1624, %v1620, %v563
        %v1638 = vsel %vm1624, %v1621, %v564
        %v1639 = vsel %vm1624, %v1622, %v565
        %v1640 = vsel %vm1624, %v1623, %v566
        %vm1641 = vcmask 1045504
        %v1642 = vsel %vm1641, %v1625, %v1287
        %v1643 = vsel %vm1641, %v1626, %v1288
        %v1644 = vsel %vm1641, %v1627, %v1289
        %v1645 = vsel %vm1641, %v1628, %v1290
        %v1646 = vsel %vm1641, %v1629, %v1291
        %v1647 = vsel %vm1641, %v1630, %v1292
        %v1648 = vsel %vm1641, %v1631, %v1293
        %v1649 = vsel %vm1641, %v1632, %v1294
        %v1650 = vsel %vm1641, %v1633, %v1295
        %v1651 = vsel %vm1641, %v1634, %v1296
        %v1652 = vsel %vm1641, %v1635, %v1297
        %v1653 = vsel %vm1641, %v1636, %v1298
        %v1654 = vsel %vm1641, %v1637, %v1299
        %v1655 = vsel %vm1641, %v1638, %v1300
        %v1656 = vsel %vm1641, %v1639, %v1301
        %v1657 = vsel %vm1641, %v1640, %v1302
        %v1658 = vsel %vm1607, %v567, %v583
        %v1659 = vsel %vm1607, %v568, %v584
        %v1660 = vsel %vm1607, %v569, %v585
        %v1661 = vsel %vm1607, %v570, %v586
        %v1662 = vsel %vm1607, %v571, %v587
        %v1663 = vsel %vm1607, %v572, %v588
        %v1664 = vsel %vm1607, %v573, %v589
        %v1665 = vsel %vm1607, %v574, %v590
        %v1666 = vsel %vm1607, %v575, %v591
        %v1667 = vsel %vm1607, %v576, %v592
        %v1668 = vsel %vm1607, %v577, %v593
        %v1669 = vsel %vm1607, %v578, %v594
        %v1670 = vsel %vm1607, %v579, %v595
        %v1671 = vsel %vm1607, %v580, %v596
        %v1672 = vsel %vm1607, %v581, %v597
        %v1673 = vsel %vm1607, %v582, %v598
        %v1674 = vsel %vm1624, %v1658, %v615
        %v1675 = vsel %vm1624, %v1659, %v616
        %v1676 = vsel %vm1624, %v1660, %v617
        %v1677 = vsel %vm1624, %v1661, %v618
        %v1678 = vsel %vm1624, %v1662, %v619
        %v1679 = vsel %vm1624, %v1663, %v620
        %v1680 = vsel %vm1624, %v1664, %v621
        %v1681 = vsel %vm1624, %v1665, %v622
        %v1682 = vsel %vm1624, %v1666, %v623
        %v1683 = vsel %vm1624, %v1667, %v624
        %v1684 = vsel %vm1624, %v1668, %v625
        %v1685 = vsel %vm1624, %v1669, %v626
        %v1686 = vsel %vm1624, %v1670, %v627
        %v1687 = vsel %vm1624, %v1671, %v628
        %v1688 = vsel %vm1624, %v1672, %v629
        %v1689 = vsel %vm1624, %v1673, %v630
        %v1690 = vsel %vm1641, %v1674, %v1335
        %v1691 = vsel %vm1641, %v1675, %v1336
        %v1692 = vsel %vm1641, %v1676, %v1337
        %v1693 = vsel %vm1641, %v1677, %v1338
        %v1694 = vsel %vm1641, %v1678, %v1339
        %v1695 = vsel %vm1641, %v1679, %v1340
        %v1696 = vsel %vm1641, %v1680, %v1341
        %v1697 = vsel %vm1641, %v1681, %v1342
        %v1698 = vsel %vm1641, %v1682, %v1343
        %v1699 = vsel %vm1641, %v1683, %v1344
        %v1700 = vsel %vm1641, %v1684, %v1345
        %v1701 = vsel %vm1641, %v1685, %v1346
        %v1702 = vsel %vm1641, %v1686, %v1347
        %v1703 = vsel %vm1641, %v1687, %v1348
        %v1704 = vsel %vm1641, %v1688, %v1349
        %v1705 = vsel %vm1641, %v1689, %v1350
        %v1706 = vsel %vm1607, %v711, %v823
        %v1707 = vsel %vm1607, %v712, %v824
        %v1708 = vsel %vm1607, %v713, %v825
        %v1709 = vsel %vm1607, %v714, %v826
        %v1710 = vsel %vm1607, %v715, %v827
        %v1711 = vsel %vm1607, %v716, %v828
        %v1712 = vsel %vm1607, %v717, %v829
        %v1713 = vsel %vm1607, %v718, %v830
        %v1714 = vsel %vm1607, %v719, %v831
        %v1715 = vsel %vm1607, %v720, %v832
        %v1716 = vsel %vm1607, %v721, %v833
        %v1717 = vsel %vm1607, %v722, %v834
        %v1718 = vsel %vm1607, %v723, %v835
        %v1719 = vsel %vm1607, %v724, %v836
        %v1720 = vsel %vm1607, %v725, %v837
        %v1721 = vsel %vm1607, %v726, %v838
        %v1722 = vsel %vm1624, %v1706, %v1383
        %v1723 = vsel %vm1624, %v1707, %v1384
        %v1724 = vsel %vm1624, %v1708, %v1385
        %v1725 = vsel %vm1624, %v1709, %v1386
        %v1726 = vsel %vm1624, %v1710, %v1387
        %v1727 = vsel %vm1624, %v1711, %v1388
        %v1728 = vsel %vm1624, %v1712, %v1389
        %v1729 = vsel %vm1624, %v1713, %v1390
        %v1730 = vsel %vm1624, %v1714, %v1391
        %v1731 = vsel %vm1624, %v1715, %v1392
        %v1732 = vsel %vm1624, %v1716, %v1393
        %v1733 = vsel %vm1624, %v1717, %v1394
        %v1734 = vsel %vm1624, %v1718, %v1395
        %v1735 = vsel %vm1624, %v1719, %v1396
        %v1736 = vsel %vm1624, %v1720, %v1397
        %v1737 = vsel %vm1624, %v1721, %v1398
        %v1738 = vsel %vm1641, %v1722, %v1431
        %v1739 = vsel %vm1641, %v1723, %v1432
        %v1740 = vsel %vm1641, %v1724, %v1433
        %v1741 = vsel %vm1641, %v1725, %v1434
        %v1742 = vsel %vm1641, %v1726, %v1435
        %v1743 = vsel %vm1641, %v1727, %v1436
        %v1744 = vsel %vm1641, %v1728, %v1437
        %v1745 = vsel %vm1641, %v1729, %v1438
        %v1746 = vsel %vm1641, %v1730, %v1439
        %v1747 = vsel %vm1641, %v1731, %v1440
        %v1748 = vsel %vm1641, %v1732, %v1441
        %v1749 = vsel %vm1641, %v1733, %v1442
        %v1750 = vsel %vm1641, %v1734, %v1443
        %v1751 = vsel %vm1641, %v1735, %v1444
        %v1752 = vsel %vm1641, %v1736, %v1445
        %v1753 = vsel %vm1641, %v1737, %v1446
        %v1754 = vsel %vm1607, %v1479, %v1527
        %v1755 = vsel %vm1607, %v1480, %v1528
        %v1756 = vsel %vm1607, %v1481, %v1529
        %v1757 = vsel %vm1607, %v1482, %v1530
        %v1758 = vsel %vm1607, %v1483, %v1531
        %v1759 = vsel %vm1607, %v1484, %v1532
        %v1760 = vsel %vm1607, %v1485, %v1533
        %v1761 = vsel %vm1607, %v1486, %v1534
        %v1762 = vsel %vm1607, %v1487, %v1535
        %v1763 = vsel %vm1607, %v1488, %v1536
        %v1764 = vsel %vm1607, %v1489, %v1537
        %v1765 = vsel %vm1607, %v1490, %v1538
        %v1766 = vsel %vm1607, %v1491, %v1539
        %v1767 = vsel %vm1607, %v1492, %v1540
        %v1768 = vsel %vm1607, %v1493, %v1541
        %v1769 = vsel %vm1607, %v1494, %v1542
        %v1770 = vsel %vm1624, %v1754, %v1143
        %v1771 = vsel %vm1624, %v1755, %v1144
        %v1772 = vsel %vm1624, %v1756, %v1145
        %v1773 = vsel %vm1624, %v1757, %v1146
        %v1774 = vsel %vm1624, %v1758, %v1147
        %v1775 = vsel %vm1624, %v1759, %v1148
        %v1776 = vsel %vm1624, %v1760, %v1149
        %v1777 = vsel %vm1624, %v1761, %v1150
        %v1778 = vsel %vm1624, %v1762, %v1151
        %v1779 = vsel %vm1624, %v1763, %v1152
        %v1780 = vsel %vm1624, %v1764, %v1153
        %v1781 = vsel %vm1624, %v1765, %v1154
        %v1782 = vsel %vm1624, %v1766, %v1155
        %v1783 = vsel %vm1624, %v1767, %v1156
        %v1784 = vsel %vm1624, %v1768, %v1157
        %v1785 = vsel %vm1624, %v1769, %v1158
        %v1786 = vsel %vm1641, %v1770, %v1575
        %v1787 = vsel %vm1641, %v1771, %v1576
        %v1788 = vsel %vm1641, %v1772, %v1577
        %v1789 = vsel %vm1641, %v1773, %v1578
        %v1790 = vsel %vm1641, %v1774, %v1579
        %v1791 = vsel %vm1641, %v1775, %v1580
        %v1792 = vsel %vm1641, %v1776, %v1581
        %v1793 = vsel %vm1641, %v1777, %v1582
        %v1794 = vsel %vm1641, %v1778, %v1583
        %v1795 = vsel %vm1641, %v1779, %v1584
        %v1796 = vsel %vm1641, %v1780, %v1585
        %v1797 = vsel %vm1641, %v1781, %v1586
        %v1798 = vsel %vm1641, %v1782, %v1587
        %v1799 = vsel %vm1641, %v1783, %v1588
        %v1800 = vsel %vm1641, %v1784, %v1589
        %v1801 = vsel %vm1641, %v1785, %v1590
        %v1802 = vpack.c.bf16 %v1690, %v1642
        %v1803 = vpack.c.bf16 %v1691, %v1643
        %v1804 = vpack.c.bf16 %v1692, %v1644
        %v1805 = vpack.c.bf16 %v1693, %v1645
        %v1806 = vpack.c.bf16 %v1694, %v1646
        %v1807 = vpack.c.bf16 %v1695, %v1647
        %v1808 = vpack.c.bf16 %v1696, %v1648
        %v1809 = vpack.c.bf16 %v1697, %v1649
        %v1810 = vpack.c.bf16 %v1698, %v1650
        %v1811 = vpack.c.bf16 %v1699, %v1651
        %v1812 = vpack.c.bf16 %v1700, %v1652
        %v1813 = vpack.c.bf16 %v1701, %v1653
        %v1814 = vpack.c.bf16 %v1702, %v1654
        %v1815 = vpack.c.bf16 %v1703, %v1655
        %v1816 = vpack.c.bf16 %v1704, %v1656
        %v1817 = vpack.c.bf16 %v1705, %v1657
        %v1818 = vpack.c.bf16 %v1786, %v1738
        %v1819 = vpack.c.bf16 %v1787, %v1739
        %v1820 = vpack.c.bf16 %v1788, %v1740
        %v1821 = vpack.c.bf16 %v1789, %v1741
        %v1822 = vpack.c.bf16 %v1790, %v1742
        %v1823 = vpack.c.bf16 %v1791, %v1743
        %v1824 = vpack.c.bf16 %v1792, %v1744
        %v1825 = vpack.c.bf16 %v1793, %v1745
        %v1826 = vpack.c.bf16 %v1794, %v1746
        %v1827 = vpack.c.bf16 %v1795, %v1747
        %v1828 = vpack.c.bf16 %v1796, %v1748
        %v1829 = vpack.c.bf16 %v1797, %v1749
        %v1830 = vpack.c.bf16 %v1798, %v1750
        %v1831 = vpack.c.bf16 %v1799, %v1751
        %v1832 = vpack.c.bf16 %v1800, %v1752
        %v1833 = vpack.c.bf16 %v1801, %v1753
        %v1866 = vunpack.c.l.b16 %v359
        %v1867 = vunpack.c.h.b16 %v359
        %v1868 = vunpack.c.l.b16 %v360
        %v1869 = vunpack.c.h.b16 %v360
        %v1870 = vunpack.c.l.b16 %v361
        %v1871 = vunpack.c.h.b16 %v361
        %v1872 = vunpack.c.l.b16 %v362
        %v1873 = vunpack.c.h.b16 %v362
        %v1874 = vunpack.c.l.b16 %v363
        %v1875 = vunpack.c.h.b16 %v363
        %v1876 = vunpack.c.l.b16 %v364
        %v1877 = vunpack.c.h.b16 %v364
        %v1878 = vunpack.c.l.b16 %v365
        %v1879 = vunpack.c.h.b16 %v365
        %v1880 = vunpack.c.l.b16 %v366
        %v1881 = vunpack.c.h.b16 %v366
        %v1882 = vunpack.c.l.b16 %v367
        %v1883 = vunpack.c.h.b16 %v367
        %v1884 = vunpack.c.l.b16 %v368
        %v1885 = vunpack.c.h.b16 %v368
        %v1886 = vunpack.c.l.b16 %v369
        %v1887 = vunpack.c.h.b16 %v369
        %v1888 = vunpack.c.l.b16 %v370
        %v1889 = vunpack.c.h.b16 %v370
        %v1890 = vunpack.c.l.b16 %v371
        %v1891 = vunpack.c.h.b16 %v371
        %v1892 = vunpack.c.l.b16 %v372
        %v1893 = vunpack.c.h.b16 %v372
        %v1894 = vunpack.c.l.b16 %v373
        %v1895 = vunpack.c.h.b16 %v373
        %v1896 = vunpack.c.l.b16 %v374
        %v1897 = vunpack.c.h.b16 %v374
        %v1898 = vunpack.c.l.b16 %v375
        %v1899 = vunpack.c.h.b16 %v375
        %v1900 = vunpack.c.l.b16 %v376
        %v1901 = vunpack.c.h.b16 %v376
        %v1902 = vunpack.c.l.b16 %v377
        %v1903 = vunpack.c.h.b16 %v377
        %v1904 = vunpack.c.l.b16 %v378
        %v1905 = vunpack.c.h.b16 %v378
        %v1906 = vunpack.c.l.b16 %v379
        %v1907 = vunpack.c.h.b16 %v379
        %v1908 = vunpack.c.l.b16 %v380
        %v1909 = vunpack.c.h.b16 %v380
        %v1910 = vunpack.c.l.b16 %v381
        %v1911 = vunpack.c.h.b16 %v381
        %v1912 = vunpack.c.l.b16 %v382
        %v1913 = vunpack.c.h.b16 %v382
        %v1914 = vunpack.c.l.b16 %v383
        %v1915 = vunpack.c.h.b16 %v383
        %v1916 = vunpack.c.l.b16 %v384
        %v1917 = vunpack.c.h.b16 %v384
        %v1918 = vunpack.c.l.b16 %v385
        %v1919 = vunpack.c.h.b16 %v385
        %v1920 = vunpack.c.l.b16 %v386
        %v1921 = vunpack.c.h.b16 %v386
        %v1922 = vunpack.c.l.b16 %v387
        %v1923 = vunpack.c.h.b16 %v387
        %v1924 = vunpack.c.l.b16 %v388
        %v1925 = vunpack.c.h.b16 %v388
        %v1926 = vunpack.c.l.b16 %v389
        %v1927 = vunpack.c.h.b16 %v389
        %v1928 = vunpack.c.l.b16 %v390
        %v1929 = vunpack.c.h.b16 %v390
        %v1930 = vpack.c.b16 %v1882, %v1866
        %v1931 = vpack.c.b16 %v1883, %v1867
        %v1932 = vpack.c.b16 %v1884, %v1868
        %v1933 = vpack.c.b16 %v1885, %v1869
        %v1934 = vpack.c.b16 %v1886, %v1870
        %v1935 = vpack.c.b16 %v1887, %v1871
        %v1936 = vpack.c.b16 %v1888, %v1872
        %v1937 = vpack.c.b16 %v1889, %v1873
        %v1938 = vpack.c.b16 %v1890, %v1874
        %v1939 = vpack.c.b16 %v1891, %v1875
        %v1940 = vpack.c.b16 %v1892, %v1876
        %v1941 = vpack.c.b16 %v1893, %v1877
        %v1942 = vpack.c.b16 %v1894, %v1878
        %v1943 = vpack.c.b16 %v1895, %v1879
        %v1944 = vpack.c.b16 %v1896, %v1880
        %v1945 = vpack.c.b16 %v1897, %v1881
        %v1946 = vpack.c.b16 %v1914, %v1898
        %v1947 = vpack.c.b16 %v1915, %v1899
        %v1948 = vpack.c.b16 %v1916, %v1900
        %v1949 = vpack.c.b16 %v1917, %v1901
        %v1950 = vpack.c.b16 %v1918, %v1902
        %v1951 = vpack.c.b16 %v1919, %v1903
        %v1952 = vpack.c.b16 %v1920, %v1904
        %v1953 = vpack.c.b16 %v1921, %v1905
        %v1954 = vpack.c.b16 %v1922, %v1906
        %v1955 = vpack.c.b16 %v1923, %v1907
        %v1956 = vpack.c.b16 %v1924, %v1908
        %v1957 = vpack.c.b16 %v1925, %v1909
        %v1958 = vpack.c.b16 %v1926, %v1910
        %v1959 = vpack.c.b16 %v1927, %v1911
        %v1960 = vpack.c.b16 %v1928, %v1912
        %v1961 = vpack.c.b16 %v1929, %v1913
        %v1994 = vld [vmem:[%s2] sm:$0xf]
        %v1995 = vld [vmem:[%s2 + $0x4] sm:$0xf]
        %v1996 = vld [vmem:[%s2 + $0x8] sm:$0xf]
        %v1997 = vld [vmem:[%s2 + $0xc] sm:$0xf]
        %v1998 = vld [vmem:[%s2 + $0x10] sm:$0xf]
        %v1999 = vld [vmem:[%s2 + $0x14] sm:$0xf]
        %v2000 = vld [vmem:[%s2 + $0x18] sm:$0xf]
        %v2001 = vld [vmem:[%s2 + $0x1c] sm:$0xf]
        %v2002 = vld [vmem:[%s2 + $0x20] sm:$0xf]
        %v2003 = vld [vmem:[%s2 + $0x24] sm:$0xf]
        %v2004 = vld [vmem:[%s2 + $0x28] sm:$0xf]
        %v2005 = vld [vmem:[%s2 + $0x2c] sm:$0xf]
        %v2006 = vld [vmem:[%s2 + $0x30] sm:$0xf]
        %v2007 = vld [vmem:[%s2 + $0x34] sm:$0xf]
        %v2008 = vld [vmem:[%s2 + $0x38] sm:$0xf]
        %v2009 = vld [vmem:[%s2 + $0x3c] sm:$0xf]
        %v2010 = vld [vmem:[%s2 + $0x40] sm:$0xf]
        %v2011 = vld [vmem:[%s2 + $0x44] sm:$0xf]
        %v2012 = vld [vmem:[%s2 + $0x48] sm:$0xf]
        %v2013 = vld [vmem:[%s2 + $0x4c] sm:$0xf]
        %v2014 = vld [vmem:[%s2 + $0x50] sm:$0xf]
        %v2015 = vld [vmem:[%s2 + $0x54] sm:$0xf]
        %v2016 = vld [vmem:[%s2 + $0x58] sm:$0xf]
        %v2017 = vld [vmem:[%s2 + $0x5c] sm:$0xf]
        %v2042 = vunpack.c.l.b16 %v1994
        %v2043 = vunpack.c.l.b16 %v1995
        %v2044 = vunpack.c.l.b16 %v1996
        %v2045 = vunpack.c.l.b16 %v1997
        %v2046 = vunpack.c.l.b16 %v1998
        %v2047 = vunpack.c.l.b16 %v1999
        %v2048 = vunpack.c.l.b16 %v2000
        %v2049 = vunpack.c.l.b16 %v2001
        %v2050 = vunpack.c.l.b16 %v2002
        %v2051 = vunpack.c.l.b16 %v2003
        %v2052 = vunpack.c.l.b16 %v2004
        %v2053 = vunpack.c.l.b16 %v2005
        %v2054 = vunpack.c.l.b16 %v2006
        %v2055 = vunpack.c.l.b16 %v2007
        %v2056 = vunpack.c.l.b16 %v2008
        %v2057 = vunpack.c.l.b16 %v2009
        %v2058 = vunpack.c.l.b16 %v2010
        %v2059 = vunpack.c.l.b16 %v2011
        %v2060 = vunpack.c.l.b16 %v2012
        %v2061 = vunpack.c.l.b16 %v2013
        %v2062 = vunpack.c.l.b16 %v2014
        %v2063 = vunpack.c.l.b16 %v2015
        %v2064 = vunpack.c.l.b16 %v2016
        %v2065 = vunpack.c.l.b16 %v2017
        %v2066 = vpack.c.b16 %v2043, %v2042
        %v2067 = vpack.c.b16 %v2045, %v2044
        %v2068 = vpack.c.b16 %v2047, %v2046
        %v2069 = vpack.c.b16 %v2049, %v2048
        %v2070 = vpack.c.b16 %v2051, %v2050
        %v2071 = vpack.c.b16 %v2053, %v2052
        %v2072 = vpack.c.b16 %v2055, %v2054
        %v2073 = vpack.c.b16 %v2057, %v2056
        %v2074 = vpack.c.b16 %v2059, %v2058
        %v2075 = vpack.c.b16 %v2061, %v2060
        %v2076 = vpack.c.b16 %v2063, %v2062
        %v2077 = vpack.c.b16 %v2065, %v2064
        %vm2078 = vcmask 523264
        %v2080 = vsel %vm2078, %v2066, 0
        %v2083 = vsel %vm2078, %v2067, 0
        %v2086 = vsel %vm2078, %v2068, 0
        %v2089 = vsel %vm2078, %v2069, 0
        %v2092 = vsel %vm2078, %v2070, 0
        %v2095 = vsel %vm2078, %v2071, 0
        %v2098 = vsel %vm2078, %v2072, 0
        %v2101 = vsel %vm2078, %v2073, 0
        %v2104 = vsel %vm2078, %v2074, 0
        %v2107 = vsel %vm2078, %v2075, 0
        %v2110 = vsel %vm2078, %v2076, 0
        %v2113 = vsel %vm2078, %v2077, 0
        %2115 = vmatprep.subr.bf16.mxu0 %v1931
        %2116 = vmatpush1.bf16.msra.mxu0 %v1930
        %2117 = vmatprep.subr.bf16.mxu0 %v1947
        %2118 = vmatpush1.bf16.msra.mxu0 %v1946
        %2119 = vmatprep.subr.bf16.mxu0 %v1803
        %2120 = vmatpush1.bf16.msra.mxu0 %v1802
        %2121 = vmatprep.subr.bf16.mxu0 %v1819
        %2122 = vmatpush1.bf16.msra.mxu0 %v1818
        %2123 = vmatprep.subr.bf16.mxu0 0
        %2124 = vmatpush1.bf16.msra.mxu0 0
        %2125 = vmatprep.subr.bf16.mxu0 0
        %2126 = vmatpush1.bf16.msra.mxu0 0
        %2127 = vmatprep.subr.bf16.mxu0 0
        %2128 = vmatpush1.bf16.msra.mxu0 0
        %2129 = vmatprep.subr.bf16.mxu0 0
        %2130 = vmatpush1.bf16.msra.mxu0 0
        %2131 = vmatprep.subr.bf16.mxu0 0
        %2132 = vmatpush1.bf16.msra.mxu0 0
        %2133 = vmatprep.subr.bf16.mxu0 0
        %2134 = vmatpush1.bf16.msra.mxu0 0
        %2135 = vmatprep.subr.bf16.mxu0 0
        %2136 = vmatpush1.bf16.msra.mxu0 0
        %2137 = vmatprep.subr.bf16.mxu0 0
        %2138 = vmatpush1.bf16.msra.mxu0 0
        %2139 = vmatprep.subr.bf16.mxu0 0
        %2140 = vmatpush1.bf16.msra.mxu0 0
        %2141 = vmatprep.subr.bf16.mxu0 0
        %2142 = vmatpush1.bf16.msra.mxu0 0
        %2143 = vmatprep.subr.bf16.mxu0 0
        %2144 = vmatpush1.bf16.msra.mxu0 0
        %2145 = vmatprep.subr.bf16.mxu0 0
        %2146 = vmatpush1.bf16.msra.mxu0 0
        %2147 = vmatprep.mubr.bf16.mxu0 0
        %2148 = vmatmul.mubr.bf16.gmra.mrb[0].mxu0 %v2080
        %v2149 = vpop.f32.mrb[0].mxu0
        %v2150 = vadd.f32 0.0, %v2149
        %v2151 = vpop.f32.mrb[0].mxu0
        %v2152 = vadd.f32 0.0, %v2151
        %v2153 = vpop.f32.mrb[0].mxu0
        %v2154 = vadd.f32 0.0, %v2153
        %v2155 = vpop.f32.mrb[0].mxu0
        %v2156 = vadd.f32 0.0, %v2155
        %2157 = vmatprep.mubr.bf16.mxu0 0
        %2158 = vmatmul.mubr.bf16.gmra.mrb[0].mxu0 %v2083
        %v2159 = vpop.f32.mrb[0].mxu0
        %v2160 = vadd.f32 0.0, %v2159
        %v2161 = vpop.f32.mrb[0].mxu0
        %v2162 = vadd.f32 0.0, %v2161
        %v2163 = vpop.f32.mrb[0].mxu0
        %v2164 = vadd.f32 0.0, %v2163
        %v2165 = vpop.f32.mrb[0].mxu0
        %v2166 = vadd.f32 0.0, %v2165
        %2167 = vmatprep.mubr.bf16.mxu0 0
        %2168 = vmatmul.mubr.bf16.gmra.mrb[0].mxu0 %v2086
        %v2169 = vpop.f32.mrb[0].mxu0
        %v2170 = vadd.f32 0.0, %v2169
        %v2171 = vpop.f32.mrb[0].mxu0
        %v2172 = vadd.f32 0.0, %v2171
        %v2173 = vpop.f32.mrb[0].mxu0
        %v2174 = vadd.f32 0.0, %v2173
        %v2175 = vpop.f32.mrb[0].mxu0
        %v2176 = vadd.f32 0.0, %v2175
        %2177 = vmatprep.mubr.bf16.mxu0 0
        %2178 = vmatmul.mubr.bf16.gmra.mrb[0].mxu0 %v2089
        %v2179 = vpop.f32.mrb[0].mxu0
        %v2180 = vadd.f32 0.0, %v2179
        %v2181 = vpop.f32.mrb[0].mxu0
        %v2182 = vadd.f32 0.0, %v2181
        %v2183 = vpop.f32.mrb[0].mxu0
        %v2184 = vadd.f32 0.0, %v2183
        %v2185 = vpop.f32.mrb[0].mxu0
        %v2186 = vadd.f32 0.0, %v2185
        %2187 = vmatprep.mubr.bf16.mxu0 0
        %2188 = vmatmul.mubr.bf16.gmra.mrb[0].mxu0 %v2092
        %v2189 = vpop.f32.mrb[0].mxu0
        %v2190 = vadd.f32 0.0, %v2189
        %v2191 = vpop.f32.mrb[0].mxu0
        %v2192 = vadd.f32 0.0, %v2191
        %v2193 = vpop.f32.mrb[0].mxu0
        %v2194 = vadd.f32 0.0, %v2193
        %v2195 = vpop.f32.mrb[0].mxu0
        %v2196 = vadd.f32 0.0, %v2195
        %2197 = vmatprep.mubr.bf16.mxu0 0
        %2198 = vmatmul.mubr.bf16.gmra.mrb[0].mxu0 %v2095
        %v2199 = vpop.f32.mrb[0].mxu0
        %v2200 = vadd.f32 0.0, %v2199
        %v2201 = vpop.f32.mrb[0].mxu0
        %v2202 = vadd.f32 0.0, %v2201
        %v2203 = vpop.f32.mrb[0].mxu0
        %v2204 = vadd.f32 0.0, %v2203
        %v2205 = vpop.f32.mrb[0].mxu0
        %v2206 = vadd.f32 0.0, %v2205
        %2207 = vmatprep.mubr.bf16.mxu0 0
        %2208 = vmatmul.mubr.bf16.gmra.mrb[0].mxu0 %v2098
        %v2209 = vpop.f32.mrb[0].mxu0
        %v2210 = vadd.f32 0.0, %v2209
        %v2211 = vpop.f32.mrb[0].mxu0
        %v2212 = vadd.f32 0.0, %v2211
        %v2213 = vpop.f32.mrb[0].mxu0
        %v2214 = vadd.f32 0.0, %v2213
        %v2215 = vpop.f32.mrb[0].mxu0
        %v2216 = vadd.f32 0.0, %v2215
        %2217 = vmatprep.mubr.bf16.mxu0 0
        %2218 = vmatmul.mubr.bf16.gmra.mrb[0].mxu0 %v2101
        %v2219 = vpop.f32.mrb[0].mxu0
        %v2220 = vadd.f32 0.0, %v2219
        %v2221 = vpop.f32.mrb[0].mxu0
        %v2222 = vadd.f32 0.0, %v2221
        %v2223 = vpop.f32.mrb[0].mxu0
        %v2224 = vadd.f32 0.0, %v2223
        %v2225 = vpop.f32.mrb[0].mxu0
        %v2226 = vadd.f32 0.0, %v2225
        %2227 = vmatprep.mubr.bf16.mxu0 0
        %2228 = vmatmul.mubr.bf16.gmra.mrb[0].mxu0 %v2104
        %v2229 = vpop.f32.mrb[0].mxu0
        %v2230 = vadd.f32 0.0, %v2229
        %v2231 = vpop.f32.mrb[0].mxu0
        %v2232 = vadd.f32 0.0, %v2231
        %v2233 = vpop.f32.mrb[0].mxu0
        %v2234 = vadd.f32 0.0, %v2233
        %v2235 = vpop.f32.mrb[0].mxu0
        %v2236 = vadd.f32 0.0, %v2235
        %2237 = vmatprep.mubr.bf16.mxu0 0
        %2238 = vmatmul.mubr.bf16.gmra.mrb[0].mxu0 %v2107
        %v2239 = vpop.f32.mrb[0].mxu0
        %v2240 = vadd.f32 0.0, %v2239
        %v2241 = vpop.f32.mrb[0].mxu0
        %v2242 = vadd.f32 0.0, %v2241
        %v2243 = vpop.f32.mrb[0].mxu0
        %v2244 = vadd.f32 0.0, %v2243
        %v2245 = vpop.f32.mrb[0].mxu0
        %v2246 = vadd.f32 0.0, %v2245
        %2247 = vmatprep.mubr.bf16.mxu0 0
        %2248 = vmatmul.mubr.bf16.gmra.mrb[0].mxu0 %v2110
        %v2249 = vpop.f32.mrb[0].mxu0
        %v2250 = vadd.f32 0.0, %v2249
        %v2251 = vpop.f32.mrb[0].mxu0
        %v2252 = vadd.f32 0.0, %v2251
        %v2253 = vpop.f32.mrb[0].mxu0
        %v2254 = vadd.f32 0.0, %v2253
        %v2255 = vpop.f32.mrb[0].mxu0
        %v2256 = vadd.f32 0.0, %v2255
        %2257 = vmatprep.mubr.bf16.mxu0 0
        %2258 = vmatmul.mubr.bf16.gmra.mrb[0].mxu0 %v2113
        %v2259 = vpop.f32.mrb[0].mxu0
        %v2260 = vadd.f32 0.0, %v2259
        %v2261 = vpop.f32.mrb[0].mxu0
        %v2262 = vadd.f32 0.0, %v2261
        %v2263 = vpop.f32.mrb[0].mxu0
        %v2264 = vadd.f32 0.0, %v2263
        %v2265 = vpop.f32.mrb[0].mxu0
        %v2266 = vadd.f32 0.0, %v2265
        %2267 = vdwg.mxu0
        %2268 = vmatprep.subr.bf16.mxu0 %v1933
        %2269 = vmatpush1.bf16.msra.mxu0 %v1932
        %2270 = vmatprep.subr.bf16.mxu0 %v1949
        %2271 = vmatpush1.bf16.msra.mxu0 %v1948
        %2272 = vmatprep.subr.bf16.mxu0 %v1805
        %2273 = vmatpush1.bf16.msra.mxu0 %v1804
        %2274 = vmatprep.subr.bf16.mxu0 %v1821
        %2275 = vmatpush1.bf16.msra.mxu0 %v1820
        %2276 = vmatprep.subr.bf16.mxu0 0
        %2277 = vmatpush1.bf16.msra.mxu0 0
        %2278 = vmatprep.subr.bf16.mxu0 0
        %2279 = vmatpush1.bf16.msra.mxu0 0
        %2280 = vmatprep.subr.bf16.mxu0 0
        %2281 = vmatpush1.bf16.msra.mxu0 0
        %2282 = vmatprep.subr.bf16.mxu0 0
        %2283 = vmatpush1.bf16.msra.mxu0 0
        %2284 = vmatprep.subr.bf16.mxu0 0
        %2285 = vmatpush1.bf16.msra.mxu0 0
        %2286 = vmatprep.subr.bf16.mxu0 0
        %2287 = vmatpush1.bf16.msra.mxu0 0
        %2288 = vmatprep.subr.bf16.mxu0 0
        %2289 = vmatpush1.bf16.msra.mxu0 0
        %2290 = vmatprep.subr.bf16.mxu0 0
        %2291 = vmatpush1.bf16.msra.mxu0 0
        %2292 = vmatprep.subr.bf16.mxu0 0
        %2293 = vmatpush1.bf16.msra.mxu0 0
        %2294 = vmatprep.subr.bf16.mxu0 0
        %2295 = vmatpush1.bf16.msra.mxu0 0
        %2296 = vmatprep.subr.bf16.mxu0 0
        %2297 = vmatpush1.bf16.msra.mxu0 0
        %2298 = vmatprep.subr.bf16.mxu0 0
        %2299 = vmatpush1.bf16.msra.mxu0 0
        %2300 = vmatprep.mubr.bf16.mxu0 0
        %2301 = vmatmul.mubr.bf16.gmra.mrb[0].mxu0 %v2080
        %v2302 = vpop.f32.mrb[0].mxu0
        %v2303 = vadd.f32 0.0, %v2302
        %v2304 = vpop.f32.mrb[0].mxu0
        %v2305 = vadd.f32 0.0, %v2304
        %v2306 = vpop.f32.mrb[0].mxu0
        %v2307 = vadd.f32 0.0, %v2306
        %v2308 = vpop.f32.mrb[0].mxu0
        %v2309 = vadd.f32 0.0, %v2308
        %2310 = vmatprep.mubr.bf16.mxu0 0
        %2311 = vmatmul.mubr.bf16.gmra.mrb[0].mxu0 %v2083
        %v2312 = vpop.f32.mrb[0].mxu0
        %v2313 = vadd.f32 0.0, %v2312
        %v2314 = vpop.f32.mrb[0].mxu0
        %v2315 = vadd.f32 0.0, %v2314
        %v2316 = vpop.f32.mrb[0].mxu0
        %v2317 = vadd.f32 0.0, %v2316
        %v2318 = vpop.f32.mrb[0].mxu0
        %v2319 = vadd.f32 0.0, %v2318
        %2320 = vmatprep.mubr.bf16.mxu0 0
        %2321 = vmatmul.mubr.bf16.gmra.mrb[0].mxu0 %v2086
        %v2322 = vpop.f32.mrb[0].mxu0
        %v2323 = vadd.f32 0.0, %v2322
        %v2324 = vpop.f32.mrb[0].mxu0
        %v2325 = vadd.f32 0.0, %v2324
        %v2326 = vpop.f32.mrb[0].mxu0
        %v2327 = vadd.f32 0.0, %v2326
        %v2328 = vpop.f32.mrb[0].mxu0
        %v2329 = vadd.f32 0.0, %v2328
        %2330 = vmatprep.mubr.bf16.mxu0 0
        %2331 = vmatmul.mubr.bf16.gmra.mrb[0].mxu0 %v2089
        %v2332 = vpop.f32.mrb[0].mxu0
        %v2333 = vadd.f32 0.0, %v2332
        %v2334 = vpop.f32.mrb[0].mxu0
        %v2335 = vadd.f32 0.0, %v2334
        %v2336 = vpop.f32.mrb[0].mxu0
        %v2337 = vadd.f32 0.0, %v2336
        %v2338 = vpop.f32.mrb[0].mxu0
        %v2339 = vadd.f32 0.0, %v2338
        %2340 = vmatprep.mubr.bf16.mxu0 0
        %2341 = vmatmul.mubr.bf16.gmra.mrb[0].mxu0 %v2092
        %v2342 = vpop.f32.mrb[0].mxu0
        %v2343 = vadd.f32 0.0, %v2342
        %v2344 = vpop.f32.mrb[0].mxu0
        %v2345 = vadd.f32 0.0, %v2344
        %v2346 = vpop.f32.mrb[0].mxu0
        %v2347 = vadd.f32 0.0, %v2346
        %v2348 = vpop.f32.mrb[0].mxu0
        %v2349 = vadd.f32 0.0, %v2348
        %2350 = vmatprep.mubr.bf16.mxu0 0
        %2351 = vmatmul.mubr.bf16.gmra.mrb[0].mxu0 %v2095
        %v2352 = vpop.f32.mrb[0].mxu0
        %v2353 = vadd.f32 0.0, %v2352
        %v2354 = vpop.f32.mrb[0].mxu0
        %v2355 = vadd.f32 0.0, %v2354
        %v2356 = vpop.f32.mrb[0].mxu0
        %v2357 = vadd.f32 0.0, %v2356
        %v2358 = vpop.f32.mrb[0].mxu0
        %v2359 = vadd.f32 0.0, %v2358
        %2360 = vmatprep.mubr.bf16.mxu0 0
        %2361 = vmatmul.mubr.bf16.gmra.mrb[0].mxu0 %v2098
        %v2362 = vpop.f32.mrb[0].mxu0
        %v2363 = vadd.f32 0.0, %v2362
        %v2364 = vpop.f32.mrb[0].mxu0
        %v2365 = vadd.f32 0.0, %v2364
        %v2366 = vpop.f32.mrb[0].mxu0
        %v2367 = vadd.f32 0.0, %v2366
        %v2368 = vpop.f32.mrb[0].mxu0
        %v2369 = vadd.f32 0.0, %v2368
        %2370 = vmatprep.mubr.bf16.mxu0 0
        %2371 = vmatmul.mubr.bf16.gmra.mrb[0].mxu0 %v2101
        %v2372 = vpop.f32.mrb[0].mxu0
        %v2373 = vadd.f32 0.0, %v2372
        %v2374 = vpop.f32.mrb[0].mxu0
        %v2375 = vadd.f32 0.0, %v2374
        %v2376 = vpop.f32.mrb[0].mxu0
        %v2377 = vadd.f32 0.0, %v2376
        %v2378 = vpop.f32.mrb[0].mxu0
        %v2379 = vadd.f32 0.0, %v2378
        %2380 = vmatprep.mubr.bf16.mxu0 0
        %2381 = vmatmul.mubr.bf16.gmra.mrb[0].mxu0 %v2104
        %v2382 = vpop.f32.mrb[0].mxu0
        %v2383 = vadd.f32 0.0, %v2382
        %v2384 = vpop.f32.mrb[0].mxu0
        %v2385 = vadd.f32 0.0, %v2384
        %v2386 = vpop.f32.mrb[0].mxu0
        %v2387 = vadd.f32 0.0, %v2386
        %v2388 = vpop.f32.mrb[0].mxu0
        %v2389 = vadd.f32 0.0, %v2388
        %2390 = vmatprep.mubr.bf16.mxu0 0
        %2391 = vmatmul.mubr.bf16.gmra.mrb[0].mxu0 %v2107
        %v2392 = vpop.f32.mrb[0].mxu0
        %v2393 = vadd.f32 0.0, %v2392
        %v2394 = vpop.f32.mrb[0].mxu0
        %v2395 = vadd.f32 0.0, %v2394
        %v2396 = vpop.f32.mrb[0].mxu0
        %v2397 = vadd.f32 0.0, %v2396
        %v2398 = vpop.f32.mrb[0].mxu0
        %v2399 = vadd.f32 0.0, %v2398
        %2400 = vmatprep.mubr.bf16.mxu0 0
        %2401 = vmatmul.mubr.bf16.gmra.mrb[0].mxu0 %v2110
        %v2402 = vpop.f32.mrb[0].mxu0
        %v2403 = vadd.f32 0.0, %v2402
        %v2404 = vpop.f32.mrb[0].mxu0
        %v2405 = vadd.f32 0.0, %v2404
        %v2406 = vpop.f32.mrb[0].mxu0
        %v2407 = vadd.f32 0.0, %v2406
        %v2408 = vpop.f32.mrb[0].mxu0
        %v2409 = vadd.f32 0.0, %v2408
        %2410 = vmatprep.mubr.bf16.mxu0 0
        %2411 = vmatmul.mubr.bf16.gmra.mrb[0].mxu0 %v2113
        %v2412 = vpop.f32.mrb[0].mxu0
        %v2413 = vadd.f32 0.0, %v2412
        %v2414 = vpop.f32.mrb[0].mxu0
        %v2415 = vadd.f32 0.0, %v2414
        %v2416 = vpop.f32.mrb[0].mxu0
        %v2417 = vadd.f32 0.0, %v2416
        %v2418 = vpop.f32.mrb[0].mxu0
        %v2419 = vadd.f32 0.0, %v2418
        %2420 = vdwg.mxu0
        %2421 = vmatprep.subr.bf16.mxu0 %v1935
        %2422 = vmatpush1.bf16.msra.mxu0 %v1934
        %2423 = vmatprep.subr.bf16.mxu0 %v1951
        %2424 = vmatpush1.bf16.msra.mxu0 %v1950
        %2425 = vmatprep.subr.bf16.mxu0 %v1807
        %2426 = vmatpush1.bf16.msra.mxu0 %v1806
        %2427 = vmatprep.subr.bf16.mxu0 %v1823
        %2428 = vmatpush1.bf16.msra.mxu0 %v1822
        %2429 = vmatprep.subr.bf16.mxu0 0
        %2430 = vmatpush1.bf16.msra.mxu0 0
        %2431 = vmatprep.subr.bf16.mxu0 0
        %2432 = vmatpush1.bf16.msra.mxu0 0
        %2433 = vmatprep.subr.bf16.mxu0 0
        %2434 = vmatpush1.bf16.msra.mxu0 0
        %2435 = vmatprep.subr.bf16.mxu0 0
        %2436 = vmatpush1.bf16.msra.mxu0 0
        %2437 = vmatprep.subr.bf16.mxu0 0
        %2438 = vmatpush1.bf16.msra.mxu0 0
        %2439 = vmatprep.subr.bf16.mxu0 0
        %2440 = vmatpush1.bf16.msra.mxu0 0
        %2441 = vmatprep.subr.bf16.mxu0 0
        %2442 = vmatpush1.bf16.msra.mxu0 0
        %2443 = vmatprep.subr.bf16.mxu0 0
        %2444 = vmatpush1.bf16.msra.mxu0 0
        %2445 = vmatprep.subr.bf16.mxu0 0
        %2446 = vmatpush1.bf16.msra.mxu0 0
        %2447 = vmatprep.subr.bf16.mxu0 0
        %2448 = vmatpush1.bf16.msra.mxu0 0
        %2449 = vmatprep.subr.bf16.mxu0 0
        %2450 = vmatpush1.bf16.msra.mxu0 0
        %2451 = vmatprep.subr.bf16.mxu0 0
        %2452 = vmatpush1.bf16.msra.mxu0 0
        %2453 = vmatprep.mubr.bf16.mxu0 0
        %2454 = vmatmul.mubr.bf16.gmra.mrb[0].mxu0 %v2080
        %v2455 = vpop.f32.mrb[0].mxu0
        %v2456 = vadd.f32 0.0, %v2455
        %v2457 = vpop.f32.mrb[0].mxu0
        %v2458 = vadd.f32 0.0, %v2457
        %v2459 = vpop.f32.mrb[0].mxu0
        %v2460 = vadd.f32 0.0, %v2459
        %v2461 = vpop.f32.mrb[0].mxu0
        %v2462 = vadd.f32 0.0, %v2461
        %2463 = vmatprep.mubr.bf16.mxu0 0
        %2464 = vmatmul.mubr.bf16.gmra.mrb[0].mxu0 %v2083
        %v2465 = vpop.f32.mrb[0].mxu0
        %v2466 = vadd.f32 0.0, %v2465
        %v2467 = vpop.f32.mrb[0].mxu0
        %v2468 = vadd.f32 0.0, %v2467
        %v2469 = vpop.f32.mrb[0].mxu0
        %v2470 = vadd.f32 0.0, %v2469
        %v2471 = vpop.f32.mrb[0].mxu0
        %v2472 = vadd.f32 0.0, %v2471
        %2473 = vmatprep.mubr.bf16.mxu0 0
        %2474 = vmatmul.mubr.bf16.gmra.mrb[0].mxu0 %v2086
        %v2475 = vpop.f32.mrb[0].mxu0
        %v2476 = vadd.f32 0.0, %v2475
        %v2477 = vpop.f32.mrb[0].mxu0
        %v2478 = vadd.f32 0.0, %v2477
        %v2479 = vpop.f32.mrb[0].mxu0
        %v2480 = vadd.f32 0.0, %v2479
        %v2481 = vpop.f32.mrb[0].mxu0
        %v2482 = vadd.f32 0.0, %v2481
        %2483 = vmatprep.mubr.bf16.mxu0 0
        %2484 = vmatmul.mubr.bf16.gmra.mrb[0].mxu0 %v2089
        %v2485 = vpop.f32.mrb[0].mxu0
        %v2486 = vadd.f32 0.0, %v2485
        %v2487 = vpop.f32.mrb[0].mxu0
        %v2488 = vadd.f32 0.0, %v2487
        %v2489 = vpop.f32.mrb[0].mxu0
        %v2490 = vadd.f32 0.0, %v2489
        %v2491 = vpop.f32.mrb[0].mxu0
        %v2492 = vadd.f32 0.0, %v2491
        %2493 = vmatprep.mubr.bf16.mxu0 0
        %2494 = vmatmul.mubr.bf16.gmra.mrb[0].mxu0 %v2092
        %v2495 = vpop.f32.mrb[0].mxu0
        %v2496 = vadd.f32 0.0, %v2495
        %v2497 = vpop.f32.mrb[0].mxu0
        %v2498 = vadd.f32 0.0, %v2497
        %v2499 = vpop.f32.mrb[0].mxu0
        %v2500 = vadd.f32 0.0, %v2499
        %v2501 = vpop.f32.mrb[0].mxu0
        %v2502 = vadd.f32 0.0, %v2501
        %2503 = vmatprep.mubr.bf16.mxu0 0
        %2504 = vmatmul.mubr.bf16.gmra.mrb[0].mxu0 %v2095
        %v2505 = vpop.f32.mrb[0].mxu0
        %v2506 = vadd.f32 0.0, %v2505
        %v2507 = vpop.f32.mrb[0].mxu0
        %v2508 = vadd.f32 0.0, %v2507
        %v2509 = vpop.f32.mrb[0].mxu0
        %v2510 = vadd.f32 0.0, %v2509
        %v2511 = vpop.f32.mrb[0].mxu0
        %v2512 = vadd.f32 0.0, %v2511
        %2513 = vmatprep.mubr.bf16.mxu0 0
        %2514 = vmatmul.mubr.bf16.gmra.mrb[0].mxu0 %v2098
        %v2515 = vpop.f32.mrb[0].mxu0
        %v2516 = vadd.f32 0.0, %v2515
        %v2517 = vpop.f32.mrb[0].mxu0
        %v2518 = vadd.f32 0.0, %v2517
        %v2519 = vpop.f32.mrb[0].mxu0
        %v2520 = vadd.f32 0.0, %v2519
        %v2521 = vpop.f32.mrb[0].mxu0
        %v2522 = vadd.f32 0.0, %v2521
        %2523 = vmatprep.mubr.bf16.mxu0 0
        %2524 = vmatmul.mubr.bf16.gmra.mrb[0].mxu0 %v2101
        %v2525 = vpop.f32.mrb[0].mxu0
        %v2526 = vadd.f32 0.0, %v2525
        %v2527 = vpop.f32.mrb[0].mxu0
        %v2528 = vadd.f32 0.0, %v2527
        %v2529 = vpop.f32.mrb[0].mxu0
        %v2530 = vadd.f32 0.0, %v2529
        %v2531 = vpop.f32.mrb[0].mxu0
        %v2532 = vadd.f32 0.0, %v2531
        %2533 = vmatprep.mubr.bf16.mxu0 0
        %2534 = vmatmul.mubr.bf16.gmra.mrb[0].mxu0 %v2104
        %v2535 = vpop.f32.mrb[0].mxu0
        %v2536 = vadd.f32 0.0, %v2535
        %v2537 = vpop.f32.mrb[0].mxu0
        %v2538 = vadd.f32 0.0, %v2537
        %v2539 = vpop.f32.mrb[0].mxu0
        %v2540 = vadd.f32 0.0, %v2539
        %v2541 = vpop.f32.mrb[0].mxu0
        %v2542 = vadd.f32 0.0, %v2541
        %2543 = vmatprep.mubr.bf16.mxu0 0
        %2544 = vmatmul.mubr.bf16.gmra.mrb[0].mxu0 %v2107
        %v2545 = vpop.f32.mrb[0].mxu0
        %v2546 = vadd.f32 0.0, %v2545
        %v2547 = vpop.f32.mrb[0].mxu0
        %v2548 = vadd.f32 0.0, %v2547
        %v2549 = vpop.f32.mrb[0].mxu0
        %v2550 = vadd.f32 0.0, %v2549
        %v2551 = vpop.f32.mrb[0].mxu0
        %v2552 = vadd.f32 0.0, %v2551
        %2553 = vmatprep.mubr.bf16.mxu0 0
        %2554 = vmatmul.mubr.bf16.gmra.mrb[0].mxu0 %v2110
        %v2555 = vpop.f32.mrb[0].mxu0
        %v2556 = vadd.f32 0.0, %v2555
        %v2557 = vpop.f32.mrb[0].mxu0
        %v2558 = vadd.f32 0.0, %v2557
        %v2559 = vpop.f32.mrb[0].mxu0
        %v2560 = vadd.f32 0.0, %v2559
        %v2561 = vpop.f32.mrb[0].mxu0
        %v2562 = vadd.f32 0.0, %v2561
        %2563 = vmatprep.mubr.bf16.mxu0 0
        %2564 = vmatmul.mubr.bf16.gmra.mrb[0].mxu0 %v2113
        %v2565 = vpop.f32.mrb[0].mxu0
        %v2566 = vadd.f32 0.0, %v2565
        %v2567 = vpop.f32.mrb[0].mxu0
        %v2568 = vadd.f32 0.0, %v2567
        %v2569 = vpop.f32.mrb[0].mxu0
        %v2570 = vadd.f32 0.0, %v2569
        %v2571 = vpop.f32.mrb[0].mxu0
        %v2572 = vadd.f32 0.0, %v2571
        %2573 = vdwg.mxu0
        %2574 = vmatprep.subr.bf16.mxu0 %v1937
        %2575 = vmatpush1.bf16.msra.mxu0 %v1936
        %2576 = vmatprep.subr.bf16.mxu0 %v1953
        %2577 = vmatpush1.bf16.msra.mxu0 %v1952
        %2578 = vmatprep.subr.bf16.mxu0 %v1809
        %2579 = vmatpush1.bf16.msra.mxu0 %v1808
        %2580 = vmatprep.subr.bf16.mxu0 %v1825
        %2581 = vmatpush1.bf16.msra.mxu0 %v1824
        %2582 = vmatprep.subr.bf16.mxu0 0
        %2583 = vmatpush1.bf16.msra.mxu0 0
        %2584 = vmatprep.subr.bf16.mxu0 0
        %2585 = vmatpush1.bf16.msra.mxu0 0
        %2586 = vmatprep.subr.bf16.mxu0 0
        %2587 = vmatpush1.bf16.msra.mxu0 0
        %2588 = vmatprep.subr.bf16.mxu0 0
        %2589 = vmatpush1.bf16.msra.mxu0 0
        %2590 = vmatprep.subr.bf16.mxu0 0
        %2591 = vmatpush1.bf16.msra.mxu0 0
        %2592 = vmatprep.subr.bf16.mxu0 0
        %2593 = vmatpush1.bf16.msra.mxu0 0
        %2594 = vmatprep.subr.bf16.mxu0 0
        %2595 = vmatpush1.bf16.msra.mxu0 0
        %2596 = vmatprep.subr.bf16.mxu0 0
        %2597 = vmatpush1.bf16.msra.mxu0 0
        %2598 = vmatprep.subr.bf16.mxu0 0
        %2599 = vmatpush1.bf16.msra.mxu0 0
        %2600 = vmatprep.subr.bf16.mxu0 0
        %2601 = vmatpush1.bf16.msra.mxu0 0
        %2602 = vmatprep.subr.bf16.mxu0 0
        %2603 = vmatpush1.bf16.msra.mxu0 0
        %2604 = vmatprep.subr.bf16.mxu0 0
        %2605 = vmatpush1.bf16.msra.mxu0 0
        %2606 = vmatprep.mubr.bf16.mxu0 0
        %2607 = vmatmul.mubr.bf16.gmra.mrb[0].mxu0 %v2080
        %v2608 = vpop.f32.mrb[0].mxu0
        %v2609 = vadd.f32 0.0, %v2608
        %v2610 = vpop.f32.mrb[0].mxu0
        %v2611 = vadd.f32 0.0, %v2610
        %v2612 = vpop.f32.mrb[0].mxu0
        %v2613 = vadd.f32 0.0, %v2612
        %v2614 = vpop.f32.mrb[0].mxu0
        %v2615 = vadd.f32 0.0, %v2614
        %2616 = vmatprep.mubr.bf16.mxu0 0
        %2617 = vmatmul.mubr.bf16.gmra.mrb[0].mxu0 %v2083
        %v2618 = vpop.f32.mrb[0].mxu0
        %v2619 = vadd.f32 0.0, %v2618
        %v2620 = vpop.f32.mrb[0].mxu0
        %v2621 = vadd.f32 0.0, %v2620
        %v2622 = vpop.f32.mrb[0].mxu0
        %v2623 = vadd.f32 0.0, %v2622
        %v2624 = vpop.f32.mrb[0].mxu0
        %v2625 = vadd.f32 0.0, %v2624
        %2626 = vmatprep.mubr.bf16.mxu0 0
        %2627 = vmatmul.mubr.bf16.gmra.mrb[0].mxu0 %v2086
        %v2628 = vpop.f32.mrb[0].mxu0
        %v2629 = vadd.f32 0.0, %v2628
        %v2630 = vpop.f32.mrb[0].mxu0
        %v2631 = vadd.f32 0.0, %v2630
        %v2632 = vpop.f32.mrb[0].mxu0
        %v2633 = vadd.f32 0.0, %v2632
        %v2634 = vpop.f32.mrb[0].mxu0
        %v2635 = vadd.f32 0.0, %v2634
        %2636 = vmatprep.mubr.bf16.mxu0 0
        %2637 = vmatmul.mubr.bf16.gmra.mrb[0].mxu0 %v2089
        %v2638 = vpop.f32.mrb[0].mxu0
        %v2639 = vadd.f32 0.0, %v2638
        %v2640 = vpop.f32.mrb[0].mxu0
        %v2641 = vadd.f32 0.0, %v2640
        %v2642 = vpop.f32.mrb[0].mxu0
        %v2643 = vadd.f32 0.0, %v2642
        %v2644 = vpop.f32.mrb[0].mxu0
        %v2645 = vadd.f32 0.0, %v2644
        %2646 = vmatprep.mubr.bf16.mxu0 0
        %2647 = vmatmul.mubr.bf16.gmra.mrb[0].mxu0 %v2092
        %v2648 = vpop.f32.mrb[0].mxu0
        %v2649 = vadd.f32 0.0, %v2648
        %v2650 = vpop.f32.mrb[0].mxu0
        %v2651 = vadd.f32 0.0, %v2650
        %v2652 = vpop.f32.mrb[0].mxu0
        %v2653 = vadd.f32 0.0, %v2652
        %v2654 = vpop.f32.mrb[0].mxu0
        %v2655 = vadd.f32 0.0, %v2654
        %2656 = vmatprep.mubr.bf16.mxu0 0
        %2657 = vmatmul.mubr.bf16.gmra.mrb[0].mxu0 %v2095
        %v2658 = vpop.f32.mrb[0].mxu0
        %v2659 = vadd.f32 0.0, %v2658
        %v2660 = vpop.f32.mrb[0].mxu0
        %v2661 = vadd.f32 0.0, %v2660
        %v2662 = vpop.f32.mrb[0].mxu0
        %v2663 = vadd.f32 0.0, %v2662
        %v2664 = vpop.f32.mrb[0].mxu0
        %v2665 = vadd.f32 0.0, %v2664
        %2666 = vmatprep.mubr.bf16.mxu0 0
        %2667 = vmatmul.mubr.bf16.gmra.mrb[0].mxu0 %v2098
        %v2668 = vpop.f32.mrb[0].mxu0
        %v2669 = vadd.f32 0.0, %v2668
        %v2670 = vpop.f32.mrb[0].mxu0
        %v2671 = vadd.f32 0.0, %v2670
        %v2672 = vpop.f32.mrb[0].mxu0
        %v2673 = vadd.f32 0.0, %v2672
        %v2674 = vpop.f32.mrb[0].mxu0
        %v2675 = vadd.f32 0.0, %v2674
        %2676 = vmatprep.mubr.bf16.mxu0 0
        %2677 = vmatmul.mubr.bf16.gmra.mrb[0].mxu0 %v2101
        %v2678 = vpop.f32.mrb[0].mxu0
        %v2679 = vadd.f32 0.0, %v2678
        %v2680 = vpop.f32.mrb[0].mxu0
        %v2681 = vadd.f32 0.0, %v2680
        %v2682 = vpop.f32.mrb[0].mxu0
        %v2683 = vadd.f32 0.0, %v2682
        %v2684 = vpop.f32.mrb[0].mxu0
        %v2685 = vadd.f32 0.0, %v2684
        %2686 = vmatprep.mubr.bf16.mxu0 0
        %2687 = vmatmul.mubr.bf16.gmra.mrb[0].mxu0 %v2104
        %v2688 = vpop.f32.mrb[0].mxu0
        %v2689 = vadd.f32 0.0, %v2688
        %v2690 = vpop.f32.mrb[0].mxu0
        %v2691 = vadd.f32 0.0, %v2690
        %v2692 = vpop.f32.mrb[0].mxu0
        %v2693 = vadd.f32 0.0, %v2692
        %v2694 = vpop.f32.mrb[0].mxu0
        %v2695 = vadd.f32 0.0, %v2694
        %2696 = vmatprep.mubr.bf16.mxu0 0
        %2697 = vmatmul.mubr.bf16.gmra.mrb[0].mxu0 %v2107
        %v2698 = vpop.f32.mrb[0].mxu0
        %v2699 = vadd.f32 0.0, %v2698
        %v2700 = vpop.f32.mrb[0].mxu0
        %v2701 = vadd.f32 0.0, %v2700
        %v2702 = vpop.f32.mrb[0].mxu0
        %v2703 = vadd.f32 0.0, %v2702
        %v2704 = vpop.f32.mrb[0].mxu0
        %v2705 = vadd.f32 0.0, %v2704
        %2706 = vmatprep.mubr.bf16.mxu0 0
        %2707 = vmatmul.mubr.bf16.gmra.mrb[0].mxu0 %v2110
        %v2708 = vpop.f32.mrb[0].mxu0
        %v2709 = vadd.f32 0.0, %v2708
        %v2710 = vpop.f32.mrb[0].mxu0
        %v2711 = vadd.f32 0.0, %v2710
        %v2712 = vpop.f32.mrb[0].mxu0
        %v2713 = vadd.f32 0.0, %v2712
        %v2714 = vpop.f32.mrb[0].mxu0
        %v2715 = vadd.f32 0.0, %v2714
        %2716 = vmatprep.mubr.bf16.mxu0 0
        %2717 = vmatmul.mubr.bf16.gmra.mrb[0].mxu0 %v2113
        %v2718 = vpop.f32.mrb[0].mxu0
        %v2719 = vadd.f32 0.0, %v2718
        %v2720 = vpop.f32.mrb[0].mxu0
        %v2721 = vadd.f32 0.0, %v2720
        %v2722 = vpop.f32.mrb[0].mxu0
        %v2723 = vadd.f32 0.0, %v2722
        %v2724 = vpop.f32.mrb[0].mxu0
        %v2725 = vadd.f32 0.0, %v2724
        %2726 = vdwg.mxu0
        %2727 = vmatprep.subr.bf16.mxu0 %v1939
        %2728 = vmatpush1.bf16.msra.mxu0 %v1938
        %2729 = vmatprep.subr.bf16.mxu0 %v1955
        %2730 = vmatpush1.bf16.msra.mxu0 %v1954
        %2731 = vmatprep.subr.bf16.mxu0 %v1811
        %2732 = vmatpush1.bf16.msra.mxu0 %v1810
        %2733 = vmatprep.subr.bf16.mxu0 %v1827
        %2734 = vmatpush1.bf16.msra.mxu0 %v1826
        %2735 = vmatprep.subr.bf16.mxu0 0
        %2736 = vmatpush1.bf16.msra.mxu0 0
        %2737 = vmatprep.subr.bf16.mxu0 0
        %2738 = vmatpush1.bf16.msra.mxu0 0
        %2739 = vmatprep.subr.bf16.mxu0 0
        %2740 = vmatpush1.bf16.msra.mxu0 0
        %2741 = vmatprep.subr.bf16.mxu0 0
        %2742 = vmatpush1.bf16.msra.mxu0 0
        %2743 = vmatprep.subr.bf16.mxu0 0
        %2744 = vmatpush1.bf16.msra.mxu0 0
        %2745 = vmatprep.subr.bf16.mxu0 0
        %2746 = vmatpush1.bf16.msra.mxu0 0
        %2747 = vmatprep.subr.bf16.mxu0 0
        %2748 = vmatpush1.bf16.msra.mxu0 0
        %2749 = vmatprep.subr.bf16.mxu0 0
        %2750 = vmatpush1.bf16.msra.mxu0 0
        %2751 = vmatprep.subr.bf16.mxu0 0
        %2752 = vmatpush1.bf16.msra.mxu0 0
        %2753 = vmatprep.subr.bf16.mxu0 0
        %2754 = vmatpush1.bf16.msra.mxu0 0
        %2755 = vmatprep.subr.bf16.mxu0 0
        %2756 = vmatpush1.bf16.msra.mxu0 0
        %2757 = vmatprep.subr.bf16.mxu0 0
        %2758 = vmatpush1.bf16.msra.mxu0 0
        %2759 = vmatprep.mubr.bf16.mxu0 0
        %2760 = vmatmul.mubr.bf16.gmra.mrb[0].mxu0 %v2080
        %v2761 = vpop.f32.mrb[0].mxu0
        %v2762 = vadd.f32 0.0, %v2761
        %v2763 = vpop.f32.mrb[0].mxu0
        %v2764 = vadd.f32 0.0, %v2763
        %v2765 = vpop.f32.mrb[0].mxu0
        %v2766 = vadd.f32 0.0, %v2765
        %v2767 = vpop.f32.mrb[0].mxu0
        %v2768 = vadd.f32 0.0, %v2767
        %2769 = vmatprep.mubr.bf16.mxu0 0
        %2770 = vmatmul.mubr.bf16.gmra.mrb[0].mxu0 %v2083
        %v2771 = vpop.f32.mrb[0].mxu0
        %v2772 = vadd.f32 0.0, %v2771
        %v2773 = vpop.f32.mrb[0].mxu0
        %v2774 = vadd.f32 0.0, %v2773
        %v2775 = vpop.f32.mrb[0].mxu0
        %v2776 = vadd.f32 0.0, %v2775
        %v2777 = vpop.f32.mrb[0].mxu0
        %v2778 = vadd.f32 0.0, %v2777
        %2779 = vmatprep.mubr.bf16.mxu0 0
        %2780 = vmatmul.mubr.bf16.gmra.mrb[0].mxu0 %v2086
        %v2781 = vpop.f32.mrb[0].mxu0
        %v2782 = vadd.f32 0.0, %v2781
        %v2783 = vpop.f32.mrb[0].mxu0
        %v2784 = vadd.f32 0.0, %v2783
        %v2785 = vpop.f32.mrb[0].mxu0
        %v2786 = vadd.f32 0.0, %v2785
        %v2787 = vpop.f32.mrb[0].mxu0
        %v2788 = vadd.f32 0.0, %v2787
        %2789 = vmatprep.mubr.bf16.mxu0 0
        %2790 = vmatmul.mubr.bf16.gmra.mrb[0].mxu0 %v2089
        %v2791 = vpop.f32.mrb[0].mxu0
        %v2792 = vadd.f32 0.0, %v2791
        %v2793 = vpop.f32.mrb[0].mxu0
        %v2794 = vadd.f32 0.0, %v2793
        %v2795 = vpop.f32.mrb[0].mxu0
        %v2796 = vadd.f32 0.0, %v2795
        %v2797 = vpop.f32.mrb[0].mxu0
        %v2798 = vadd.f32 0.0, %v2797
        %2799 = vmatprep.mubr.bf16.mxu0 0
        %2800 = vmatmul.mubr.bf16.gmra.mrb[0].mxu0 %v2092
        %v2801 = vpop.f32.mrb[0].mxu0
        %v2802 = vadd.f32 0.0, %v2801
        %v2803 = vpop.f32.mrb[0].mxu0
        %v2804 = vadd.f32 0.0, %v2803
        %v2805 = vpop.f32.mrb[0].mxu0
        %v2806 = vadd.f32 0.0, %v2805
        %v2807 = vpop.f32.mrb[0].mxu0
        %v2808 = vadd.f32 0.0, %v2807
        %2809 = vmatprep.mubr.bf16.mxu0 0
        %2810 = vmatmul.mubr.bf16.gmra.mrb[0].mxu0 %v2095
        %v2811 = vpop.f32.mrb[0].mxu0
        %v2812 = vadd.f32 0.0, %v2811
        %v2813 = vpop.f32.mrb[0].mxu0
        %v2814 = vadd.f32 0.0, %v2813
        %v2815 = vpop.f32.mrb[0].mxu0
        %v2816 = vadd.f32 0.0, %v2815
        %v2817 = vpop.f32.mrb[0].mxu0
        %v2818 = vadd.f32 0.0, %v2817
        %2819 = vmatprep.mubr.bf16.mxu0 0
        %2820 = vmatmul.mubr.bf16.gmra.mrb[0].mxu0 %v2098
        %v2821 = vpop.f32.mrb[0].mxu0
        %v2822 = vadd.f32 0.0, %v2821
        %v2823 = vpop.f32.mrb[0].mxu0
        %v2824 = vadd.f32 0.0, %v2823
        %v2825 = vpop.f32.mrb[0].mxu0
        %v2826 = vadd.f32 0.0, %v2825
        %v2827 = vpop.f32.mrb[0].mxu0
        %v2828 = vadd.f32 0.0, %v2827
        %2829 = vmatprep.mubr.bf16.mxu0 0
        %2830 = vmatmul.mubr.bf16.gmra.mrb[0].mxu0 %v2101
        %v2831 = vpop.f32.mrb[0].mxu0
        %v2832 = vadd.f32 0.0, %v2831
        %v2833 = vpop.f32.mrb[0].mxu0
        %v2834 = vadd.f32 0.0, %v2833
        %v2835 = vpop.f32.mrb[0].mxu0
        %v2836 = vadd.f32 0.0, %v2835
        %v2837 = vpop.f32.mrb[0].mxu0
        %v2838 = vadd.f32 0.0, %v2837
        %2839 = vmatprep.mubr.bf16.mxu0 0
        %2840 = vmatmul.mubr.bf16.gmra.mrb[0].mxu0 %v2104
        %v2841 = vpop.f32.mrb[0].mxu0
        %v2842 = vadd.f32 0.0, %v2841
        %v2843 = vpop.f32.mrb[0].mxu0
        %v2844 = vadd.f32 0.0, %v2843
        %v2845 = vpop.f32.mrb[0].mxu0
        %v2846 = vadd.f32 0.0, %v2845
        %v2847 = vpop.f32.mrb[0].mxu0
        %v2848 = vadd.f32 0.0, %v2847
        %2849 = vmatprep.mubr.bf16.mxu0 0
        %2850 = vmatmul.mubr.bf16.gmra.mrb[0].mxu0 %v2107
        %v2851 = vpop.f32.mrb[0].mxu0
        %v2852 = vadd.f32 0.0, %v2851
        %v2853 = vpop.f32.mrb[0].mxu0
        %v2854 = vadd.f32 0.0, %v2853
        %v2855 = vpop.f32.mrb[0].mxu0
        %v2856 = vadd.f32 0.0, %v2855
        %v2857 = vpop.f32.mrb[0].mxu0
        %v2858 = vadd.f32 0.0, %v2857
        %2859 = vmatprep.mubr.bf16.mxu0 0
        %2860 = vmatmul.mubr.bf16.gmra.mrb[0].mxu0 %v2110
        %v2861 = vpop.f32.mrb[0].mxu0
        %v2862 = vadd.f32 0.0, %v2861
        %v2863 = vpop.f32.mrb[0].mxu0
        %v2864 = vadd.f32 0.0, %v2863
        %v2865 = vpop.f32.mrb[0].mxu0
        %v2866 = vadd.f32 0.0, %v2865
        %v2867 = vpop.f32.mrb[0].mxu0
        %v2868 = vadd.f32 0.0, %v2867
        %2869 = vmatprep.mubr.bf16.mxu0 0
        %2870 = vmatmul.mubr.bf16.gmra.mrb[0].mxu0 %v2113
        %v2871 = vpop.f32.mrb[0].mxu0
        %v2872 = vadd.f32 0.0, %v2871
        %v2873 = vpop.f32.mrb[0].mxu0
        %v2874 = vadd.f32 0.0, %v2873
        %v2875 = vpop.f32.mrb[0].mxu0
        %v2876 = vadd.f32 0.0, %v2875
        %v2877 = vpop.f32.mrb[0].mxu0
        %v2878 = vadd.f32 0.0, %v2877
        %2879 = vdwg.mxu0
        %2880 = vmatprep.subr.bf16.mxu0 %v1941
        %2881 = vmatpush1.bf16.msra.mxu0 %v1940
        %2882 = vmatprep.subr.bf16.mxu0 %v1957
        %2883 = vmatpush1.bf16.msra.mxu0 %v1956
        %2884 = vmatprep.subr.bf16.mxu0 %v1813
        %2885 = vmatpush1.bf16.msra.mxu0 %v1812
        %2886 = vmatprep.subr.bf16.mxu0 %v1829
        %2887 = vmatpush1.bf16.msra.mxu0 %v1828
        %2888 = vmatprep.subr.bf16.mxu0 0
        %2889 = vmatpush1.bf16.msra.mxu0 0
        %2890 = vmatprep.subr.bf16.mxu0 0
        %2891 = vmatpush1.bf16.msra.mxu0 0
        %2892 = vmatprep.subr.bf16.mxu0 0
        %2893 = vmatpush1.bf16.msra.mxu0 0
        %2894 = vmatprep.subr.bf16.mxu0 0
        %2895 = vmatpush1.bf16.msra.mxu0 0
        %2896 = vmatprep.subr.bf16.mxu0 0
        %2897 = vmatpush1.bf16.msra.mxu0 0
        %2898 = vmatprep.subr.bf16.mxu0 0
        %2899 = vmatpush1.bf16.msra.mxu0 0
        %2900 = vmatprep.subr.bf16.mxu0 0
        %2901 = vmatpush1.bf16.msra.mxu0 0
        %2902 = vmatprep.subr.bf16.mxu0 0
        %2903 = vmatpush1.bf16.msra.mxu0 0
        %2904 = vmatprep.subr.bf16.mxu0 0
        %2905 = vmatpush1.bf16.msra.mxu0 0
        %2906 = vmatprep.subr.bf16.mxu0 0
        %2907 = vmatpush1.bf16.msra.mxu0 0
        %2908 = vmatprep.subr.bf16.mxu0 0
        %2909 = vmatpush1.bf16.msra.mxu0 0
        %2910 = vmatprep.subr.bf16.mxu0 0
        %2911 = vmatpush1.bf16.msra.mxu0 0
        %2912 = vmatprep.mubr.bf16.mxu0 0
        %2913 = vmatmul.mubr.bf16.gmra.mrb[0].mxu0 %v2080
        %v2914 = vpop.f32.mrb[0].mxu0
        %v2915 = vadd.f32 0.0, %v2914
        %v2916 = vpop.f32.mrb[0].mxu0
        %v2917 = vadd.f32 0.0, %v2916
        %v2918 = vpop.f32.mrb[0].mxu0
        %v2919 = vadd.f32 0.0, %v2918
        %v2920 = vpop.f32.mrb[0].mxu0
        %v2921 = vadd.f32 0.0, %v2920
        %2922 = vmatprep.mubr.bf16.mxu0 0
        %2923 = vmatmul.mubr.bf16.gmra.mrb[0].mxu0 %v2083
        %v2924 = vpop.f32.mrb[0].mxu0
        %v2925 = vadd.f32 0.0, %v2924
        %v2926 = vpop.f32.mrb[0].mxu0
        %v2927 = vadd.f32 0.0, %v2926
        %v2928 = vpop.f32.mrb[0].mxu0
        %v2929 = vadd.f32 0.0, %v2928
        %v2930 = vpop.f32.mrb[0].mxu0
        %v2931 = vadd.f32 0.0, %v2930
        %2932 = vmatprep.mubr.bf16.mxu0 0
        %2933 = vmatmul.mubr.bf16.gmra.mrb[0].mxu0 %v2086
        %v2934 = vpop.f32.mrb[0].mxu0
        %v2935 = vadd.f32 0.0, %v2934
        %v2936 = vpop.f32.mrb[0].mxu0
        %v2937 = vadd.f32 0.0, %v2936
        %v2938 = vpop.f32.mrb[0].mxu0
        %v2939 = vadd.f32 0.0, %v2938
        %v2940 = vpop.f32.mrb[0].mxu0
        %v2941 = vadd.f32 0.0, %v2940
        %2942 = vmatprep.mubr.bf16.mxu0 0
        %2943 = vmatmul.mubr.bf16.gmra.mrb[0].mxu0 %v2089
        %v2944 = vpop.f32.mrb[0].mxu0
        %v2945 = vadd.f32 0.0, %v2944
        %v2946 = vpop.f32.mrb[0].mxu0
        %v2947 = vadd.f32 0.0, %v2946
        %v2948 = vpop.f32.mrb[0].mxu0
        %v2949 = vadd.f32 0.0, %v2948
        %v2950 = vpop.f32.mrb[0].mxu0
        %v2951 = vadd.f32 0.0, %v2950
        %2952 = vmatprep.mubr.bf16.mxu0 0
        %2953 = vmatmul.mubr.bf16.gmra.mrb[0].mxu0 %v2092
        %v2954 = vpop.f32.mrb[0].mxu0
        %v2955 = vadd.f32 0.0, %v2954
        %v2956 = vpop.f32.mrb[0].mxu0
        %v2957 = vadd.f32 0.0, %v2956
        %v2958 = vpop.f32.mrb[0].mxu0
        %v2959 = vadd.f32 0.0, %v2958
        %v2960 = vpop.f32.mrb[0].mxu0
        %v2961 = vadd.f32 0.0, %v2960
        %2962 = vmatprep.mubr.bf16.mxu0 0
        %2963 = vmatmul.mubr.bf16.gmra.mrb[0].mxu0 %v2095
        %v2964 = vpop.f32.mrb[0].mxu0
        %v2965 = vadd.f32 0.0, %v2964
        %v2966 = vpop.f32.mrb[0].mxu0
        %v2967 = vadd.f32 0.0, %v2966
        %v2968 = vpop.f32.mrb[0].mxu0
        %v2969 = vadd.f32 0.0, %v2968
        %v2970 = vpop.f32.mrb[0].mxu0
        %v2971 = vadd.f32 0.0, %v2970
        %2972 = vmatprep.mubr.bf16.mxu0 0
        %2973 = vmatmul.mubr.bf16.gmra.mrb[0].mxu0 %v2098
        %v2974 = vpop.f32.mrb[0].mxu0
        %v2975 = vadd.f32 0.0, %v2974
        %v2976 = vpop.f32.mrb[0].mxu0
        %v2977 = vadd.f32 0.0, %v2976
        %v2978 = vpop.f32.mrb[0].mxu0
        %v2979 = vadd.f32 0.0, %v2978
        %v2980 = vpop.f32.mrb[0].mxu0
        %v2981 = vadd.f32 0.0, %v2980
        %2982 = vmatprep.mubr.bf16.mxu0 0
        %2983 = vmatmul.mubr.bf16.gmra.mrb[0].mxu0 %v2101
        %v2984 = vpop.f32.mrb[0].mxu0
        %v2985 = vadd.f32 0.0, %v2984
        %v2986 = vpop.f32.mrb[0].mxu0
        %v2987 = vadd.f32 0.0, %v2986
        %v2988 = vpop.f32.mrb[0].mxu0
        %v2989 = vadd.f32 0.0, %v2988
        %v2990 = vpop.f32.mrb[0].mxu0
        %v2991 = vadd.f32 0.0, %v2990
        %2992 = vmatprep.mubr.bf16.mxu0 0
        %2993 = vmatmul.mubr.bf16.gmra.mrb[0].mxu0 %v2104
        %v2994 = vpop.f32.mrb[0].mxu0
        %v2995 = vadd.f32 0.0, %v2994
        %v2996 = vpop.f32.mrb[0].mxu0
        %v2997 = vadd.f32 0.0, %v2996
        %v2998 = vpop.f32.mrb[0].mxu0
        %v2999 = vadd.f32 0.0, %v2998
        %v3000 = vpop.f32.mrb[0].mxu0
        %v3001 = vadd.f32 0.0, %v3000
        %3002 = vmatprep.mubr.bf16.mxu0 0
        %3003 = vmatmul.mubr.bf16.gmra.mrb[0].mxu0 %v2107
        %v3004 = vpop.f32.mrb[0].mxu0
        %v3005 = vadd.f32 0.0, %v3004
        %v3006 = vpop.f32.mrb[0].mxu0
        %v3007 = vadd.f32 0.0, %v3006
        %v3008 = vpop.f32.mrb[0].mxu0
        %v3009 = vadd.f32 0.0, %v3008
        %v3010 = vpop.f32.mrb[0].mxu0
        %v3011 = vadd.f32 0.0, %v3010
        %3012 = vmatprep.mubr.bf16.mxu0 0
        %3013 = vmatmul.mubr.bf16.gmra.mrb[0].mxu0 %v2110
        %v3014 = vpop.f32.mrb[0].mxu0
        %v3015 = vadd.f32 0.0, %v3014
        %v3016 = vpop.f32.mrb[0].mxu0
        %v3017 = vadd.f32 0.0, %v3016
        %v3018 = vpop.f32.mrb[0].mxu0
        %v3019 = vadd.f32 0.0, %v3018
        %v3020 = vpop.f32.mrb[0].mxu0
        %v3021 = vadd.f32 0.0, %v3020
        %3022 = vmatprep.mubr.bf16.mxu0 0
        %3023 = vmatmul.mubr.bf16.gmra.mrb[0].mxu0 %v2113
        %v3024 = vpop.f32.mrb[0].mxu0
        %v3025 = vadd.f32 0.0, %v3024
        %v3026 = vpop.f32.mrb[0].mxu0
        %v3027 = vadd.f32 0.0, %v3026
        %v3028 = vpop.f32.mrb[0].mxu0
        %v3029 = vadd.f32 0.0, %v3028
        %v3030 = vpop.f32.mrb[0].mxu0
        %v3031 = vadd.f32 0.0, %v3030
        %3032 = vdwg.mxu0
        %3033 = vmatprep.subr.bf16.mxu0 %v1943
        %3034 = vmatpush1.bf16.msra.mxu0 %v1942
        %3035 = vmatprep.subr.bf16.mxu0 %v1959
        %3036 = vmatpush1.bf16.msra.mxu0 %v1958
        %3037 = vmatprep.subr.bf16.mxu0 %v1815
        %3038 = vmatpush1.bf16.msra.mxu0 %v1814
        %3039 = vmatprep.subr.bf16.mxu0 %v1831
        %3040 = vmatpush1.bf16.msra.mxu0 %v1830
        %3041 = vmatprep.subr.bf16.mxu0 0
        %3042 = vmatpush1.bf16.msra.mxu0 0
        %3043 = vmatprep.subr.bf16.mxu0 0
        %3044 = vmatpush1.bf16.msra.mxu0 0
        %3045 = vmatprep.subr.bf16.mxu0 0
        %3046 = vmatpush1.bf16.msra.mxu0 0
        %3047 = vmatprep.subr.bf16.mxu0 0
        %3048 = vmatpush1.bf16.msra.mxu0 0
        %3049 = vmatprep.subr.bf16.mxu0 0
        %3050 = vmatpush1.bf16.msra.mxu0 0
        %3051 = vmatprep.subr.bf16.mxu0 0
        %3052 = vmatpush1.bf16.msra.mxu0 0
        %3053 = vmatprep.subr.bf16.mxu0 0
        %3054 = vmatpush1.bf16.msra.mxu0 0
        %3055 = vmatprep.subr.bf16.mxu0 0
        %3056 = vmatpush1.bf16.msra.mxu0 0
        %3057 = vmatprep.subr.bf16.mxu0 0
        %3058 = vmatpush1.bf16.msra.mxu0 0
        %3059 = vmatprep.subr.bf16.mxu0 0
        %3060 = vmatpush1.bf16.msra.mxu0 0
        %3061 = vmatprep.subr.bf16.mxu0 0
        %3062 = vmatpush1.bf16.msra.mxu0 0
        %3063 = vmatprep.subr.bf16.mxu0 0
        %3064 = vmatpush1.bf16.msra.mxu0 0
        %3065 = vmatprep.mubr.bf16.mxu0 0
        %3066 = vmatmul.mubr.bf16.gmra.mrb[0].mxu0 %v2080
        %v3067 = vpop.f32.mrb[0].mxu0
        %v3068 = vadd.f32 0.0, %v3067
        %v3069 = vpop.f32.mrb[0].mxu0
        %v3070 = vadd.f32 0.0, %v3069
        %v3071 = vpop.f32.mrb[0].mxu0
        %v3072 = vadd.f32 0.0, %v3071
        %v3073 = vpop.f32.mrb[0].mxu0
        %v3074 = vadd.f32 0.0, %v3073
        %3075 = vmatprep.mubr.bf16.mxu0 0
        %3076 = vmatmul.mubr.bf16.gmra.mrb[0].mxu0 %v2083
        %v3077 = vpop.f32.mrb[0].mxu0
        %v3078 = vadd.f32 0.0, %v3077
        %v3079 = vpop.f32.mrb[0].mxu0
        %v3080 = vadd.f32 0.0, %v3079
        %v3081 = vpop.f32.mrb[0].mxu0
        %v3082 = vadd.f32 0.0, %v3081
        %v3083 = vpop.f32.mrb[0].mxu0
        %v3084 = vadd.f32 0.0, %v3083
        %3085 = vmatprep.mubr.bf16.mxu0 0
        %3086 = vmatmul.mubr.bf16.gmra.mrb[0].mxu0 %v2086
        %v3087 = vpop.f32.mrb[0].mxu0
        %v3088 = vadd.f32 0.0, %v3087
        %v3089 = vpop.f32.mrb[0].mxu0
        %v3090 = vadd.f32 0.0, %v3089
        %v3091 = vpop.f32.mrb[0].mxu0
        %v3092 = vadd.f32 0.0, %v3091
        %v3093 = vpop.f32.mrb[0].mxu0
        %v3094 = vadd.f32 0.0, %v3093
        %3095 = vmatprep.mubr.bf16.mxu0 0
        %3096 = vmatmul.mubr.bf16.gmra.mrb[0].mxu0 %v2089
        %v3097 = vpop.f32.mrb[0].mxu0
        %v3098 = vadd.f32 0.0, %v3097
        %v3099 = vpop.f32.mrb[0].mxu0
        %v3100 = vadd.f32 0.0, %v3099
        %v3101 = vpop.f32.mrb[0].mxu0
        %v3102 = vadd.f32 0.0, %v3101
        %v3103 = vpop.f32.mrb[0].mxu0
        %v3104 = vadd.f32 0.0, %v3103
        %3105 = vmatprep.mubr.bf16.mxu0 0
        %3106 = vmatmul.mubr.bf16.gmra.mrb[0].mxu0 %v2092
        %v3107 = vpop.f32.mrb[0].mxu0
        %v3108 = vadd.f32 0.0, %v3107
        %v3109 = vpop.f32.mrb[0].mxu0
        %v3110 = vadd.f32 0.0, %v3109
        %v3111 = vpop.f32.mrb[0].mxu0
        %v3112 = vadd.f32 0.0, %v3111
        %v3113 = vpop.f32.mrb[0].mxu0
        %v3114 = vadd.f32 0.0, %v3113
        %3115 = vmatprep.mubr.bf16.mxu0 0
        %3116 = vmatmul.mubr.bf16.gmra.mrb[0].mxu0 %v2095
        %v3117 = vpop.f32.mrb[0].mxu0
        %v3118 = vadd.f32 0.0, %v3117
        %v3119 = vpop.f32.mrb[0].mxu0
        %v3120 = vadd.f32 0.0, %v3119
        %v3121 = vpop.f32.mrb[0].mxu0
        %v3122 = vadd.f32 0.0, %v3121
        %v3123 = vpop.f32.mrb[0].mxu0
        %v3124 = vadd.f32 0.0, %v3123
        %3125 = vmatprep.mubr.bf16.mxu0 0
        %3126 = vmatmul.mubr.bf16.gmra.mrb[0].mxu0 %v2098
        %v3127 = vpop.f32.mrb[0].mxu0
        %v3128 = vadd.f32 0.0, %v3127
        %v3129 = vpop.f32.mrb[0].mxu0
        %v3130 = vadd.f32 0.0, %v3129
        %v3131 = vpop.f32.mrb[0].mxu0
        %v3132 = vadd.f32 0.0, %v3131
        %v3133 = vpop.f32.mrb[0].mxu0
        %v3134 = vadd.f32 0.0, %v3133
        %3135 = vmatprep.mubr.bf16.mxu0 0
        %3136 = vmatmul.mubr.bf16.gmra.mrb[0].mxu0 %v2101
        %v3137 = vpop.f32.mrb[0].mxu0
        %v3138 = vadd.f32 0.0, %v3137
        %v3139 = vpop.f32.mrb[0].mxu0
        %v3140 = vadd.f32 0.0, %v3139
        %v3141 = vpop.f32.mrb[0].mxu0
        %v3142 = vadd.f32 0.0, %v3141
        %v3143 = vpop.f32.mrb[0].mxu0
        %v3144 = vadd.f32 0.0, %v3143
        %3145 = vmatprep.mubr.bf16.mxu0 0
        %3146 = vmatmul.mubr.bf16.gmra.mrb[0].mxu0 %v2104
        %v3147 = vpop.f32.mrb[0].mxu0
        %v3148 = vadd.f32 0.0, %v3147
        %v3149 = vpop.f32.mrb[0].mxu0
        %v3150 = vadd.f32 0.0, %v3149
        %v3151 = vpop.f32.mrb[0].mxu0
        %v3152 = vadd.f32 0.0, %v3151
        %v3153 = vpop.f32.mrb[0].mxu0
        %v3154 = vadd.f32 0.0, %v3153
        %3155 = vmatprep.mubr.bf16.mxu0 0
        %3156 = vmatmul.mubr.bf16.gmra.mrb[0].mxu0 %v2107
        %v3157 = vpop.f32.mrb[0].mxu0
        %v3158 = vadd.f32 0.0, %v3157
        %v3159 = vpop.f32.mrb[0].mxu0
        %v3160 = vadd.f32 0.0, %v3159
        %v3161 = vpop.f32.mrb[0].mxu0
        %v3162 = vadd.f32 0.0, %v3161
        %v3163 = vpop.f32.mrb[0].mxu0
        %v3164 = vadd.f32 0.0, %v3163
        %3165 = vmatprep.mubr.bf16.mxu0 0
        %3166 = vmatmul.mubr.bf16.gmra.mrb[0].mxu0 %v2110
        %v3167 = vpop.f32.mrb[0].mxu0
        %v3168 = vadd.f32 0.0, %v3167
        %v3169 = vpop.f32.mrb[0].mxu0
        %v3170 = vadd.f32 0.0, %v3169
        %v3171 = vpop.f32.mrb[0].mxu0
        %v3172 = vadd.f32 0.0, %v3171
        %v3173 = vpop.f32.mrb[0].mxu0
        %v3174 = vadd.f32 0.0, %v3173
        %3175 = vmatprep.mubr.bf16.mxu0 0
        %3176 = vmatmul.mubr.bf16.gmra.mrb[0].mxu0 %v2113
        %v3177 = vpop.f32.mrb[0].mxu0
        %v3178 = vadd.f32 0.0, %v3177
        %v3179 = vpop.f32.mrb[0].mxu0
        %v3180 = vadd.f32 0.0, %v3179
        %v3181 = vpop.f32.mrb[0].mxu0
        %v3182 = vadd.f32 0.0, %v3181
        %v3183 = vpop.f32.mrb[0].mxu0
        %v3184 = vadd.f32 0.0, %v3183
        %3185 = vdwg.mxu0
        %3186 = vmatprep.subr.bf16.mxu0 %v1945
        %3187 = vmatpush1.bf16.msra.mxu0 %v1944
        %3188 = vmatprep.subr.bf16.mxu0 %v1961
        %3189 = vmatpush1.bf16.msra.mxu0 %v1960
        %3190 = vmatprep.subr.bf16.mxu0 %v1817
        %3191 = vmatpush1.bf16.msra.mxu0 %v1816
        %3192 = vmatprep.subr.bf16.mxu0 %v1833
        %3193 = vmatpush1.bf16.msra.mxu0 %v1832
        %3194 = vmatprep.subr.bf16.mxu0 0
        %3195 = vmatpush1.bf16.msra.mxu0 0
        %3196 = vmatprep.subr.bf16.mxu0 0
        %3197 = vmatpush1.bf16.msra.mxu0 0
        %3198 = vmatprep.subr.bf16.mxu0 0
        %3199 = vmatpush1.bf16.msra.mxu0 0
        %3200 = vmatprep.subr.bf16.mxu0 0
        %3201 = vmatpush1.bf16.msra.mxu0 0
        %3202 = vmatprep.subr.bf16.mxu0 0
        %3203 = vmatpush1.bf16.msra.mxu0 0
        %3204 = vmatprep.subr.bf16.mxu0 0
        %3205 = vmatpush1.bf16.msra.mxu0 0
        %3206 = vmatprep.subr.bf16.mxu0 0
        %3207 = vmatpush1.bf16.msra.mxu0 0
        %3208 = vmatprep.subr.bf16.mxu0 0
        %3209 = vmatpush1.bf16.msra.mxu0 0
        %3210 = vmatprep.subr.bf16.mxu0 0
        %3211 = vmatpush1.bf16.msra.mxu0 0
        %3212 = vmatprep.subr.bf16.mxu0 0
        %3213 = vmatpush1.bf16.msra.mxu0 0
        %3214 = vmatprep.subr.bf16.mxu0 0
        %3215 = vmatpush1.bf16.msra.mxu0 0
        %3216 = vmatprep.subr.bf16.mxu0 0
        %3217 = vmatpush1.bf16.msra.mxu0 0
        %3218 = vmatprep.mubr.bf16.mxu0 0
        %3219 = vmatmul.mubr.bf16.gmra.mrb[0].mxu0 %v2080
        %v3220 = vpop.f32.mrb[0].mxu0
        %v3221 = vadd.f32 0.0, %v3220
        %v3222 = vpop.f32.mrb[0].mxu0
        %v3223 = vadd.f32 0.0, %v3222
        %v3224 = vpop.f32.mrb[0].mxu0
        %v3225 = vadd.f32 0.0, %v3224
        %v3226 = vpop.f32.mrb[0].mxu0
        %v3227 = vadd.f32 0.0, %v3226
        %3228 = vmatprep.mubr.bf16.mxu0 0
        %3229 = vmatmul.mubr.bf16.gmra.mrb[0].mxu0 %v2083
        %v3230 = vpop.f32.mrb[0].mxu0
        %v3231 = vadd.f32 0.0, %v3230
        %v3232 = vpop.f32.mrb[0].mxu0
        %v3233 = vadd.f32 0.0, %v3232
        %v3234 = vpop.f32.mrb[0].mxu0
        %v3235 = vadd.f32 0.0, %v3234
        %v3236 = vpop.f32.mrb[0].mxu0
        %v3237 = vadd.f32 0.0, %v3236
        %3238 = vmatprep.mubr.bf16.mxu0 0
        %3239 = vmatmul.mubr.bf16.gmra.mrb[0].mxu0 %v2086
        %v3240 = vpop.f32.mrb[0].mxu0
        %v3241 = vadd.f32 0.0, %v3240
        %v3242 = vpop.f32.mrb[0].mxu0
        %v3243 = vadd.f32 0.0, %v3242
        %v3244 = vpop.f32.mrb[0].mxu0
        %v3245 = vadd.f32 0.0, %v3244
        %v3246 = vpop.f32.mrb[0].mxu0
        %v3247 = vadd.f32 0.0, %v3246
        %3248 = vmatprep.mubr.bf16.mxu0 0
        %3249 = vmatmul.mubr.bf16.gmra.mrb[0].mxu0 %v2089
        %v3250 = vpop.f32.mrb[0].mxu0
        %v3251 = vadd.f32 0.0, %v3250
        %v3252 = vpop.f32.mrb[0].mxu0
        %v3253 = vadd.f32 0.0, %v3252
        %v3254 = vpop.f32.mrb[0].mxu0
        %v3255 = vadd.f32 0.0, %v3254
        %v3256 = vpop.f32.mrb[0].mxu0
        %v3257 = vadd.f32 0.0, %v3256
        %3258 = vmatprep.mubr.bf16.mxu0 0
        %3259 = vmatmul.mubr.bf16.gmra.mrb[0].mxu0 %v2092
        %v3260 = vpop.f32.mrb[0].mxu0
        %v3261 = vadd.f32 0.0, %v3260
        %v3262 = vpop.f32.mrb[0].mxu0
        %v3263 = vadd.f32 0.0, %v3262
        %v3264 = vpop.f32.mrb[0].mxu0
        %v3265 = vadd.f32 0.0, %v3264
        %v3266 = vpop.f32.mrb[0].mxu0
        %v3267 = vadd.f32 0.0, %v3266
        %3268 = vmatprep.mubr.bf16.mxu0 0
        %3269 = vmatmul.mubr.bf16.gmra.mrb[0].mxu0 %v2095
        %v3270 = vpop.f32.mrb[0].mxu0
        %v3271 = vadd.f32 0.0, %v3270
        %v3272 = vpop.f32.mrb[0].mxu0
        %v3273 = vadd.f32 0.0, %v3272
        %v3274 = vpop.f32.mrb[0].mxu0
        %v3275 = vadd.f32 0.0, %v3274
        %v3276 = vpop.f32.mrb[0].mxu0
        %v3277 = vadd.f32 0.0, %v3276
        %3278 = vmatprep.mubr.bf16.mxu0 0
        %3279 = vmatmul.mubr.bf16.gmra.mrb[0].mxu0 %v2098
        %v3280 = vpop.f32.mrb[0].mxu0
        %v3281 = vadd.f32 0.0, %v3280
        %v3282 = vpop.f32.mrb[0].mxu0
        %v3283 = vadd.f32 0.0, %v3282
        %v3284 = vpop.f32.mrb[0].mxu0
        %v3285 = vadd.f32 0.0, %v3284
        %v3286 = vpop.f32.mrb[0].mxu0
        %v3287 = vadd.f32 0.0, %v3286
        %3288 = vmatprep.mubr.bf16.mxu0 0
        %3289 = vmatmul.mubr.bf16.gmra.mrb[0].mxu0 %v2101
        %v3290 = vpop.f32.mrb[0].mxu0
        %v3291 = vadd.f32 0.0, %v3290
        %v3292 = vpop.f32.mrb[0].mxu0
        %v3293 = vadd.f32 0.0, %v3292
        %v3294 = vpop.f32.mrb[0].mxu0
        %v3295 = vadd.f32 0.0, %v3294
        %v3296 = vpop.f32.mrb[0].mxu0
        %v3297 = vadd.f32 0.0, %v3296
        %3298 = vmatprep.mubr.bf16.mxu0 0
        %3299 = vmatmul.mubr.bf16.gmra.mrb[0].mxu0 %v2104
        %v3300 = vpop.f32.mrb[0].mxu0
        %v3301 = vadd.f32 0.0, %v3300
        %v3302 = vpop.f32.mrb[0].mxu0
        %v3303 = vadd.f32 0.0, %v3302
        %v3304 = vpop.f32.mrb[0].mxu0
        %v3305 = vadd.f32 0.0, %v3304
        %v3306 = vpop.f32.mrb[0].mxu0
        %v3307 = vadd.f32 0.0, %v3306
        %3308 = vmatprep.mubr.bf16.mxu0 0
        %3309 = vmatmul.mubr.bf16.gmra.mrb[0].mxu0 %v2107
        %v3310 = vpop.f32.mrb[0].mxu0
        %v3311 = vadd.f32 0.0, %v3310
        %v3312 = vpop.f32.mrb[0].mxu0
        %v3313 = vadd.f32 0.0, %v3312
        %v3314 = vpop.f32.mrb[0].mxu0
        %v3315 = vadd.f32 0.0, %v3314
        %v3316 = vpop.f32.mrb[0].mxu0
        %v3317 = vadd.f32 0.0, %v3316
        %3318 = vmatprep.mubr.bf16.mxu0 0
        %3319 = vmatmul.mubr.bf16.gmra.mrb[0].mxu0 %v2110
        %v3320 = vpop.f32.mrb[0].mxu0
        %v3321 = vadd.f32 0.0, %v3320
        %v3322 = vpop.f32.mrb[0].mxu0
        %v3323 = vadd.f32 0.0, %v3322
        %v3324 = vpop.f32.mrb[0].mxu0
        %v3325 = vadd.f32 0.0, %v3324
        %v3326 = vpop.f32.mrb[0].mxu0
        %v3327 = vadd.f32 0.0, %v3326
        %3328 = vmatprep.mubr.bf16.mxu0 0
        %3329 = vmatmul.mubr.bf16.gmra.mrb[0].mxu0 %v2113
        %v3330 = vpop.f32.mrb[0].mxu0
        %v3331 = vadd.f32 0.0, %v3330
        %v3332 = vpop.f32.mrb[0].mxu0
        %v3333 = vadd.f32 0.0, %v3332
        %v3334 = vpop.f32.mrb[0].mxu0
        %v3335 = vadd.f32 0.0, %v3334
        %v3336 = vpop.f32.mrb[0].mxu0
        %v3337 = vadd.f32 0.0, %v3336
        %3338 = vdwg.mxu0
        %v3339 = vmax.f32 %v2150, 0.0
        %v3340 = vmax.f32 %v2152, 0.0
        %v3341 = vmax.f32 %v2303, 0.0
        %v3342 = vmax.f32 %v2305, 0.0
        %v3343 = vmax.f32 %v2456, 0.0
        %v3344 = vmax.f32 %v2458, 0.0
        %v3345 = vmax.f32 %v2609, 0.0
        %v3346 = vmax.f32 %v2611, 0.0
        %v3347 = vmax.f32 %v2762, 0.0
        %v3348 = vmax.f32 %v2764, 0.0
        %v3349 = vmax.f32 %v2915, 0.0
        %v3350 = vmax.f32 %v2917, 0.0
        %v3351 = vmax.f32 %v3068, 0.0
        %v3352 = vmax.f32 %v3070, 0.0
        %v3353 = vmax.f32 %v3221, 0.0
        %v3354 = vmax.f32 %v3223, 0.0
        %v3355 = vmax.f32 %v2154, 0.0
        %v3356 = vmax.f32 %v2156, 0.0
        %v3357 = vmax.f32 %v2307, 0.0
        %v3358 = vmax.f32 %v2309, 0.0
        %v3359 = vmax.f32 %v2460, 0.0
        %v3360 = vmax.f32 %v2462, 0.0
        %v3361 = vmax.f32 %v2613, 0.0
        %v3362 = vmax.f32 %v2615, 0.0
        %v3363 = vmax.f32 %v2766, 0.0
        %v3364 = vmax.f32 %v2768, 0.0
        %v3365 = vmax.f32 %v2919, 0.0
        %v3366 = vmax.f32 %v2921, 0.0
        %v3367 = vmax.f32 %v3072, 0.0
        %v3368 = vmax.f32 %v3074, 0.0
        %v3369 = vmax.f32 %v3225, 0.0
        %v3370 = vmax.f32 %v3227, 0.0
        %v3371 = vmax.f32 %v2160, 0.0
        %v3372 = vmax.f32 %v2162, 0.0
        %v3373 = vmax.f32 %v2313, 0.0
        %v3374 = vmax.f32 %v2315, 0.0
        %v3375 = vmax.f32 %v2466, 0.0
        %v3376 = vmax.f32 %v2468, 0.0
        %v3377 = vmax.f32 %v2619, 0.0
        %v3378 = vmax.f32 %v2621, 0.0
        %v3379 = vmax.f32 %v2772, 0.0
        %v3380 = vmax.f32 %v2774, 0.0
        %v3381 = vmax.f32 %v2925, 0.0
        %v3382 = vmax.f32 %v2927, 0.0
        %v3383 = vmax.f32 %v3078, 0.0
        %v3384 = vmax.f32 %v3080, 0.0
        %v3385 = vmax.f32 %v3231, 0.0
        %v3386 = vmax.f32 %v3233, 0.0
        %v3387 = vmax.f32 %v2164, 0.0
        %v3388 = vmax.f32 %v2166, 0.0
        %v3389 = vmax.f32 %v2317, 0.0
        %v3390 = vmax.f32 %v2319, 0.0
        %v3391 = vmax.f32 %v2470, 0.0
        %v3392 = vmax.f32 %v2472, 0.0
        %v3393 = vmax.f32 %v2623, 0.0
        %v3394 = vmax.f32 %v2625, 0.0
        %v3395 = vmax.f32 %v2776, 0.0
        %v3396 = vmax.f32 %v2778, 0.0
        %v3397 = vmax.f32 %v2929, 0.0
        %v3398 = vmax.f32 %v2931, 0.0
        %v3399 = vmax.f32 %v3082, 0.0
        %v3400 = vmax.f32 %v3084, 0.0
        %v3401 = vmax.f32 %v3235, 0.0
        %v3402 = vmax.f32 %v3237, 0.0
        %v3403 = vmax.f32 %v2170, 0.0
        %v3404 = vmax.f32 %v2172, 0.0
        %v3405 = vmax.f32 %v2323, 0.0
        %v3406 = vmax.f32 %v2325, 0.0
        %v3407 = vmax.f32 %v2476, 0.0
        %v3408 = vmax.f32 %v2478, 0.0
        %v3409 = vmax.f32 %v2629, 0.0
        %v3410 = vmax.f32 %v2631, 0.0
        %v3411 = vmax.f32 %v2782, 0.0
        %v3412 = vmax.f32 %v2784, 0.0
        %v3413 = vmax.f32 %v2935, 0.0
        %v3414 = vmax.f32 %v2937, 0.0
        %v3415 = vmax.f32 %v3088, 0.0
        %v3416 = vmax.f32 %v3090, 0.0
        %v3417 = vmax.f32 %v3241, 0.0
        %v3418 = vmax.f32 %v3243, 0.0
        %v3419 = vmax.f32 %v2174, 0.0
        %v3420 = vmax.f32 %v2176, 0.0
        %v3421 = vmax.f32 %v2327, 0.0
        %v3422 = vmax.f32 %v2329, 0.0
        %v3423 = vmax.f32 %v2480, 0.0
        %v3424 = vmax.f32 %v2482, 0.0
        %v3425 = vmax.f32 %v2633, 0.0
        %v3426 = vmax.f32 %v2635, 0.0
        %v3427 = vmax.f32 %v2786, 0.0
        %v3428 = vmax.f32 %v2788, 0.0
        %v3429 = vmax.f32 %v2939, 0.0
        %v3430 = vmax.f32 %v2941, 0.0
        %v3431 = vmax.f32 %v3092, 0.0
        %v3432 = vmax.f32 %v3094, 0.0
        %v3433 = vmax.f32 %v3245, 0.0
        %v3434 = vmax.f32 %v3247, 0.0
        %v3435 = vmax.f32 %v2180, 0.0
        %v3436 = vmax.f32 %v2182, 0.0
        %v3437 = vmax.f32 %v2333, 0.0
        %v3438 = vmax.f32 %v2335, 0.0
        %v3439 = vmax.f32 %v2486, 0.0
        %v3440 = vmax.f32 %v2488, 0.0
        %v3441 = vmax.f32 %v2639, 0.0
        %v3442 = vmax.f32 %v2641, 0.0
        %v3443 = vmax.f32 %v2792, 0.0
        %v3444 = vmax.f32 %v2794, 0.0
        %v3445 = vmax.f32 %v2945, 0.0
        %v3446 = vmax.f32 %v2947, 0.0
        %v3447 = vmax.f32 %v3098, 0.0
        %v3448 = vmax.f32 %v3100, 0.0
        %v3449 = vmax.f32 %v3251, 0.0
        %v3450 = vmax.f32 %v3253, 0.0
        %v3451 = vmax.f32 %v2184, 0.0
        %v3452 = vmax.f32 %v2186, 0.0
        %v3453 = vmax.f32 %v2337, 0.0
        %v3454 = vmax.f32 %v2339, 0.0
        %v3455 = vmax.f32 %v2490, 0.0
        %v3456 = vmax.f32 %v2492, 0.0
        %v3457 = vmax.f32 %v2643, 0.0
        %v3458 = vmax.f32 %v2645, 0.0
        %v3459 = vmax.f32 %v2796, 0.0
        %v3460 = vmax.f32 %v2798, 0.0
        %v3461 = vmax.f32 %v2949, 0.0
        %v3462 = vmax.f32 %v2951, 0.0
        %v3463 = vmax.f32 %v3102, 0.0
        %v3464 = vmax.f32 %v3104, 0.0
        %v3465 = vmax.f32 %v3255, 0.0
        %v3466 = vmax.f32 %v3257, 0.0
        %v3467 = vmax.f32 %v2190, 0.0
        %v3468 = vmax.f32 %v2192, 0.0
        %v3469 = vmax.f32 %v2343, 0.0
        %v3470 = vmax.f32 %v2345, 0.0
        %v3471 = vmax.f32 %v2496, 0.0
        %v3472 = vmax.f32 %v2498, 0.0
        %v3473 = vmax.f32 %v2649, 0.0
        %v3474 = vmax.f32 %v2651, 0.0
        %v3475 = vmax.f32 %v2802, 0.0
        %v3476 = vmax.f32 %v2804, 0.0
        %v3477 = vmax.f32 %v2955, 0.0
        %v3478 = vmax.f32 %v2957, 0.0
        %v3479 = vmax.f32 %v3108, 0.0
        %v3480 = vmax.f32 %v3110, 0.0
        %v3481 = vmax.f32 %v3261, 0.0
        %v3482 = vmax.f32 %v3263, 0.0
        %v3483 = vmax.f32 %v2194, 0.0
        %v3484 = vmax.f32 %v2196, 0.0
        %v3485 = vmax.f32 %v2347, 0.0
        %v3486 = vmax.f32 %v2349, 0.0
        %v3487 = vmax.f32 %v2500, 0.0
        %v3488 = vmax.f32 %v2502, 0.0
        %v3489 = vmax.f32 %v2653, 0.0
        %v3490 = vmax.f32 %v2655, 0.0
        %v3491 = vmax.f32 %v2806, 0.0
        %v3492 = vmax.f32 %v2808, 0.0
        %v3493 = vmax.f32 %v2959, 0.0
        %v3494 = vmax.f32 %v2961, 0.0
        %v3495 = vmax.f32 %v3112, 0.0
        %v3496 = vmax.f32 %v3114, 0.0
        %v3497 = vmax.f32 %v3265, 0.0
        %v3498 = vmax.f32 %v3267, 0.0
        %v3499 = vmax.f32 %v2200, 0.0
        %v3500 = vmax.f32 %v2202, 0.0
        %v3501 = vmax.f32 %v2353, 0.0
        %v3502 = vmax.f32 %v2355, 0.0
        %v3503 = vmax.f32 %v2506, 0.0
        %v3504 = vmax.f32 %v2508, 0.0
        %v3505 = vmax.f32 %v2659, 0.0
        %v3506 = vmax.f32 %v2661, 0.0
        %v3507 = vmax.f32 %v2812, 0.0
        %v3508 = vmax.f32 %v2814, 0.0
        %v3509 = vmax.f32 %v2965, 0.0
        %v3510 = vmax.f32 %v2967, 0.0
        %v3511 = vmax.f32 %v3118, 0.0
        %v3512 = vmax.f32 %v3120, 0.0
        %v3513 = vmax.f32 %v3271, 0.0
        %v3514 = vmax.f32 %v3273, 0.0
        %v3515 = vmax.f32 %v2204, 0.0
        %v3516 = vmax.f32 %v2206, 0.0
        %v3517 = vmax.f32 %v2357, 0.0
        %v3518 = vmax.f32 %v2359, 0.0
        %v3519 = vmax.f32 %v2510, 0.0
        %v3520 = vmax.f32 %v2512, 0.0
        %v3521 = vmax.f32 %v2663, 0.0
        %v3522 = vmax.f32 %v2665, 0.0
        %v3523 = vmax.f32 %v2816, 0.0
        %v3524 = vmax.f32 %v2818, 0.0
        %v3525 = vmax.f32 %v2969, 0.0
        %v3526 = vmax.f32 %v2971, 0.0
        %v3527 = vmax.f32 %v3122, 0.0
        %v3528 = vmax.f32 %v3124, 0.0
        %v3529 = vmax.f32 %v3275, 0.0
        %v3530 = vmax.f32 %v3277, 0.0
        %v3531 = vmax.f32 %v2210, 0.0
        %v3532 = vmax.f32 %v2212, 0.0
        %v3533 = vmax.f32 %v2363, 0.0
        %v3534 = vmax.f32 %v2365, 0.0
        %v3535 = vmax.f32 %v2516, 0.0
        %v3536 = vmax.f32 %v2518, 0.0
        %v3537 = vmax.f32 %v2669, 0.0
        %v3538 = vmax.f32 %v2671, 0.0
        %v3539 = vmax.f32 %v2822, 0.0
        %v3540 = vmax.f32 %v2824, 0.0
        %v3541 = vmax.f32 %v2975, 0.0
        %v3542 = vmax.f32 %v2977, 0.0
        %v3543 = vmax.f32 %v3128, 0.0
        %v3544 = vmax.f32 %v3130, 0.0
        %v3545 = vmax.f32 %v3281, 0.0
        %v3546 = vmax.f32 %v3283, 0.0
        %v3547 = vmax.f32 %v2214, 0.0
        %v3548 = vmax.f32 %v2216, 0.0
        %v3549 = vmax.f32 %v2367, 0.0
        %v3550 = vmax.f32 %v2369, 0.0
        %v3551 = vmax.f32 %v2520, 0.0
        %v3552 = vmax.f32 %v2522, 0.0
        %v3553 = vmax.f32 %v2673, 0.0
        %v3554 = vmax.f32 %v2675, 0.0
        %v3555 = vmax.f32 %v2826, 0.0
        %v3556 = vmax.f32 %v2828, 0.0
        %v3557 = vmax.f32 %v2979, 0.0
        %v3558 = vmax.f32 %v2981, 0.0
        %v3559 = vmax.f32 %v3132, 0.0
        %v3560 = vmax.f32 %v3134, 0.0
        %v3561 = vmax.f32 %v3285, 0.0
        %v3562 = vmax.f32 %v3287, 0.0
        %v3563 = vmax.f32 %v2220, 0.0
        %v3564 = vmax.f32 %v2222, 0.0
        %v3565 = vmax.f32 %v2373, 0.0
        %v3566 = vmax.f32 %v2375, 0.0
        %v3567 = vmax.f32 %v2526, 0.0
        %v3568 = vmax.f32 %v2528, 0.0
        %v3569 = vmax.f32 %v2679, 0.0
        %v3570 = vmax.f32 %v2681, 0.0
        %v3571 = vmax.f32 %v2832, 0.0
        %v3572 = vmax.f32 %v2834, 0.0
        %v3573 = vmax.f32 %v2985, 0.0
        %v3574 = vmax.f32 %v2987, 0.0
        %v3575 = vmax.f32 %v3138, 0.0
        %v3576 = vmax.f32 %v3140, 0.0
        %v3577 = vmax.f32 %v3291, 0.0
        %v3578 = vmax.f32 %v3293, 0.0
        %v3579 = vmax.f32 %v2224, 0.0
        %v3580 = vmax.f32 %v2226, 0.0
        %v3581 = vmax.f32 %v2377, 0.0
        %v3582 = vmax.f32 %v2379, 0.0
        %v3583 = vmax.f32 %v2530, 0.0
        %v3584 = vmax.f32 %v2532, 0.0
        %v3585 = vmax.f32 %v2683, 0.0
        %v3586 = vmax.f32 %v2685, 0.0
        %v3587 = vmax.f32 %v2836, 0.0
        %v3588 = vmax.f32 %v2838, 0.0
        %v3589 = vmax.f32 %v2989, 0.0
        %v3590 = vmax.f32 %v2991, 0.0
        %v3591 = vmax.f32 %v3142, 0.0
        %v3592 = vmax.f32 %v3144, 0.0
        %v3593 = vmax.f32 %v3295, 0.0
        %v3594 = vmax.f32 %v3297, 0.0
        %v3595 = vmax.f32 %v2230, 0.0
        %v3596 = vmax.f32 %v2232, 0.0
        %v3597 = vmax.f32 %v2383, 0.0
        %v3598 = vmax.f32 %v2385, 0.0
        %v3599 = vmax.f32 %v2536, 0.0
        %v3600 = vmax.f32 %v2538, 0.0
        %v3601 = vmax.f32 %v2689, 0.0
        %v3602 = vmax.f32 %v2691, 0.0
        %v3603 = vmax.f32 %v2842, 0.0
        %v3604 = vmax.f32 %v2844, 0.0
        %v3605 = vmax.f32 %v2995, 0.0
        %v3606 = vmax.f32 %v2997, 0.0
        %v3607 = vmax.f32 %v3148, 0.0
        %v3608 = vmax.f32 %v3150, 0.0
        %v3609 = vmax.f32 %v3301, 0.0
        %v3610 = vmax.f32 %v3303, 0.0
        %v3611 = vmax.f32 %v2234, 0.0
        %v3612 = vmax.f32 %v2236, 0.0
        %v3613 = vmax.f32 %v2387, 0.0
        %v3614 = vmax.f32 %v2389, 0.0
        %v3615 = vmax.f32 %v2540, 0.0
        %v3616 = vmax.f32 %v2542, 0.0
        %v3617 = vmax.f32 %v2693, 0.0
        %v3618 = vmax.f32 %v2695, 0.0
        %v3619 = vmax.f32 %v2846, 0.0
        %v3620 = vmax.f32 %v2848, 0.0
        %v3621 = vmax.f32 %v2999, 0.0
        %v3622 = vmax.f32 %v3001, 0.0
        %v3623 = vmax.f32 %v3152, 0.0
        %v3624 = vmax.f32 %v3154, 0.0
        %v3625 = vmax.f32 %v3305, 0.0
        %v3626 = vmax.f32 %v3307, 0.0
        %v3627 = vmax.f32 %v2240, 0.0
        %v3628 = vmax.f32 %v2242, 0.0
        %v3629 = vmax.f32 %v2393, 0.0
        %v3630 = vmax.f32 %v2395, 0.0
        %v3631 = vmax.f32 %v2546, 0.0
        %v3632 = vmax.f32 %v2548, 0.0
        %v3633 = vmax.f32 %v2699, 0.0
        %v3634 = vmax.f32 %v2701, 0.0
        %v3635 = vmax.f32 %v2852, 0.0
        %v3636 = vmax.f32 %v2854, 0.0
        %v3637 = vmax.f32 %v3005, 0.0
        %v3638 = vmax.f32 %v3007, 0.0
        %v3639 = vmax.f32 %v3158, 0.0
        %v3640 = vmax.f32 %v3160, 0.0
        %v3641 = vmax.f32 %v3311, 0.0
        %v3642 = vmax.f32 %v3313, 0.0
        %v3643 = vmax.f32 %v2244, 0.0
        %v3644 = vmax.f32 %v2246, 0.0
        %v3645 = vmax.f32 %v2397, 0.0
        %v3646 = vmax.f32 %v2399, 0.0
        %v3647 = vmax.f32 %v2550, 0.0
        %v3648 = vmax.f32 %v2552, 0.0
        %v3649 = vmax.f32 %v2703, 0.0
        %v3650 = vmax.f32 %v2705, 0.0
        %v3651 = vmax.f32 %v2856, 0.0
        %v3652 = vmax.f32 %v2858, 0.0
        %v3653 = vmax.f32 %v3009, 0.0
        %v3654 = vmax.f32 %v3011, 0.0
        %v3655 = vmax.f32 %v3162, 0.0
        %v3656 = vmax.f32 %v3164, 0.0
        %v3657 = vmax.f32 %v3315, 0.0
        %v3658 = vmax.f32 %v3317, 0.0
        %v3659 = vmax.f32 %v2250, 0.0
        %v3660 = vmax.f32 %v2252, 0.0
        %v3661 = vmax.f32 %v2403, 0.0
        %v3662 = vmax.f32 %v2405, 0.0
        %v3663 = vmax.f32 %v2556, 0.0
        %v3664 = vmax.f32 %v2558, 0.0
        %v3665 = vmax.f32 %v2709, 0.0
        %v3666 = vmax.f32 %v2711, 0.0
        %v3667 = vmax.f32 %v2862, 0.0
        %v3668 = vmax.f32 %v2864, 0.0
        %v3669 = vmax.f32 %v3015, 0.0
        %v3670 = vmax.f32 %v3017, 0.0
        %v3671 = vmax.f32 %v3168, 0.0
        %v3672 = vmax.f32 %v3170, 0.0
        %v3673 = vmax.f32 %v3321, 0.0
        %v3674 = vmax.f32 %v3323, 0.0
        %v3675 = vmax.f32 %v2254, 0.0
        %v3676 = vmax.f32 %v2256, 0.0
        %v3677 = vmax.f32 %v2407, 0.0
        %v3678 = vmax.f32 %v2409, 0.0
        %v3679 = vmax.f32 %v2560, 0.0
        %v3680 = vmax.f32 %v2562, 0.0
        %v3681 = vmax.f32 %v2713, 0.0
        %v3682 = vmax.f32 %v2715, 0.0
        %v3683 = vmax.f32 %v2866, 0.0
        %v3684 = vmax.f32 %v2868, 0.0
        %v3685 = vmax.f32 %v3019, 0.0
        %v3686 = vmax.f32 %v3021, 0.0
        %v3687 = vmax.f32 %v3172, 0.0
        %v3688 = vmax.f32 %v3174, 0.0
        %v3689 = vmax.f32 %v3325, 0.0
        %v3690 = vmax.f32 %v3327, 0.0
        %v3691 = vmax.f32 %v2260, 0.0
        %v3692 = vmax.f32 %v2262, 0.0
        %v3693 = vmax.f32 %v2413, 0.0
        %v3694 = vmax.f32 %v2415, 0.0
        %v3695 = vmax.f32 %v2566, 0.0
        %v3696 = vmax.f32 %v2568, 0.0
        %v3697 = vmax.f32 %v2719, 0.0
        %v3698 = vmax.f32 %v2721, 0.0
        %v3699 = vmax.f32 %v2872, 0.0
        %v3700 = vmax.f32 %v2874, 0.0
        %v3701 = vmax.f32 %v3025, 0.0
        %v3702 = vmax.f32 %v3027, 0.0
        %v3703 = vmax.f32 %v3178, 0.0
        %v3704 = vmax.f32 %v3180, 0.0
        %v3705 = vmax.f32 %v3331, 0.0
        %v3706 = vmax.f32 %v3333, 0.0
        %v3707 = vmax.f32 %v2264, 0.0
        %v3708 = vmax.f32 %v2266, 0.0
        %v3709 = vmax.f32 %v2417, 0.0
        %v3710 = vmax.f32 %v2419, 0.0
        %v3711 = vmax.f32 %v2570, 0.0
        %v3712 = vmax.f32 %v2572, 0.0
        %v3713 = vmax.f32 %v2723, 0.0
        %v3714 = vmax.f32 %v2725, 0.0
        %v3715 = vmax.f32 %v2876, 0.0
        %v3716 = vmax.f32 %v2878, 0.0
        %v3717 = vmax.f32 %v3029, 0.0
        %v3718 = vmax.f32 %v3031, 0.0
        %v3719 = vmax.f32 %v3182, 0.0
        %v3720 = vmax.f32 %v3184, 0.0
        %v3721 = vmax.f32 %v3335, 0.0
        %v3722 = vmax.f32 %v3337, 0.0
        %v3723 = vpack.c.bf16 %v3355, %v3339
        %v3724 = vpack.c.bf16 %v3356, %v3340
        %v3725 = vpack.c.bf16 %v3357, %v3341
        %v3726 = vpack.c.bf16 %v3358, %v3342
        %v3727 = vpack.c.bf16 %v3359, %v3343
        %v3728 = vpack.c.bf16 %v3360, %v3344
        %v3729 = vpack.c.bf16 %v3361, %v3345
        %v3730 = vpack.c.bf16 %v3362, %v3346
        %v3731 = vpack.c.bf16 %v3363, %v3347
        %v3732 = vpack.c.bf16 %v3364, %v3348
        %v3733 = vpack.c.bf16 %v3365, %v3349
        %v3734 = vpack.c.bf16 %v3366, %v3350
        %v3735 = vpack.c.bf16 %v3367, %v3351
        %v3736 = vpack.c.bf16 %v3368, %v3352
        %v3737 = vpack.c.bf16 %v3369, %v3353
        %v3738 = vpack.c.bf16 %v3370, %v3354
        %v3739 = vpack.c.bf16 %v3387, %v3371
        %v3740 = vpack.c.bf16 %v3388, %v3372
        %v3741 = vpack.c.bf16 %v3389, %v3373
        %v3742 = vpack.c.bf16 %v3390, %v3374
        %v3743 = vpack.c.bf16 %v3391, %v3375
        %v3744 = vpack.c.bf16 %v3392, %v3376
        %v3745 = vpack.c.bf16 %v3393, %v3377
        %v3746 = vpack.c.bf16 %v3394, %v3378
        %v3747 = vpack.c.bf16 %v3395, %v3379
        %v3748 = vpack.c.bf16 %v3396, %v3380
        %v3749 = vpack.c.bf16 %v3397, %v3381
        %v3750 = vpack.c.bf16 %v3398, %v3382
        %v3751 = vpack.c.bf16 %v3399, %v3383
        %v3752 = vpack.c.bf16 %v3400, %v3384
        %v3753 = vpack.c.bf16 %v3401, %v3385
        %v3754 = vpack.c.bf16 %v3402, %v3386
        %v3755 = vpack.c.bf16 %v3419, %v3403
        %v3756 = vpack.c.bf16 %v3420, %v3404
        %v3757 = vpack.c.bf16 %v3421, %v3405
        %v3758 = vpack.c.bf16 %v3422, %v3406
        %v3759 = vpack.c.bf16 %v3423, %v3407
        %v3760 = vpack.c.bf16 %v3424, %v3408
        %v3761 = vpack.c.bf16 %v3425, %v3409
        %v3762 = vpack.c.bf16 %v3426, %v3410
        %v3763 = vpack.c.bf16 %v3427, %v3411
        %v3764 = vpack.c.bf16 %v3428, %v3412
        %v3765 = vpack.c.bf16 %v3429, %v3413
        %v3766 = vpack.c.bf16 %v3430, %v3414
        %v3767 = vpack.c.bf16 %v3431, %v3415
        %v3768 = vpack.c.bf16 %v3432, %v3416
        %v3769 = vpack.c.bf16 %v3433, %v3417
        %v3770 = vpack.c.bf16 %v3434, %v3418
        %v3771 = vpack.c.bf16 %v3451, %v3435
        %v3772 = vpack.c.bf16 %v3452, %v3436
        %v3773 = vpack.c.bf16 %v3453, %v3437
        %v3774 = vpack.c.bf16 %v3454, %v3438
        %v3775 = vpack.c.bf16 %v3455, %v3439
        %v3776 = vpack.c.bf16 %v3456, %v3440
        %v3777 = vpack.c.bf16 %v3457, %v3441
        %v3778 = vpack.c.bf16 %v3458, %v3442
        %v3779 = vpack.c.bf16 %v3459, %v3443
        %v3780 = vpack.c.bf16 %v3460, %v3444
        %v3781 = vpack.c.bf16 %v3461, %v3445
        %v3782 = vpack.c.bf16 %v3462, %v3446
        %v3783 = vpack.c.bf16 %v3463, %v3447
        %v3784 = vpack.c.bf16 %v3464, %v3448
        %v3785 = vpack.c.bf16 %v3465, %v3449
        %v3786 = vpack.c.bf16 %v3466, %v3450
        %v3787 = vpack.c.bf16 %v3483, %v3467
        %v3788 = vpack.c.bf16 %v3484, %v3468
        %v3789 = vpack.c.bf16 %v3485, %v3469
        %v3790 = vpack.c.bf16 %v3486, %v3470
        %v3791 = vpack.c.bf16 %v3487, %v3471
        %v3792 = vpack.c.bf16 %v3488, %v3472
        %v3793 = vpack.c.bf16 %v3489, %v3473
        %v3794 = vpack.c.bf16 %v3490, %v3474
        %v3795 = vpack.c.bf16 %v3491, %v3475
        %v3796 = vpack.c.bf16 %v3492, %v3476
        %v3797 = vpack.c.bf16 %v3493, %v3477
        %v3798 = vpack.c.bf16 %v3494, %v3478
        %v3799 = vpack.c.bf16 %v3495, %v3479
        %v3800 = vpack.c.bf16 %v3496, %v3480
        %v3801 = vpack.c.bf16 %v3497, %v3481
        %v3802 = vpack.c.bf16 %v3498, %v3482
        %v3803 = vpack.c.bf16 %v3515, %v3499
        %v3804 = vpack.c.bf16 %v3516, %v3500
        %v3805 = vpack.c.bf16 %v3517, %v3501
        %v3806 = vpack.c.bf16 %v3518, %v3502
        %v3807 = vpack.c.bf16 %v3519, %v3503
        %v3808 = vpack.c.bf16 %v3520, %v3504
        %v3809 = vpack.c.bf16 %v3521, %v3505
        %v3810 = vpack.c.bf16 %v3522, %v3506
        %v3811 = vpack.c.bf16 %v3523, %v3507
        %v3812 = vpack.c.bf16 %v3524, %v3508
        %v3813 = vpack.c.bf16 %v3525, %v3509
        %v3814 = vpack.c.bf16 %v3526, %v3510
        %v3815 = vpack.c.bf16 %v3527, %v3511
        %v3816 = vpack.c.bf16 %v3528, %v3512
        %v3817 = vpack.c.bf16 %v3529, %v3513
        %v3818 = vpack.c.bf16 %v3530, %v3514
        %v3819 = vpack.c.bf16 %v3547, %v3531
        %v3820 = vpack.c.bf16 %v3548, %v3532
        %v3821 = vpack.c.bf16 %v3549, %v3533
        %v3822 = vpack.c.bf16 %v3550, %v3534
        %v3823 = vpack.c.bf16 %v3551, %v3535
        %v3824 = vpack.c.bf16 %v3552, %v3536
        %v3825 = vpack.c.bf16 %v3553, %v3537
        %v3826 = vpack.c.bf16 %v3554, %v3538
        %v3827 = vpack.c.bf16 %v3555, %v3539
        %v3828 = vpack.c.bf16 %v3556, %v3540
        %v3829 = vpack.c.bf16 %v3557, %v3541
        %v3830 = vpack.c.bf16 %v3558, %v3542
        %v3831 = vpack.c.bf16 %v3559, %v3543
        %v3832 = vpack.c.bf16 %v3560, %v3544
        %v3833 = vpack.c.bf16 %v3561, %v3545
        %v3834 = vpack.c.bf16 %v3562, %v3546
        %v3835 = vpack.c.bf16 %v3579, %v3563
        %v3836 = vpack.c.bf16 %v3580, %v3564
        %v3837 = vpack.c.bf16 %v3581, %v3565
        %v3838 = vpack.c.bf16 %v3582, %v3566
        %v3839 = vpack.c.bf16 %v3583, %v3567
        %v3840 = vpack.c.bf16 %v3584, %v3568
        %v3841 = vpack.c.bf16 %v3585, %v3569
        %v3842 = vpack.c.bf16 %v3586, %v3570
        %v3843 = vpack.c.bf16 %v3587, %v3571
        %v3844 = vpack.c.bf16 %v3588, %v3572
        %v3845 = vpack.c.bf16 %v3589, %v3573
        %v3846 = vpack.c.bf16 %v3590, %v3574
        %v3847 = vpack.c.bf16 %v3591, %v3575
        %v3848 = vpack.c.bf16 %v3592, %v3576
        %v3849 = vpack.c.bf16 %v3593, %v3577
        %v3850 = vpack.c.bf16 %v3594, %v3578
        %v3851 = vpack.c.bf16 %v3611, %v3595
        %v3852 = vpack.c.bf16 %v3612, %v3596
        %v3853 = vpack.c.bf16 %v3613, %v3597
        %v3854 = vpack.c.bf16 %v3614, %v3598
        %v3855 = vpack.c.bf16 %v3615, %v3599
        %v3856 = vpack.c.bf16 %v3616, %v3600
        %v3857 = vpack.c.bf16 %v3617, %v3601
        %v3858 = vpack.c.bf16 %v3618, %v3602
        %v3859 = vpack.c.bf16 %v3619, %v3603
        %v3860 = vpack.c.bf16 %v3620, %v3604
        %v3861 = vpack.c.bf16 %v3621, %v3605
        %v3862 = vpack.c.bf16 %v3622, %v3606
        %v3863 = vpack.c.bf16 %v3623, %v3607
        %v3864 = vpack.c.bf16 %v3624, %v3608
        %v3865 = vpack.c.bf16 %v3625, %v3609
        %v3866 = vpack.c.bf16 %v3626, %v3610
        %v3867 = vpack.c.bf16 %v3643, %v3627
        %v3868 = vpack.c.bf16 %v3644, %v3628
        %v3869 = vpack.c.bf16 %v3645, %v3629
        %v3870 = vpack.c.bf16 %v3646, %v3630
        %v3871 = vpack.c.bf16 %v3647, %v3631
        %v3872 = vpack.c.bf16 %v3648, %v3632
        %v3873 = vpack.c.bf16 %v3649, %v3633
        %v3874 = vpack.c.bf16 %v3650, %v3634
        %v3875 = vpack.c.bf16 %v3651, %v3635
        %v3876 = vpack.c.bf16 %v3652, %v3636
        %v3877 = vpack.c.bf16 %v3653, %v3637
        %v3878 = vpack.c.bf16 %v3654, %v3638
        %v3879 = vpack.c.bf16 %v3655, %v3639
        %v3880 = vpack.c.bf16 %v3656, %v3640
        %v3881 = vpack.c.bf16 %v3657, %v3641
        %v3882 = vpack.c.bf16 %v3658, %v3642
        %v3883 = vpack.c.bf16 %v3675, %v3659
        %v3884 = vpack.c.bf16 %v3676, %v3660
        %v3885 = vpack.c.bf16 %v3677, %v3661
        %v3886 = vpack.c.bf16 %v3678, %v3662
        %v3887 = vpack.c.bf16 %v3679, %v3663
        %v3888 = vpack.c.bf16 %v3680, %v3664
        %v3889 = vpack.c.bf16 %v3681, %v3665
        %v3890 = vpack.c.bf16 %v3682, %v3666
        %v3891 = vpack.c.bf16 %v3683, %v3667
        %v3892 = vpack.c.bf16 %v3684, %v3668
        %v3893 = vpack.c.bf16 %v3685, %v3669
        %v3894 = vpack.c.bf16 %v3686, %v3670
        %v3895 = vpack.c.bf16 %v3687, %v3671
        %v3896 = vpack.c.bf16 %v3688, %v3672
        %v3897 = vpack.c.bf16 %v3689, %v3673
        %v3898 = vpack.c.bf16 %v3690, %v3674
        %v3899 = vpack.c.bf16 %v3707, %v3691
        %v3900 = vpack.c.bf16 %v3708, %v3692
        %v3901 = vpack.c.bf16 %v3709, %v3693
        %v3902 = vpack.c.bf16 %v3710, %v3694
        %v3903 = vpack.c.bf16 %v3711, %v3695
        %v3904 = vpack.c.bf16 %v3712, %v3696
        %v3905 = vpack.c.bf16 %v3713, %v3697
        %v3906 = vpack.c.bf16 %v3714, %v3698
        %v3907 = vpack.c.bf16 %v3715, %v3699
        %v3908 = vpack.c.bf16 %v3716, %v3700
        %v3909 = vpack.c.bf16 %v3717, %v3701
        %v3910 = vpack.c.bf16 %v3718, %v3702
        %v3911 = vpack.c.bf16 %v3719, %v3703
        %v3912 = vpack.c.bf16 %v3720, %v3704
        %v3913 = vpack.c.bf16 %v3721, %v3705
        %v3914 = vpack.c.bf16 %v3722, %v3706
        %v3915 = vld [vmem:[%s3] sm:$0xf]
        %v3916 = vld [vmem:[%s3 + $0x4] sm:$0xf]
        %v3917 = vld [vmem:[%s3 + $0x8] sm:$0x1]
        %v3921 = vunpack.c.l.b16 %v3915
        %v3922 = vunpack.c.l.b16 %v3916
        %v3923 = vunpack.c.l.b16 %v3917
        %v3924 = vpack.c.b16 %v3922, %v3921
        %v3925 = vpack.c.b16 %v3923, %v3923
        %3928 = vmatprep.subr.bf16.mxu0 %v3788
        %3929 = vmatpush1.bf16.msra.mxu0 %v3787
        %3930 = vmatprep.subr.bf16.mxu0 %v3804
        %3931 = vmatpush1.bf16.msra.mxu0 %v3803
        %3932 = vmatprep.subr.bf16.mxu0 %v3820
        %3933 = vmatpush1.bf16.msra.mxu0 %v3819
        %3934 = vmatprep.subr.bf16.mxu0 %v3836
        %3935 = vmatpush1.bf16.msra.mxu0 %v3835
        %3936 = vmatprep.subr.bf16.mxu0 %v3852
        %3937 = vmatpush1.bf16.msra.mxu0 %v3851
        %3938 = vmatprep.subr.bf16.mxu0 %v3868
        %3939 = vmatpush1.bf16.msra.mxu0 %v3867
        %3940 = vmatprep.subr.bf16.mxu0 %v3884
        %3941 = vmatpush1.bf16.msra.mxu0 %v3883
        %3942 = vmatprep.subr.bf16.mxu0 %v3900
        %3943 = vmatpush1.bf16.msra.mxu0 %v3899
        %3944 = vmatprep.subr.bf16.mxu0 0
        %3945 = vmatpush1.bf16.msra.mxu0 0
        %3946 = vmatprep.subr.bf16.mxu0 0
        %3947 = vmatpush1.bf16.msra.mxu0 0
        %3948 = vmatprep.subr.bf16.mxu0 0
        %3949 = vmatpush1.bf16.msra.mxu0 0
        %3950 = vmatprep.subr.bf16.mxu0 0
        %3951 = vmatpush1.bf16.msra.mxu0 0
        %3952 = vmatprep.subr.bf16.mxu0 0
        %3953 = vmatpush1.bf16.msra.mxu0 0
        %3954 = vmatprep.subr.bf16.mxu0 0
        %3955 = vmatpush1.bf16.msra.mxu0 0
        %3956 = vmatprep.subr.bf16.mxu0 0
        %3957 = vmatpush1.bf16.msra.mxu0 0
        %3958 = vmatprep.subr.bf16.mxu0 0
        %3959 = vmatpush1.bf16.msra.mxu0 0
        %3960 = vmatprep.mubr.bf16.mxu0 0
        %3961 = vmatmul.mubr.bf16.gmra.mrb[0].mxu0 %v3924
        %v3962 = vpop.f32.mrb[0].mxu0
        %v3963 = vadd.f32 0.0, %v3962
        %v3964 = vpop.f32.mrb[0].mxu0
        %v3965 = vadd.f32 0.0, %v3964
        %v3966 = vpop.f32.mrb[0].mxu0
        %v3967 = vadd.f32 0.0, %v3966
        %v3968 = vpop.f32.mrb[0].mxu0
        %v3969 = vadd.f32 0.0, %v3968
        %3970 = vmatprep.mubr.bf16.mxu0 0
        %3971 = vmatmul.mubr.bf16.gmra.mrb[0].mxu0 %v3925
        %v3972 = vpop.f32.mrb[0].mxu0
        %v3973 = vadd.f32 0.0, %v3972
        %v3974 = vpop.f32.mrb[0].mxu0
        %v3975 = vadd.f32 0.0, %v3974
        %v3976 = vpop.f32.mrb[0].mxu0
        %v3977 = vpop.f32.mrb[0].mxu0
        %3978 = vdwg.mxu0
        %3979 = vmatprep.subr.bf16.mxu0 %v3790
        %3980 = vmatpush1.bf16.msra.mxu0 %v3789
        %3981 = vmatprep.subr.bf16.mxu0 %v3806
        %3982 = vmatpush1.bf16.msra.mxu0 %v3805
        %3983 = vmatprep.subr.bf16.mxu0 %v3822
        %3984 = vmatpush1.bf16.msra.mxu0 %v3821
        %3985 = vmatprep.subr.bf16.mxu0 %v3838
        %3986 = vmatpush1.bf16.msra.mxu0 %v3837
        %3987 = vmatprep.subr.bf16.mxu0 %v3854
        %3988 = vmatpush1.bf16.msra.mxu0 %v3853
        %3989 = vmatprep.subr.bf16.mxu0 %v3870
        %3990 = vmatpush1.bf16.msra.mxu0 %v3869
        %3991 = vmatprep.subr.bf16.mxu0 %v3886
        %3992 = vmatpush1.bf16.msra.mxu0 %v3885
        %3993 = vmatprep.subr.bf16.mxu0 %v3902
        %3994 = vmatpush1.bf16.msra.mxu0 %v3901
        %3995 = vmatprep.subr.bf16.mxu0 0
        %3996 = vmatpush1.bf16.msra.mxu0 0
        %3997 = vmatprep.subr.bf16.mxu0 0
        %3998 = vmatpush1.bf16.msra.mxu0 0
        %3999 = vmatprep.subr.bf16.mxu0 0
        %4000 = vmatpush1.bf16.msra.mxu0 0
        %4001 = vmatprep.subr.bf16.mxu0 0
        %4002 = vmatpush1.bf16.msra.mxu0 0
        %4003 = vmatprep.subr.bf16.mxu0 0
        %4004 = vmatpush1.bf16.msra.mxu0 0
        %4005 = vmatprep.subr.bf16.mxu0 0
        %4006 = vmatpush1.bf16.msra.mxu0 0
        %4007 = vmatprep.subr.bf16.mxu0 0
        %4008 = vmatpush1.bf16.msra.mxu0 0
        %4009 = vmatprep.subr.bf16.mxu0 0
        %4010 = vmatpush1.bf16.msra.mxu0 0
        %4011 = vmatprep.mubr.bf16.mxu0 0
        %4012 = vmatmul.mubr.bf16.gmra.mrb[0].mxu0 %v3924
        %v4013 = vpop.f32.mrb[0].mxu0
        %v4014 = vadd.f32 0.0, %v4013
        %v4015 = vpop.f32.mrb[0].mxu0
        %v4016 = vadd.f32 0.0, %v4015
        %v4017 = vpop.f32.mrb[0].mxu0
        %v4018 = vadd.f32 0.0, %v4017
        %v4019 = vpop.f32.mrb[0].mxu0
        %v4020 = vadd.f32 0.0, %v4019
        %4021 = vmatprep.mubr.bf16.mxu0 0
        %4022 = vmatmul.mubr.bf16.gmra.mrb[0].mxu0 %v3925
        %v4023 = vpop.f32.mrb[0].mxu0
        %v4024 = vadd.f32 0.0, %v4023
        %v4025 = vpop.f32.mrb[0].mxu0
        %v4026 = vadd.f32 0.0, %v4025
        %v4027 = vpop.f32.mrb[0].mxu0
        %v4028 = vpop.f32.mrb[0].mxu0
        %4029 = vdwg.mxu0
        %4030 = vmatprep.subr.bf16.mxu0 %v3792
        %4031 = vmatpush1.bf16.msra.mxu0 %v3791
        %4032 = vmatprep.subr.bf16.mxu0 %v3808
        %4033 = vmatpush1.bf16.msra.mxu0 %v3807
        %4034 = vmatprep.subr.bf16.mxu0 %v3824
        %4035 = vmatpush1.bf16.msra.mxu0 %v3823
        %4036 = vmatprep.subr.bf16.mxu0 %v3840
        %4037 = vmatpush1.bf16.msra.mxu0 %v3839
        %4038 = vmatprep.subr.bf16.mxu0 %v3856
        %4039 = vmatpush1.bf16.msra.mxu0 %v3855
        %4040 = vmatprep.subr.bf16.mxu0 %v3872
        %4041 = vmatpush1.bf16.msra.mxu0 %v3871
        %4042 = vmatprep.subr.bf16.mxu0 %v3888
        %4043 = vmatpush1.bf16.msra.mxu0 %v3887
        %4044 = vmatprep.subr.bf16.mxu0 %v3904
        %4045 = vmatpush1.bf16.msra.mxu0 %v3903
        %4046 = vmatprep.subr.bf16.mxu0 0
        %4047 = vmatpush1.bf16.msra.mxu0 0
        %4048 = vmatprep.subr.bf16.mxu0 0
        %4049 = vmatpush1.bf16.msra.mxu0 0
        %4050 = vmatprep.subr.bf16.mxu0 0
        %4051 = vmatpush1.bf16.msra.mxu0 0
        %4052 = vmatprep.subr.bf16.mxu0 0
        %4053 = vmatpush1.bf16.msra.mxu0 0
        %4054 = vmatprep.subr.bf16.mxu0 0
        %4055 = vmatpush1.bf16.msra.mxu0 0
        %4056 = vmatprep.subr.bf16.mxu0 0
        %4057 = vmatpush1.bf16.msra.mxu0 0
        %4058 = vmatprep.subr.bf16.mxu0 0
        %4059 = vmatpush1.bf16.msra.mxu0 0
        %4060 = vmatprep.subr.bf16.mxu0 0
        %4061 = vmatpush1.bf16.msra.mxu0 0
        %4062 = vmatprep.mubr.bf16.mxu0 0
        %4063 = vmatmul.mubr.bf16.gmra.mrb[0].mxu0 %v3924
        %v4064 = vpop.f32.mrb[0].mxu0
        %v4065 = vadd.f32 0.0, %v4064
        %v4066 = vpop.f32.mrb[0].mxu0
        %v4067 = vadd.f32 0.0, %v4066
        %v4068 = vpop.f32.mrb[0].mxu0
        %v4069 = vadd.f32 0.0, %v4068
        %v4070 = vpop.f32.mrb[0].mxu0
        %v4071 = vadd.f32 0.0, %v4070
        %4072 = vmatprep.mubr.bf16.mxu0 0
        %4073 = vmatmul.mubr.bf16.gmra.mrb[0].mxu0 %v3925
        %v4074 = vpop.f32.mrb[0].mxu0
        %v4075 = vadd.f32 0.0, %v4074
        %v4076 = vpop.f32.mrb[0].mxu0
        %v4077 = vadd.f32 0.0, %v4076
        %v4078 = vpop.f32.mrb[0].mxu0
        %v4079 = vpop.f32.mrb[0].mxu0
        %4080 = vdwg.mxu0
        %4081 = vmatprep.subr.bf16.mxu0 %v3794
        %4082 = vmatpush1.bf16.msra.mxu0 %v3793
        %4083 = vmatprep.subr.bf16.mxu0 %v3810
        %4084 = vmatpush1.bf16.msra.mxu0 %v3809
        %4085 = vmatprep.subr.bf16.mxu0 %v3826
        %4086 = vmatpush1.bf16.msra.mxu0 %v3825
        %4087 = vmatprep.subr.bf16.mxu0 %v3842
        %4088 = vmatpush1.bf16.msra.mxu0 %v3841
        %4089 = vmatprep.subr.bf16.mxu0 %v3858
        %4090 = vmatpush1.bf16.msra.mxu0 %v3857
        %4091 = vmatprep.subr.bf16.mxu0 %v3874
        %4092 = vmatpush1.bf16.msra.mxu0 %v3873
        %4093 = vmatprep.subr.bf16.mxu0 %v3890
        %4094 = vmatpush1.bf16.msra.mxu0 %v3889
        %4095 = vmatprep.subr.bf16.mxu0 %v3906
        %4096 = vmatpush1.bf16.msra.mxu0 %v3905
        %4097 = vmatprep.subr.bf16.mxu0 0
        %4098 = vmatpush1.bf16.msra.mxu0 0
        %4099 = vmatprep.subr.bf16.mxu0 0
        %4100 = vmatpush1.bf16.msra.mxu0 0
        %4101 = vmatprep.subr.bf16.mxu0 0
        %4102 = vmatpush1.bf16.msra.mxu0 0
        %4103 = vmatprep.subr.bf16.mxu0 0
        %4104 = vmatpush1.bf16.msra.mxu0 0
        %4105 = vmatprep.subr.bf16.mxu0 0
        %4106 = vmatpush1.bf16.msra.mxu0 0
        %4107 = vmatprep.subr.bf16.mxu0 0
        %4108 = vmatpush1.bf16.msra.mxu0 0
        %4109 = vmatprep.subr.bf16.mxu0 0
        %4110 = vmatpush1.bf16.msra.mxu0 0
        %4111 = vmatprep.subr.bf16.mxu0 0
        %4112 = vmatpush1.bf16.msra.mxu0 0
        %4113 = vmatprep.mubr.bf16.mxu0 0
        %4114 = vmatmul.mubr.bf16.gmra.mrb[0].mxu0 %v3924
        %v4115 = vpop.f32.mrb[0].mxu0
        %v4116 = vadd.f32 0.0, %v4115
        %v4117 = vpop.f32.mrb[0].mxu0
        %v4118 = vadd.f32 0.0, %v4117
        %v4119 = vpop.f32.mrb[0].mxu0
        %v4120 = vadd.f32 0.0, %v4119
        %v4121 = vpop.f32.mrb[0].mxu0
        %v4122 = vadd.f32 0.0, %v4121
        %4123 = vmatprep.mubr.bf16.mxu0 0
        %4124 = vmatmul.mubr.bf16.gmra.mrb[0].mxu0 %v3925
        %v4125 = vpop.f32.mrb[0].mxu0
        %v4126 = vadd.f32 0.0, %v4125
        %v4127 = vpop.f32.mrb[0].mxu0
        %v4128 = vadd.f32 0.0, %v4127
        %v4129 = vpop.f32.mrb[0].mxu0
        %v4130 = vpop.f32.mrb[0].mxu0
        %4131 = vdwg.mxu0
        %4132 = vmatprep.subr.bf16.mxu0 %v3796
        %4133 = vmatpush1.bf16.msra.mxu0 %v3795
        %4134 = vmatprep.subr.bf16.mxu0 %v3812
        %4135 = vmatpush1.bf16.msra.mxu0 %v3811
        %4136 = vmatprep.subr.bf16.mxu0 %v3828
        %4137 = vmatpush1.bf16.msra.mxu0 %v3827
        %4138 = vmatprep.subr.bf16.mxu0 %v3844
        %4139 = vmatpush1.bf16.msra.mxu0 %v3843
        %4140 = vmatprep.subr.bf16.mxu0 %v3860
        %4141 = vmatpush1.bf16.msra.mxu0 %v3859
        %4142 = vmatprep.subr.bf16.mxu0 %v3876
        %4143 = vmatpush1.bf16.msra.mxu0 %v3875
        %4144 = vmatprep.subr.bf16.mxu0 %v3892
        %4145 = vmatpush1.bf16.msra.mxu0 %v3891
        %4146 = vmatprep.subr.bf16.mxu0 %v3908
        %4147 = vmatpush1.bf16.msra.mxu0 %v3907
        %4148 = vmatprep.subr.bf16.mxu0 0
        %4149 = vmatpush1.bf16.msra.mxu0 0
        %4150 = vmatprep.subr.bf16.mxu0 0
        %4151 = vmatpush1.bf16.msra.mxu0 0
        %4152 = vmatprep.subr.bf16.mxu0 0
        %4153 = vmatpush1.bf16.msra.mxu0 0
        %4154 = vmatprep.subr.bf16.mxu0 0
        %4155 = vmatpush1.bf16.msra.mxu0 0
        %4156 = vmatprep.subr.bf16.mxu0 0
        %4157 = vmatpush1.bf16.msra.mxu0 0
        %4158 = vmatprep.subr.bf16.mxu0 0
        %4159 = vmatpush1.bf16.msra.mxu0 0
        %4160 = vmatprep.subr.bf16.mxu0 0
        %4161 = vmatpush1.bf16.msra.mxu0 0
        %4162 = vmatprep.subr.bf16.mxu0 0
        %4163 = vmatpush1.bf16.msra.mxu0 0
        %4164 = vmatprep.mubr.bf16.mxu0 0
        %4165 = vmatmul.mubr.bf16.gmra.mrb[0].mxu0 %v3924
        %v4166 = vpop.f32.mrb[0].mxu0
        %v4167 = vadd.f32 0.0, %v4166
        %v4168 = vpop.f32.mrb[0].mxu0
        %v4169 = vadd.f32 0.0, %v4168
        %v4170 = vpop.f32.mrb[0].mxu0
        %v4171 = vadd.f32 0.0, %v4170
        %v4172 = vpop.f32.mrb[0].mxu0
        %v4173 = vadd.f32 0.0, %v4172
        %4174 = vmatprep.mubr.bf16.mxu0 0
        %4175 = vmatmul.mubr.bf16.gmra.mrb[0].mxu0 %v3925
        %v4176 = vpop.f32.mrb[0].mxu0
        %v4177 = vadd.f32 0.0, %v4176
        %v4178 = vpop.f32.mrb[0].mxu0
        %v4179 = vadd.f32 0.0, %v4178
        %v4180 = vpop.f32.mrb[0].mxu0
        %v4181 = vpop.f32.mrb[0].mxu0
        %4182 = vdwg.mxu0
        %4183 = vmatprep.subr.bf16.mxu0 %v3798
        %4184 = vmatpush1.bf16.msra.mxu0 %v3797
        %4185 = vmatprep.subr.bf16.mxu0 %v3814
        %4186 = vmatpush1.bf16.msra.mxu0 %v3813
        %4187 = vmatprep.subr.bf16.mxu0 %v3830
        %4188 = vmatpush1.bf16.msra.mxu0 %v3829
        %4189 = vmatprep.subr.bf16.mxu0 %v3846
        %4190 = vmatpush1.bf16.msra.mxu0 %v3845
        %4191 = vmatprep.subr.bf16.mxu0 %v3862
        %4192 = vmatpush1.bf16.msra.mxu0 %v3861
        %4193 = vmatprep.subr.bf16.mxu0 %v3878
        %4194 = vmatpush1.bf16.msra.mxu0 %v3877
        %4195 = vmatprep.subr.bf16.mxu0 %v3894
        %4196 = vmatpush1.bf16.msra.mxu0 %v3893
        %4197 = vmatprep.subr.bf16.mxu0 %v3910
        %4198 = vmatpush1.bf16.msra.mxu0 %v3909
        %4199 = vmatprep.subr.bf16.mxu0 0
        %4200 = vmatpush1.bf16.msra.mxu0 0
        %4201 = vmatprep.subr.bf16.mxu0 0
        %4202 = vmatpush1.bf16.msra.mxu0 0
        %4203 = vmatprep.subr.bf16.mxu0 0
        %4204 = vmatpush1.bf16.msra.mxu0 0
        %4205 = vmatprep.subr.bf16.mxu0 0
        %4206 = vmatpush1.bf16.msra.mxu0 0
        %4207 = vmatprep.subr.bf16.mxu0 0
        %4208 = vmatpush1.bf16.msra.mxu0 0
        %4209 = vmatprep.subr.bf16.mxu0 0
        %4210 = vmatpush1.bf16.msra.mxu0 0
        %4211 = vmatprep.subr.bf16.mxu0 0
        %4212 = vmatpush1.bf16.msra.mxu0 0
        %4213 = vmatprep.subr.bf16.mxu0 0
        %4214 = vmatpush1.bf16.msra.mxu0 0
        %4215 = vmatprep.mubr.bf16.mxu0 0
        %4216 = vmatmul.mubr.bf16.gmra.mrb[0].mxu0 %v3924
        %v4217 = vpop.f32.mrb[0].mxu0
        %v4218 = vadd.f32 0.0, %v4217
        %v4219 = vpop.f32.mrb[0].mxu0
        %v4220 = vadd.f32 0.0, %v4219
        %v4221 = vpop.f32.mrb[0].mxu0
        %v4222 = vadd.f32 0.0, %v4221
        %v4223 = vpop.f32.mrb[0].mxu0
        %v4224 = vadd.f32 0.0, %v4223
        %4225 = vmatprep.mubr.bf16.mxu0 0
        %4226 = vmatmul.mubr.bf16.gmra.mrb[0].mxu0 %v3925
        %v4227 = vpop.f32.mrb[0].mxu0
        %v4228 = vadd.f32 0.0, %v4227
        %v4229 = vpop.f32.mrb[0].mxu0
        %v4230 = vadd.f32 0.0, %v4229
        %v4231 = vpop.f32.mrb[0].mxu0
        %v4232 = vpop.f32.mrb[0].mxu0
        %4233 = vdwg.mxu0
        %4234 = vmatprep.subr.bf16.mxu0 %v3800
        %4235 = vmatpush1.bf16.msra.mxu0 %v3799
        %4236 = vmatprep.subr.bf16.mxu0 %v3816
        %4237 = vmatpush1.bf16.msra.mxu0 %v3815
        %4238 = vmatprep.subr.bf16.mxu0 %v3832
        %4239 = vmatpush1.bf16.msra.mxu0 %v3831
        %4240 = vmatprep.subr.bf16.mxu0 %v3848
        %4241 = vmatpush1.bf16.msra.mxu0 %v3847
        %4242 = vmatprep.subr.bf16.mxu0 %v3864
        %4243 = vmatpush1.bf16.msra.mxu0 %v3863
        %4244 = vmatprep.subr.bf16.mxu0 %v3880
        %4245 = vmatpush1.bf16.msra.mxu0 %v3879
        %4246 = vmatprep.subr.bf16.mxu0 %v3896
        %4247 = vmatpush1.bf16.msra.mxu0 %v3895
        %4248 = vmatprep.subr.bf16.mxu0 %v3912
        %4249 = vmatpush1.bf16.msra.mxu0 %v3911
        %4250 = vmatprep.subr.bf16.mxu0 0
        %4251 = vmatpush1.bf16.msra.mxu0 0
        %4252 = vmatprep.subr.bf16.mxu0 0
        %4253 = vmatpush1.bf16.msra.mxu0 0
        %4254 = vmatprep.subr.bf16.mxu0 0
        %4255 = vmatpush1.bf16.msra.mxu0 0
        %4256 = vmatprep.subr.bf16.mxu0 0
        %4257 = vmatpush1.bf16.msra.mxu0 0
        %4258 = vmatprep.subr.bf16.mxu0 0
        %4259 = vmatpush1.bf16.msra.mxu0 0
        %4260 = vmatprep.subr.bf16.mxu0 0
        %4261 = vmatpush1.bf16.msra.mxu0 0
        %4262 = vmatprep.subr.bf16.mxu0 0
        %4263 = vmatpush1.bf16.msra.mxu0 0
        %4264 = vmatprep.subr.bf16.mxu0 0
        %4265 = vmatpush1.bf16.msra.mxu0 0
        %4266 = vmatprep.mubr.bf16.mxu0 0
        %4267 = vmatmul.mubr.bf16.gmra.mrb[0].mxu0 %v3924
        %v4268 = vpop.f32.mrb[0].mxu0
        %v4269 = vadd.f32 0.0, %v4268
        %v4270 = vpop.f32.mrb[0].mxu0
        %v4271 = vadd.f32 0.0, %v4270
        %v4272 = vpop.f32.mrb[0].mxu0
        %v4273 = vadd.f32 0.0, %v4272
        %v4274 = vpop.f32.mrb[0].mxu0
        %v4275 = vadd.f32 0.0, %v4274
        %4276 = vmatprep.mubr.bf16.mxu0 0
        %4277 = vmatmul.mubr.bf16.gmra.mrb[0].mxu0 %v3925
        %v4278 = vpop.f32.mrb[0].mxu0
        %v4279 = vadd.f32 0.0, %v4278
        %v4280 = vpop.f32.mrb[0].mxu0
        %v4281 = vadd.f32 0.0, %v4280
        %v4282 = vpop.f32.mrb[0].mxu0
        %v4283 = vpop.f32.mrb[0].mxu0
        %4284 = vdwg.mxu0
        %4285 = vmatprep.subr.bf16.mxu0 %v3802
        %4286 = vmatpush1.bf16.msra.mxu0 %v3801
        %4287 = vmatprep.subr.bf16.mxu0 %v3818
        %4288 = vmatpush1.bf16.msra.mxu0 %v3817
        %4289 = vmatprep.subr.bf16.mxu0 %v3834
        %4290 = vmatpush1.bf16.msra.mxu0 %v3833
        %4291 = vmatprep.subr.bf16.mxu0 %v3850
        %4292 = vmatpush1.bf16.msra.mxu0 %v3849
        %4293 = vmatprep.subr.bf16.mxu0 %v3866
        %4294 = vmatpush1.bf16.msra.mxu0 %v3865
        %4295 = vmatprep.subr.bf16.mxu0 %v3882
        %4296 = vmatpush1.bf16.msra.mxu0 %v3881
        %4297 = vmatprep.subr.bf16.mxu0 %v3898
        %4298 = vmatpush1.bf16.msra.mxu0 %v3897
        %4299 = vmatprep.subr.bf16.mxu0 %v3914
        %4300 = vmatpush1.bf16.msra.mxu0 %v3913
        %4301 = vmatprep.subr.bf16.mxu0 0
        %4302 = vmatpush1.bf16.msra.mxu0 0
        %4303 = vmatprep.subr.bf16.mxu0 0
        %4304 = vmatpush1.bf16.msra.mxu0 0
        %4305 = vmatprep.subr.bf16.mxu0 0
        %4306 = vmatpush1.bf16.msra.mxu0 0
        %4307 = vmatprep.subr.bf16.mxu0 0
        %4308 = vmatpush1.bf16.msra.mxu0 0
        %4309 = vmatprep.subr.bf16.mxu0 0
        %4310 = vmatpush1.bf16.msra.mxu0 0
        %4311 = vmatprep.subr.bf16.mxu0 0
        %4312 = vmatpush1.bf16.msra.mxu0 0
        %4313 = vmatprep.subr.bf16.mxu0 0
        %4314 = vmatpush1.bf16.msra.mxu0 0
        %4315 = vmatprep.subr.bf16.mxu0 0
        %4316 = vmatpush1.bf16.msra.mxu0 0
        %4317 = vmatprep.mubr.bf16.mxu0 0
        %4318 = vmatmul.mubr.bf16.gmra.mrb[0].mxu0 %v3924
        %v4319 = vpop.f32.mrb[0].mxu0
        %v4320 = vadd.f32 0.0, %v4319
        %v4321 = vpop.f32.mrb[0].mxu0
        %v4322 = vadd.f32 0.0, %v4321
        %v4323 = vpop.f32.mrb[0].mxu0
        %v4324 = vadd.f32 0.0, %v4323
        %v4325 = vpop.f32.mrb[0].mxu0
        %v4326 = vadd.f32 0.0, %v4325
        %4327 = vmatprep.mubr.bf16.mxu0 0
        %4328 = vmatmul.mubr.bf16.gmra.mrb[0].mxu0 %v3925
        %v4329 = vpop.f32.mrb[0].mxu0
        %v4330 = vadd.f32 0.0, %v4329
        %v4331 = vpop.f32.mrb[0].mxu0
        %v4332 = vadd.f32 0.0, %v4331
        %v4333 = vpop.f32.mrb[0].mxu0
        %v4334 = vpop.f32.mrb[0].mxu0
        %4335 = vdwg.mxu0
        %v4336 = vmul.f32 %v3963, 1.442695
        %v4337 = vpow.pop %v4336
        %v4338 = vmul.f32 %v3965, 1.442695
        %v4339 = vpow.pop %v4338
        %v4340 = vmul.f32 %v4014, 1.442695
        %v4341 = vpow.pop %v4340
        %v4342 = vmul.f32 %v4016, 1.442695
        %v4343 = vpow.pop %v4342
        %v4344 = vmul.f32 %v4065, 1.442695
        %v4345 = vpow.pop %v4344
        %v4346 = vmul.f32 %v4067, 1.442695
        %v4347 = vpow.pop %v4346
        %v4348 = vmul.f32 %v4116, 1.442695
        %v4349 = vpow.pop %v4348
        %v4350 = vmul.f32 %v4118, 1.442695
        %v4351 = vpow.pop %v4350
        %v4352 = vmul.f32 %v4167, 1.442695
        %v4353 = vpow.pop %v4352
        %v4354 = vmul.f32 %v4169, 1.442695
        %v4355 = vpow.pop %v4354
        %v4356 = vmul.f32 %v4218, 1.442695
        %v4357 = vpow.pop %v4356
        %v4358 = vmul.f32 %v4220, 1.442695
        %v4359 = vpow.pop %v4358
        %v4360 = vmul.f32 %v4269, 1.442695
        %v4361 = vpow.pop %v4360
        %v4362 = vmul.f32 %v4271, 1.442695
        %v4363 = vpow.pop %v4362
        %v4364 = vmul.f32 %v4320, 1.442695
        %v4365 = vpow.pop %v4364
        %v4366 = vmul.f32 %v4322, 1.442695
        %v4367 = vpow.pop %v4366
        %v4368 = vxor.u32 %v3973, 2147483648
        %v4369 = vxor.u32 %v3975, 2147483648
        %v4370 = vxor.u32 %v4024, 2147483648
        %v4371 = vxor.u32 %v4026, 2147483648
        %v4372 = vxor.u32 %v4075, 2147483648
        %v4373 = vxor.u32 %v4077, 2147483648
        %v4374 = vxor.u32 %v4126, 2147483648
        %v4375 = vxor.u32 %v4128, 2147483648
        %v4376 = vxor.u32 %v4177, 2147483648
        %v4377 = vxor.u32 %v4179, 2147483648
        %v4378 = vxor.u32 %v4228, 2147483648
        %v4379 = vxor.u32 %v4230, 2147483648
        %v4380 = vxor.u32 %v4279, 2147483648
        %v4381 = vxor.u32 %v4281, 2147483648
        %v4382 = vxor.u32 %v4330, 2147483648
        %v4383 = vxor.u32 %v4332, 2147483648
        %v4384 = vmul.f32 %v4368, 1.442695
        %v4385 = vpow.pop %v4384
        %v4386 = vmul.f32 %v4369, 1.442695
        %v4387 = vpow.pop %v4386
        %v4388 = vmul.f32 %v4370, 1.442695
        %v4389 = vpow.pop %v4388
        %v4390 = vmul.f32 %v4371, 1.442695
        %v4391 = vpow.pop %v4390
        %v4392 = vmul.f32 %v4372, 1.442695
        %v4393 = vpow.pop %v4392
        %v4394 = vmul.f32 %v4373, 1.442695
        %v4395 = vpow.pop %v4394
        %v4396 = vmul.f32 %v4374, 1.442695
        %v4397 = vpow.pop %v4396
        %v4398 = vmul.f32 %v4375, 1.442695
        %v4399 = vpow.pop %v4398
        %v4400 = vmul.f32 %v4376, 1.442695
        %v4401 = vpow.pop %v4400
        %v4402 = vmul.f32 %v4377, 1.442695
        %v4403 = vpow.pop %v4402
        %v4404 = vmul.f32 %v4378, 1.442695
        %v4405 = vpow.pop %v4404
        %v4406 = vmul.f32 %v4379, 1.442695
        %v4407 = vpow.pop %v4406
        %v4408 = vmul.f32 %v4380, 1.442695
        %v4409 = vpow.pop %v4408
        %v4410 = vmul.f32 %v4381, 1.442695
        %v4411 = vpow.pop %v4410
        %v4412 = vmul.f32 %v4382, 1.442695
        %v4413 = vpow.pop %v4412
        %v4414 = vmul.f32 %v4383, 1.442695
        %v4415 = vpow.pop %v4414
        %v4416 = vadd.f32 %v4385, 1.0
        %v4417 = vadd.f32 %v4387, 1.0
        %v4418 = vadd.f32 %v4389, 1.0
        %v4419 = vadd.f32 %v4391, 1.0
        %v4420 = vadd.f32 %v4393, 1.0
        %v4421 = vadd.f32 %v4395, 1.0
        %v4422 = vadd.f32 %v4397, 1.0
        %v4423 = vadd.f32 %v4399, 1.0
        %v4424 = vadd.f32 %v4401, 1.0
        %v4425 = vadd.f32 %v4403, 1.0
        %v4426 = vadd.f32 %v4405, 1.0
        %v4427 = vadd.f32 %v4407, 1.0
        %v4428 = vadd.f32 %v4409, 1.0
        %v4429 = vadd.f32 %v4411, 1.0
        %v4430 = vadd.f32 %v4413, 1.0
        %v4431 = vadd.f32 %v4415, 1.0
        %v4432 = vrcp.pop %v4416
        %v4433 = vmul.f32 1.0, %v4432
        %v4434 = vrcp.pop %v4417
        %v4435 = vmul.f32 1.0, %v4434
        %v4436 = vrcp.pop %v4418
        %v4437 = vmul.f32 1.0, %v4436
        %v4438 = vrcp.pop %v4419
        %v4439 = vmul.f32 1.0, %v4438
        %v4440 = vrcp.pop %v4420
        %v4441 = vmul.f32 1.0, %v4440
        %v4442 = vrcp.pop %v4421
        %v4443 = vmul.f32 1.0, %v4442
        %v4444 = vrcp.pop %v4422
        %v4445 = vmul.f32 1.0, %v4444
        %v4446 = vrcp.pop %v4423
        %v4447 = vmul.f32 1.0, %v4446
        %v4448 = vrcp.pop %v4424
        %v4449 = vmul.f32 1.0, %v4448
        %v4450 = vrcp.pop %v4425
        %v4451 = vmul.f32 1.0, %v4450
        %v4452 = vrcp.pop %v4426
        %v4453 = vmul.f32 1.0, %v4452
        %v4454 = vrcp.pop %v4427
        %v4455 = vmul.f32 1.0, %v4454
        %v4456 = vrcp.pop %v4428
        %v4457 = vmul.f32 1.0, %v4456
        %v4458 = vrcp.pop %v4429
        %v4459 = vmul.f32 1.0, %v4458
        %v4460 = vrcp.pop %v4430
        %v4461 = vmul.f32 1.0, %v4460
        %v4462 = vrcp.pop %v4431
        %v4463 = vmul.f32 1.0, %v4462
        %v4464 = vpack.c.bf16 %v3967, %v3963
        %v4465 = vpack.c.bf16 %v3969, %v3965
        %v4466 = vpack.c.bf16 %v4018, %v4014
        %v4467 = vpack.c.bf16 %v4020, %v4016
        %v4468 = vpack.c.bf16 %v4069, %v4065
        %v4469 = vpack.c.bf16 %v4071, %v4067
        %v4470 = vpack.c.bf16 %v4120, %v4116
        %v4471 = vpack.c.bf16 %v4122, %v4118
        %v4472 = vpack.c.bf16 %v4171, %v4167
        %v4473 = vpack.c.bf16 %v4173, %v4169
        %v4474 = vpack.c.bf16 %v4222, %v4218
        %v4475 = vpack.c.bf16 %v4224, %v4220
        %v4476 = vpack.c.bf16 %v4273, %v4269
        %v4477 = vpack.c.bf16 %v4275, %v4271
        %v4478 = vpack.c.bf16 %v4324, %v4320
        %v4479 = vpack.c.bf16 %v4326, %v4322
        %v4480 = vld [vmem:[%s4] sm:$0xf]
        %v4481 = vld [vmem:[%s4 + $0x4] sm:$0xf]
        %v4482 = vld [vmem:[%s4 + $0x8] sm:$0xf]
        %v4483 = vld [vmem:[%s4 + $0xc] sm:$0xf]
        %v4484 = vld [vmem:[%s4 + $0x10] sm:$0xf]
        %v4485 = vld [vmem:[%s4 + $0x14] sm:$0xf]
        %v4486 = vld [vmem:[%s4 + $0x18] sm:$0xf]
        %v4487 = vld [vmem:[%s4 + $0x1c] sm:$0xf]
        %v4496 = vunpack.c.l.b16 %v4480
        %v4497 = vunpack.c.l.b16 %v4481
        %v4498 = vunpack.c.l.b16 %v4482
        %v4499 = vunpack.c.l.b16 %v4483
        %v4500 = vunpack.c.l.b16 %v4484
        %v4501 = vunpack.c.l.b16 %v4485
        %v4502 = vunpack.c.l.b16 %v4486
        %v4503 = vunpack.c.l.b16 %v4487
        %v4504 = vpack.c.b16 %v4497, %v4496
        %v4505 = vpack.c.b16 %v4499, %v4498
        %v4506 = vpack.c.b16 %v4501, %v4500
        %v4507 = vpack.c.b16 %v4503, %v4502
        %vm4508 = vcmask 654336
        %v4510 = vsel %vm4508, %v4504, 0
        %v4513 = vsel %vm4508, %v4505, 0
        %v4516 = vsel %vm4508, %v4506, 0
        %v4519 = vsel %vm4508, %v4507, 0
        %4521 = vmatprep.subr.bf16.mxu0 %v3724
        %4522 = vmatpush1.bf16.msra.mxu0 %v3723
        %4523 = vmatprep.subr.bf16.mxu0 %v3740
        %4524 = vmatpush1.bf16.msra.mxu0 %v3739
        %4525 = vmatprep.subr.bf16.mxu0 %v3756
        %4526 = vmatpush1.bf16.msra.mxu0 %v3755
        %4527 = vmatprep.subr.bf16.mxu0 %v3772
        %4528 = vmatpush1.bf16.msra.mxu0 %v3771
        %4529 = vmatprep.subr.bf16.mxu0 %v4465
        %4530 = vmatpush1.bf16.msra.mxu0 %v4464
        %4531 = vmatprep.subr.bf16.mxu0 0
        %4532 = vmatpush1.bf16.msra.mxu0 0
        %4533 = vmatprep.subr.bf16.mxu0 0
        %4534 = vmatpush1.bf16.msra.mxu0 0
        %4535 = vmatprep.subr.bf16.mxu0 0
        %4536 = vmatpush1.bf16.msra.mxu0 0
        %4537 = vmatprep.subr.bf16.mxu0 0
        %4538 = vmatpush1.bf16.msra.mxu0 0
        %4539 = vmatprep.subr.bf16.mxu0 0
        %4540 = vmatpush1.bf16.msra.mxu0 0
        %4541 = vmatprep.subr.bf16.mxu0 0
        %4542 = vmatpush1.bf16.msra.mxu0 0
        %4543 = vmatprep.subr.bf16.mxu0 0
        %4544 = vmatpush1.bf16.msra.mxu0 0
        %4545 = vmatprep.subr.bf16.mxu0 0
        %4546 = vmatpush1.bf16.msra.mxu0 0
        %4547 = vmatprep.subr.bf16.mxu0 0
        %4548 = vmatpush1.bf16.msra.mxu0 0
        %4549 = vmatprep.subr.bf16.mxu0 0
        %4550 = vmatpush1.bf16.msra.mxu0 0
        %4551 = vmatprep.subr.bf16.mxu0 0
        %4552 = vmatpush1.bf16.msra.mxu0 0
        %4553 = vmatprep.mubr.bf16.mxu0 0
        %4554 = vmatmul.mubr.bf16.gmra.mrb[0].mxu0 %v4510
        %v4555 = vpop.f32.mrb[0].mxu0
        %v4556 = vadd.f32 0.0, %v4555
        %v4557 = vpop.f32.mrb[0].mxu0
        %v4558 = vadd.f32 0.0, %v4557
        %v4559 = vpop.f32.mrb[0].mxu0
        %v4560 = vadd.f32 0.0, %v4559
        %v4561 = vpop.f32.mrb[0].mxu0
        %v4562 = vadd.f32 0.0, %v4561
        %4563 = vmatprep.mubr.bf16.mxu0 0
        %4564 = vmatmul.mubr.bf16.gmra.mrb[0].mxu0 %v4513
        %v4565 = vpop.f32.mrb[0].mxu0
        %v4566 = vadd.f32 0.0, %v4565
        %v4567 = vpop.f32.mrb[0].mxu0
        %v4568 = vadd.f32 0.0, %v4567
        %v4569 = vpop.f32.mrb[0].mxu0
        %v4570 = vadd.f32 0.0, %v4569
        %v4571 = vpop.f32.mrb[0].mxu0
        %v4572 = vadd.f32 0.0, %v4571
        %4573 = vmatprep.mubr.bf16.mxu0 0
        %4574 = vmatmul.mubr.bf16.gmra.mrb[0].mxu0 %v4516
        %v4575 = vpop.f32.mrb[0].mxu0
        %v4576 = vadd.f32 0.0, %v4575
        %v4577 = vpop.f32.mrb[0].mxu0
        %v4578 = vadd.f32 0.0, %v4577
        %v4579 = vpop.f32.mrb[0].mxu0
        %v4580 = vadd.f32 0.0, %v4579
        %v4581 = vpop.f32.mrb[0].mxu0
        %v4582 = vadd.f32 0.0, %v4581
        %4583 = vmatprep.mubr.bf16.mxu0 0
        %4584 = vmatmul.mubr.bf16.gmra.mrb[0].mxu0 %v4519
        %v4585 = vpop.f32.mrb[0].mxu0
        %v4586 = vadd.f32 0.0, %v4585
        %v4587 = vpop.f32.mrb[0].mxu0
        %v4588 = vadd.f32 0.0, %v4587
        %v4589 = vpop.f32.mrb[0].mxu0
        %v4590 = vadd.f32 0.0, %v4589
        %v4591 = vpop.f32.mrb[0].mxu0
        %v4592 = vadd.f32 0.0, %v4591
        %4593 = vdwg.mxu0
        %4594 = vmatprep.subr.bf16.mxu0 %v3726
        %4595 = vmatpush1.bf16.msra.mxu0 %v3725
        %4596 = vmatprep.subr.bf16.mxu0 %v3742
        %4597 = vmatpush1.bf16.msra.mxu0 %v3741
        %4598 = vmatprep.subr.bf16.mxu0 %v3758
        %4599 = vmatpush1.bf16.msra.mxu0 %v3757
        %4600 = vmatprep.subr.bf16.mxu0 %v3774
        %4601 = vmatpush1.bf16.msra.mxu0 %v3773
        %4602 = vmatprep.subr.bf16.mxu0 %v4467
        %4603 = vmatpush1.bf16.msra.mxu0 %v4466
        %4604 = vmatprep.subr.bf16.mxu0 0
        %4605 = vmatpush1.bf16.msra.mxu0 0
        %4606 = vmatprep.subr.bf16.mxu0 0
        %4607 = vmatpush1.bf16.msra.mxu0 0
        %4608 = vmatprep.subr.bf16.mxu0 0
        %4609 = vmatpush1.bf16.msra.mxu0 0
        %4610 = vmatprep.subr.bf16.mxu0 0
        %4611 = vmatpush1.bf16.msra.mxu0 0
        %4612 = vmatprep.subr.bf16.mxu0 0
        %4613 = vmatpush1.bf16.msra.mxu0 0
        %4614 = vmatprep.subr.bf16.mxu0 0
        %4615 = vmatpush1.bf16.msra.mxu0 0
        %4616 = vmatprep.subr.bf16.mxu0 0
        %4617 = vmatpush1.bf16.msra.mxu0 0
        %4618 = vmatprep.subr.bf16.mxu0 0
        %4619 = vmatpush1.bf16.msra.mxu0 0
        %4620 = vmatprep.subr.bf16.mxu0 0
        %4621 = vmatpush1.bf16.msra.mxu0 0
        %4622 = vmatprep.subr.bf16.mxu0 0
        %4623 = vmatpush1.bf16.msra.mxu0 0
        %4624 = vmatprep.subr.bf16.mxu0 0
        %4625 = vmatpush1.bf16.msra.mxu0 0
        %4626 = vmatprep.mubr.bf16.mxu0 0
        %4627 = vmatmul.mubr.bf16.gmra.mrb[0].mxu0 %v4510
        %v4628 = vpop.f32.mrb[0].mxu0
        %v4629 = vadd.f32 0.0, %v4628
        %v4630 = vpop.f32.mrb[0].mxu0
        %v4631 = vadd.f32 0.0, %v4630
        %v4632 = vpop.f32.mrb[0].mxu0
        %v4633 = vadd.f32 0.0, %v4632
        %v4634 = vpop.f32.mrb[0].mxu0
        %v4635 = vadd.f32 0.0, %v4634
        %4636 = vmatprep.mubr.bf16.mxu0 0
        %4637 = vmatmul.mubr.bf16.gmra.mrb[0].mxu0 %v4513
        %v4638 = vpop.f32.mrb[0].mxu0
        %v4639 = vadd.f32 0.0, %v4638
        %v4640 = vpop.f32.mrb[0].mxu0
        %v4641 = vadd.f32 0.0, %v4640
        %v4642 = vpop.f32.mrb[0].mxu0
        %v4643 = vadd.f32 0.0, %v4642
        %v4644 = vpop.f32.mrb[0].mxu0
        %v4645 = vadd.f32 0.0, %v4644
        %4646 = vmatprep.mubr.bf16.mxu0 0
        %4647 = vmatmul.mubr.bf16.gmra.mrb[0].mxu0 %v4516
        %v4648 = vpop.f32.mrb[0].mxu0
        %v4649 = vadd.f32 0.0, %v4648
        %v4650 = vpop.f32.mrb[0].mxu0
        %v4651 = vadd.f32 0.0, %v4650
        %v4652 = vpop.f32.mrb[0].mxu0
        %v4653 = vadd.f32 0.0, %v4652
        %v4654 = vpop.f32.mrb[0].mxu0
        %v4655 = vadd.f32 0.0, %v4654
        %4656 = vmatprep.mubr.bf16.mxu0 0
        %4657 = vmatmul.mubr.bf16.gmra.mrb[0].mxu0 %v4519
        %v4658 = vpop.f32.mrb[0].mxu0
        %v4659 = vadd.f32 0.0, %v4658
        %v4660 = vpop.f32.mrb[0].mxu0
        %v4661 = vadd.f32 0.0, %v4660
        %v4662 = vpop.f32.mrb[0].mxu0
        %v4663 = vadd.f32 0.0, %v4662
        %v4664 = vpop.f32.mrb[0].mxu0
        %v4665 = vadd.f32 0.0, %v4664
        %4666 = vdwg.mxu0
        %4667 = vmatprep.subr.bf16.mxu0 %v3728
        %4668 = vmatpush1.bf16.msra.mxu0 %v3727
        %4669 = vmatprep.subr.bf16.mxu0 %v3744
        %4670 = vmatpush1.bf16.msra.mxu0 %v3743
        %4671 = vmatprep.subr.bf16.mxu0 %v3760
        %4672 = vmatpush1.bf16.msra.mxu0 %v3759
        %4673 = vmatprep.subr.bf16.mxu0 %v3776
        %4674 = vmatpush1.bf16.msra.mxu0 %v3775
        %4675 = vmatprep.subr.bf16.mxu0 %v4469
        %4676 = vmatpush1.bf16.msra.mxu0 %v4468
        %4677 = vmatprep.subr.bf16.mxu0 0
        %4678 = vmatpush1.bf16.msra.mxu0 0
        %4679 = vmatprep.subr.bf16.mxu0 0
        %4680 = vmatpush1.bf16.msra.mxu0 0
        %4681 = vmatprep.subr.bf16.mxu0 0
        %4682 = vmatpush1.bf16.msra.mxu0 0
        %4683 = vmatprep.subr.bf16.mxu0 0
        %4684 = vmatpush1.bf16.msra.mxu0 0
        %4685 = vmatprep.subr.bf16.mxu0 0
        %4686 = vmatpush1.bf16.msra.mxu0 0
        %4687 = vmatprep.subr.bf16.mxu0 0
        %4688 = vmatpush1.bf16.msra.mxu0 0
        %4689 = vmatprep.subr.bf16.mxu0 0
        %4690 = vmatpush1.bf16.msra.mxu0 0
        %4691 = vmatprep.subr.bf16.mxu0 0
        %4692 = vmatpush1.bf16.msra.mxu0 0
        %4693 = vmatprep.subr.bf16.mxu0 0
        %4694 = vmatpush1.bf16.msra.mxu0 0
        %4695 = vmatprep.subr.bf16.mxu0 0
        %4696 = vmatpush1.bf16.msra.mxu0 0
        %4697 = vmatprep.subr.bf16.mxu0 0
        %4698 = vmatpush1.bf16.msra.mxu0 0
        %4699 = vmatprep.mubr.bf16.mxu0 0
        %4700 = vmatmul.mubr.bf16.gmra.mrb[0].mxu0 %v4510
        %v4701 = vpop.f32.mrb[0].mxu0
        %v4702 = vadd.f32 0.0, %v4701
        %v4703 = vpop.f32.mrb[0].mxu0
        %v4704 = vadd.f32 0.0, %v4703
        %v4705 = vpop.f32.mrb[0].mxu0
        %v4706 = vadd.f32 0.0, %v4705
        %v4707 = vpop.f32.mrb[0].mxu0
        %v4708 = vadd.f32 0.0, %v4707
        %4709 = vmatprep.mubr.bf16.mxu0 0
        %4710 = vmatmul.mubr.bf16.gmra.mrb[0].mxu0 %v4513
        %v4711 = vpop.f32.mrb[0].mxu0
        %v4712 = vadd.f32 0.0, %v4711
        %v4713 = vpop.f32.mrb[0].mxu0
        %v4714 = vadd.f32 0.0, %v4713
        %v4715 = vpop.f32.mrb[0].mxu0
        %v4716 = vadd.f32 0.0, %v4715
        %v4717 = vpop.f32.mrb[0].mxu0
        %v4718 = vadd.f32 0.0, %v4717
        %4719 = vmatprep.mubr.bf16.mxu0 0
        %4720 = vmatmul.mubr.bf16.gmra.mrb[0].mxu0 %v4516
        %v4721 = vpop.f32.mrb[0].mxu0
        %v4722 = vadd.f32 0.0, %v4721
        %v4723 = vpop.f32.mrb[0].mxu0
        %v4724 = vadd.f32 0.0, %v4723
        %v4725 = vpop.f32.mrb[0].mxu0
        %v4726 = vadd.f32 0.0, %v4725
        %v4727 = vpop.f32.mrb[0].mxu0
        %v4728 = vadd.f32 0.0, %v4727
        %4729 = vmatprep.mubr.bf16.mxu0 0
        %4730 = vmatmul.mubr.bf16.gmra.mrb[0].mxu0 %v4519
        %v4731 = vpop.f32.mrb[0].mxu0
        %v4732 = vadd.f32 0.0, %v4731
        %v4733 = vpop.f32.mrb[0].mxu0
        %v4734 = vadd.f32 0.0, %v4733
        %v4735 = vpop.f32.mrb[0].mxu0
        %v4736 = vadd.f32 0.0, %v4735
        %v4737 = vpop.f32.mrb[0].mxu0
        %v4738 = vadd.f32 0.0, %v4737
        %4739 = vdwg.mxu0
        %4740 = vmatprep.subr.bf16.mxu0 %v3730
        %4741 = vmatpush1.bf16.msra.mxu0 %v3729
        %4742 = vmatprep.subr.bf16.mxu0 %v3746
        %4743 = vmatpush1.bf16.msra.mxu0 %v3745
        %4744 = vmatprep.subr.bf16.mxu0 %v3762
        %4745 = vmatpush1.bf16.msra.mxu0 %v3761
        %4746 = vmatprep.subr.bf16.mxu0 %v3778
        %4747 = vmatpush1.bf16.msra.mxu0 %v3777
        %4748 = vmatprep.subr.bf16.mxu0 %v4471
        %4749 = vmatpush1.bf16.msra.mxu0 %v4470
        %4750 = vmatprep.subr.bf16.mxu0 0
        %4751 = vmatpush1.bf16.msra.mxu0 0
        %4752 = vmatprep.subr.bf16.mxu0 0
        %4753 = vmatpush1.bf16.msra.mxu0 0
        %4754 = vmatprep.subr.bf16.mxu0 0
        %4755 = vmatpush1.bf16.msra.mxu0 0
        %4756 = vmatprep.subr.bf16.mxu0 0
        %4757 = vmatpush1.bf16.msra.mxu0 0
        %4758 = vmatprep.subr.bf16.mxu0 0
        %4759 = vmatpush1.bf16.msra.mxu0 0
        %4760 = vmatprep.subr.bf16.mxu0 0
        %4761 = vmatpush1.bf16.msra.mxu0 0
        %4762 = vmatprep.subr.bf16.mxu0 0
        %4763 = vmatpush1.bf16.msra.mxu0 0
        %4764 = vmatprep.subr.bf16.mxu0 0
        %4765 = vmatpush1.bf16.msra.mxu0 0
        %4766 = vmatprep.subr.bf16.mxu0 0
        %4767 = vmatpush1.bf16.msra.mxu0 0
        %4768 = vmatprep.subr.bf16.mxu0 0
        %4769 = vmatpush1.bf16.msra.mxu0 0
        %4770 = vmatprep.subr.bf16.mxu0 0
        %4771 = vmatpush1.bf16.msra.mxu0 0
        %4772 = vmatprep.mubr.bf16.mxu0 0
        %4773 = vmatmul.mubr.bf16.gmra.mrb[0].mxu0 %v4510
        %v4774 = vpop.f32.mrb[0].mxu0
        %v4775 = vadd.f32 0.0, %v4774
        %v4776 = vpop.f32.mrb[0].mxu0
        %v4777 = vadd.f32 0.0, %v4776
        %v4778 = vpop.f32.mrb[0].mxu0
        %v4779 = vadd.f32 0.0, %v4778
        %v4780 = vpop.f32.mrb[0].mxu0
        %v4781 = vadd.f32 0.0, %v4780
        %4782 = vmatprep.mubr.bf16.mxu0 0
        %4783 = vmatmul.mubr.bf16.gmra.mrb[0].mxu0 %v4513
        %v4784 = vpop.f32.mrb[0].mxu0
        %v4785 = vadd.f32 0.0, %v4784
        %v4786 = vpop.f32.mrb[0].mxu0
        %v4787 = vadd.f32 0.0, %v4786
        %v4788 = vpop.f32.mrb[0].mxu0
        %v4789 = vadd.f32 0.0, %v4788
        %v4790 = vpop.f32.mrb[0].mxu0
        %v4791 = vadd.f32 0.0, %v4790
        %4792 = vmatprep.mubr.bf16.mxu0 0
        %4793 = vmatmul.mubr.bf16.gmra.mrb[0].mxu0 %v4516
        %v4794 = vpop.f32.mrb[0].mxu0
        %v4795 = vadd.f32 0.0, %v4794
        %v4796 = vpop.f32.mrb[0].mxu0
        %v4797 = vadd.f32 0.0, %v4796
        %v4798 = vpop.f32.mrb[0].mxu0
        %v4799 = vadd.f32 0.0, %v4798
        %v4800 = vpop.f32.mrb[0].mxu0
        %v4801 = vadd.f32 0.0, %v4800
        %4802 = vmatprep.mubr.bf16.mxu0 0
        %4803 = vmatmul.mubr.bf16.gmra.mrb[0].mxu0 %v4519
        %v4804 = vpop.f32.mrb[0].mxu0
        %v4805 = vadd.f32 0.0, %v4804
        %v4806 = vpop.f32.mrb[0].mxu0
        %v4807 = vadd.f32 0.0, %v4806
        %v4808 = vpop.f32.mrb[0].mxu0
        %v4809 = vadd.f32 0.0, %v4808
        %v4810 = vpop.f32.mrb[0].mxu0
        %v4811 = vadd.f32 0.0, %v4810
        %4812 = vdwg.mxu0
        %4813 = vmatprep.subr.bf16.mxu0 %v3732
        %4814 = vmatpush1.bf16.msra.mxu0 %v3731
        %4815 = vmatprep.subr.bf16.mxu0 %v3748
        %4816 = vmatpush1.bf16.msra.mxu0 %v3747
        %4817 = vmatprep.subr.bf16.mxu0 %v3764
        %4818 = vmatpush1.bf16.msra.mxu0 %v3763
        %4819 = vmatprep.subr.bf16.mxu0 %v3780
        %4820 = vmatpush1.bf16.msra.mxu0 %v3779
        %4821 = vmatprep.subr.bf16.mxu0 %v4473
        %4822 = vmatpush1.bf16.msra.mxu0 %v4472
        %4823 = vmatprep.subr.bf16.mxu0 0
        %4824 = vmatpush1.bf16.msra.mxu0 0
        %4825 = vmatprep.subr.bf16.mxu0 0
        %4826 = vmatpush1.bf16.msra.mxu0 0
        %4827 = vmatprep.subr.bf16.mxu0 0
        %4828 = vmatpush1.bf16.msra.mxu0 0
        %4829 = vmatprep.subr.bf16.mxu0 0
        %4830 = vmatpush1.bf16.msra.mxu0 0
        %4831 = vmatprep.subr.bf16.mxu0 0
        %4832 = vmatpush1.bf16.msra.mxu0 0
        %4833 = vmatprep.subr.bf16.mxu0 0
        %4834 = vmatpush1.bf16.msra.mxu0 0
        %4835 = vmatprep.subr.bf16.mxu0 0
        %4836 = vmatpush1.bf16.msra.mxu0 0
        %4837 = vmatprep.subr.bf16.mxu0 0
        %4838 = vmatpush1.bf16.msra.mxu0 0
        %4839 = vmatprep.subr.bf16.mxu0 0
        %4840 = vmatpush1.bf16.msra.mxu0 0
        %4841 = vmatprep.subr.bf16.mxu0 0
        %4842 = vmatpush1.bf16.msra.mxu0 0
        %4843 = vmatprep.subr.bf16.mxu0 0
        %4844 = vmatpush1.bf16.msra.mxu0 0
        %4845 = vmatprep.mubr.bf16.mxu0 0
        %4846 = vmatmul.mubr.bf16.gmra.mrb[0].mxu0 %v4510
        %v4847 = vpop.f32.mrb[0].mxu0
        %v4848 = vadd.f32 0.0, %v4847
        %v4849 = vpop.f32.mrb[0].mxu0
        %v4850 = vadd.f32 0.0, %v4849
        %v4851 = vpop.f32.mrb[0].mxu0
        %v4852 = vadd.f32 0.0, %v4851
        %v4853 = vpop.f32.mrb[0].mxu0
        %v4854 = vadd.f32 0.0, %v4853
        %4855 = vmatprep.mubr.bf16.mxu0 0
        %4856 = vmatmul.mubr.bf16.gmra.mrb[0].mxu0 %v4513
        %v4857 = vpop.f32.mrb[0].mxu0
        %v4858 = vadd.f32 0.0, %v4857
        %v4859 = vpop.f32.mrb[0].mxu0
        %v4860 = vadd.f32 0.0, %v4859
        %v4861 = vpop.f32.mrb[0].mxu0
        %v4862 = vadd.f32 0.0, %v4861
        %v4863 = vpop.f32.mrb[0].mxu0
        %v4864 = vadd.f32 0.0, %v4863
        %4865 = vmatprep.mubr.bf16.mxu0 0
        %4866 = vmatmul.mubr.bf16.gmra.mrb[0].mxu0 %v4516
        %v4867 = vpop.f32.mrb[0].mxu0
        %v4868 = vadd.f32 0.0, %v4867
        %v4869 = vpop.f32.mrb[0].mxu0
        %v4870 = vadd.f32 0.0, %v4869
        %v4871 = vpop.f32.mrb[0].mxu0
        %v4872 = vadd.f32 0.0, %v4871
        %v4873 = vpop.f32.mrb[0].mxu0
        %v4874 = vadd.f32 0.0, %v4873
        %4875 = vmatprep.mubr.bf16.mxu0 0
        %4876 = vmatmul.mubr.bf16.gmra.mrb[0].mxu0 %v4519
        %v4877 = vpop.f32.mrb[0].mxu0
        %v4878 = vadd.f32 0.0, %v4877
        %v4879 = vpop.f32.mrb[0].mxu0
        %v4880 = vadd.f32 0.0, %v4879
        %v4881 = vpop.f32.mrb[0].mxu0
        %v4882 = vadd.f32 0.0, %v4881
        %v4883 = vpop.f32.mrb[0].mxu0
        %v4884 = vadd.f32 0.0, %v4883
        %4885 = vdwg.mxu0
        %4886 = vmatprep.subr.bf16.mxu0 %v3734
        %4887 = vmatpush1.bf16.msra.mxu0 %v3733
        %4888 = vmatprep.subr.bf16.mxu0 %v3750
        %4889 = vmatpush1.bf16.msra.mxu0 %v3749
        %4890 = vmatprep.subr.bf16.mxu0 %v3766
        %4891 = vmatpush1.bf16.msra.mxu0 %v3765
        %4892 = vmatprep.subr.bf16.mxu0 %v3782
        %4893 = vmatpush1.bf16.msra.mxu0 %v3781
        %4894 = vmatprep.subr.bf16.mxu0 %v4475
        %4895 = vmatpush1.bf16.msra.mxu0 %v4474
        %4896 = vmatprep.subr.bf16.mxu0 0
        %4897 = vmatpush1.bf16.msra.mxu0 0
        %4898 = vmatprep.subr.bf16.mxu0 0
        %4899 = vmatpush1.bf16.msra.mxu0 0
        %4900 = vmatprep.subr.bf16.mxu0 0
        %4901 = vmatpush1.bf16.msra.mxu0 0
        %4902 = vmatprep.subr.bf16.mxu0 0
        %4903 = vmatpush1.bf16.msra.mxu0 0
        %4904 = vmatprep.subr.bf16.mxu0 0
        %4905 = vmatpush1.bf16.msra.mxu0 0
        %4906 = vmatprep.subr.bf16.mxu0 0
        %4907 = vmatpush1.bf16.msra.mxu0 0
        %4908 = vmatprep.subr.bf16.mxu0 0
        %4909 = vmatpush1.bf16.msra.mxu0 0
        %4910 = vmatprep.subr.bf16.mxu0 0
        %4911 = vmatpush1.bf16.msra.mxu0 0
        %4912 = vmatprep.subr.bf16.mxu0 0
        %4913 = vmatpush1.bf16.msra.mxu0 0
        %4914 = vmatprep.subr.bf16.mxu0 0
        %4915 = vmatpush1.bf16.msra.mxu0 0
        %4916 = vmatprep.subr.bf16.mxu0 0
        %4917 = vmatpush1.bf16.msra.mxu0 0
        %4918 = vmatprep.mubr.bf16.mxu0 0
        %4919 = vmatmul.mubr.bf16.gmra.mrb[0].mxu0 %v4510
        %v4920 = vpop.f32.mrb[0].mxu0
        %v4921 = vadd.f32 0.0, %v4920
        %v4922 = vpop.f32.mrb[0].mxu0
        %v4923 = vadd.f32 0.0, %v4922
        %v4924 = vpop.f32.mrb[0].mxu0
        %v4925 = vadd.f32 0.0, %v4924
        %v4926 = vpop.f32.mrb[0].mxu0
        %v4927 = vadd.f32 0.0, %v4926
        %4928 = vmatprep.mubr.bf16.mxu0 0
        %4929 = vmatmul.mubr.bf16.gmra.mrb[0].mxu0 %v4513
        %v4930 = vpop.f32.mrb[0].mxu0
        %v4931 = vadd.f32 0.0, %v4930
        %v4932 = vpop.f32.mrb[0].mxu0
        %v4933 = vadd.f32 0.0, %v4932
        %v4934 = vpop.f32.mrb[0].mxu0
        %v4935 = vadd.f32 0.0, %v4934
        %v4936 = vpop.f32.mrb[0].mxu0
        %v4937 = vadd.f32 0.0, %v4936
        %4938 = vmatprep.mubr.bf16.mxu0 0
        %4939 = vmatmul.mubr.bf16.gmra.mrb[0].mxu0 %v4516
        %v4940 = vpop.f32.mrb[0].mxu0
        %v4941 = vadd.f32 0.0, %v4940
        %v4942 = vpop.f32.mrb[0].mxu0
        %v4943 = vadd.f32 0.0, %v4942
        %v4944 = vpop.f32.mrb[0].mxu0
        %v4945 = vadd.f32 0.0, %v4944
        %v4946 = vpop.f32.mrb[0].mxu0
        %v4947 = vadd.f32 0.0, %v4946
        %4948 = vmatprep.mubr.bf16.mxu0 0
        %4949 = vmatmul.mubr.bf16.gmra.mrb[0].mxu0 %v4519
        %v4950 = vpop.f32.mrb[0].mxu0
        %v4951 = vadd.f32 0.0, %v4950
        %v4952 = vpop.f32.mrb[0].mxu0
        %v4953 = vadd.f32 0.0, %v4952
        %v4954 = vpop.f32.mrb[0].mxu0
        %v4955 = vadd.f32 0.0, %v4954
        %v4956 = vpop.f32.mrb[0].mxu0
        %v4957 = vadd.f32 0.0, %v4956
        %4958 = vdwg.mxu0
        %4959 = vmatprep.subr.bf16.mxu0 %v3736
        %4960 = vmatpush1.bf16.msra.mxu0 %v3735
        %4961 = vmatprep.subr.bf16.mxu0 %v3752
        %4962 = vmatpush1.bf16.msra.mxu0 %v3751
        %4963 = vmatprep.subr.bf16.mxu0 %v3768
        %4964 = vmatpush1.bf16.msra.mxu0 %v3767
        %4965 = vmatprep.subr.bf16.mxu0 %v3784
        %4966 = vmatpush1.bf16.msra.mxu0 %v3783
        %4967 = vmatprep.subr.bf16.mxu0 %v4477
        %4968 = vmatpush1.bf16.msra.mxu0 %v4476
        %4969 = vmatprep.subr.bf16.mxu0 0
        %4970 = vmatpush1.bf16.msra.mxu0 0
        %4971 = vmatprep.subr.bf16.mxu0 0
        %4972 = vmatpush1.bf16.msra.mxu0 0
        %4973 = vmatprep.subr.bf16.mxu0 0
        %4974 = vmatpush1.bf16.msra.mxu0 0
        %4975 = vmatprep.subr.bf16.mxu0 0
        %4976 = vmatpush1.bf16.msra.mxu0 0
        %4977 = vmatprep.subr.bf16.mxu0 0
        %4978 = vmatpush1.bf16.msra.mxu0 0
        %4979 = vmatprep.subr.bf16.mxu0 0
        %4980 = vmatpush1.bf16.msra.mxu0 0
        %4981 = vmatprep.subr.bf16.mxu0 0
        %4982 = vmatpush1.bf16.msra.mxu0 0
        %4983 = vmatprep.subr.bf16.mxu0 0
        %4984 = vmatpush1.bf16.msra.mxu0 0
        %4985 = vmatprep.subr.bf16.mxu0 0
        %4986 = vmatpush1.bf16.msra.mxu0 0
        %4987 = vmatprep.subr.bf16.mxu0 0
        %4988 = vmatpush1.bf16.msra.mxu0 0
        %4989 = vmatprep.subr.bf16.mxu0 0
        %4990 = vmatpush1.bf16.msra.mxu0 0
        %4991 = vmatprep.mubr.bf16.mxu0 0
        %4992 = vmatmul.mubr.bf16.gmra.mrb[0].mxu0 %v4510
        %v4993 = vpop.f32.mrb[0].mxu0
        %v4994 = vadd.f32 0.0, %v4993
        %v4995 = vpop.f32.mrb[0].mxu0
        %v4996 = vadd.f32 0.0, %v4995
        %v4997 = vpop.f32.mrb[0].mxu0
        %v4998 = vadd.f32 0.0, %v4997
        %v4999 = vpop.f32.mrb[0].mxu0
        %v5000 = vadd.f32 0.0, %v4999
        %5001 = vmatprep.mubr.bf16.mxu0 0
        %5002 = vmatmul.mubr.bf16.gmra.mrb[0].mxu0 %v4513
        %v5003 = vpop.f32.mrb[0].mxu0
        %v5004 = vadd.f32 0.0, %v5003
        %v5005 = vpop.f32.mrb[0].mxu0
        %v5006 = vadd.f32 0.0, %v5005
        %v5007 = vpop.f32.mrb[0].mxu0
        %v5008 = vadd.f32 0.0, %v5007
        %v5009 = vpop.f32.mrb[0].mxu0
        %v5010 = vadd.f32 0.0, %v5009
        %5011 = vmatprep.mubr.bf16.mxu0 0
        %5012 = vmatmul.mubr.bf16.gmra.mrb[0].mxu0 %v4516
        %v5013 = vpop.f32.mrb[0].mxu0
        %v5014 = vadd.f32 0.0, %v5013
        %v5015 = vpop.f32.mrb[0].mxu0
        %v5016 = vadd.f32 0.0, %v5015
        %v5017 = vpop.f32.mrb[0].mxu0
        %v5018 = vadd.f32 0.0, %v5017
        %v5019 = vpop.f32.mrb[0].mxu0
        %v5020 = vadd.f32 0.0, %v5019
        %5021 = vmatprep.mubr.bf16.mxu0 0
        %5022 = vmatmul.mubr.bf16.gmra.mrb[0].mxu0 %v4519
        %v5023 = vpop.f32.mrb[0].mxu0
        %v5024 = vadd.f32 0.0, %v5023
        %v5025 = vpop.f32.mrb[0].mxu0
        %v5026 = vadd.f32 0.0, %v5025
        %v5027 = vpop.f32.mrb[0].mxu0
        %v5028 = vadd.f32 0.0, %v5027
        %v5029 = vpop.f32.mrb[0].mxu0
        %v5030 = vadd.f32 0.0, %v5029
        %5031 = vdwg.mxu0
        %5032 = vmatprep.subr.bf16.mxu0 %v3738
        %5033 = vmatpush1.bf16.msra.mxu0 %v3737
        %5034 = vmatprep.subr.bf16.mxu0 %v3754
        %5035 = vmatpush1.bf16.msra.mxu0 %v3753
        %5036 = vmatprep.subr.bf16.mxu0 %v3770
        %5037 = vmatpush1.bf16.msra.mxu0 %v3769
        %5038 = vmatprep.subr.bf16.mxu0 %v3786
        %5039 = vmatpush1.bf16.msra.mxu0 %v3785
        %5040 = vmatprep.subr.bf16.mxu0 %v4479
        %5041 = vmatpush1.bf16.msra.mxu0 %v4478
        %5042 = vmatprep.subr.bf16.mxu0 0
        %5043 = vmatpush1.bf16.msra.mxu0 0
        %5044 = vmatprep.subr.bf16.mxu0 0
        %5045 = vmatpush1.bf16.msra.mxu0 0
        %5046 = vmatprep.subr.bf16.mxu0 0
        %5047 = vmatpush1.bf16.msra.mxu0 0
        %5048 = vmatprep.subr.bf16.mxu0 0
        %5049 = vmatpush1.bf16.msra.mxu0 0
        %5050 = vmatprep.subr.bf16.mxu0 0
        %5051 = vmatpush1.bf16.msra.mxu0 0
        %5052 = vmatprep.subr.bf16.mxu0 0
        %5053 = vmatpush1.bf16.msra.mxu0 0
        %5054 = vmatprep.subr.bf16.mxu0 0
        %5055 = vmatpush1.bf16.msra.mxu0 0
        %5056 = vmatprep.subr.bf16.mxu0 0
        %5057 = vmatpush1.bf16.msra.mxu0 0
        %5058 = vmatprep.subr.bf16.mxu0 0
        %5059 = vmatpush1.bf16.msra.mxu0 0
        %5060 = vmatprep.subr.bf16.mxu0 0
        %5061 = vmatpush1.bf16.msra.mxu0 0
        %5062 = vmatprep.subr.bf16.mxu0 0
        %5063 = vmatpush1.bf16.msra.mxu0 0
        %5064 = vmatprep.mubr.bf16.mxu0 0
        %5065 = vmatmul.mubr.bf16.gmra.mrb[0].mxu0 %v4510
        %v5066 = vpop.f32.mrb[0].mxu0
        %v5067 = vadd.f32 0.0, %v5066
        %v5068 = vpop.f32.mrb[0].mxu0
        %v5069 = vadd.f32 0.0, %v5068
        %v5070 = vpop.f32.mrb[0].mxu0
        %v5071 = vadd.f32 0.0, %v5070
        %v5072 = vpop.f32.mrb[0].mxu0
        %v5073 = vadd.f32 0.0, %v5072
        %5074 = vmatprep.mubr.bf16.mxu0 0
        %5075 = vmatmul.mubr.bf16.gmra.mrb[0].mxu0 %v4513
        %v5076 = vpop.f32.mrb[0].mxu0
        %v5077 = vadd.f32 0.0, %v5076
        %v5078 = vpop.f32.mrb[0].mxu0
        %v5079 = vadd.f32 0.0, %v5078
        %v5080 = vpop.f32.mrb[0].mxu0
        %v5081 = vadd.f32 0.0, %v5080
        %v5082 = vpop.f32.mrb[0].mxu0
        %v5083 = vadd.f32 0.0, %v5082
        %5084 = vmatprep.mubr.bf16.mxu0 0
        %5085 = vmatmul.mubr.bf16.gmra.mrb[0].mxu0 %v4516
        %v5086 = vpop.f32.mrb[0].mxu0
        %v5087 = vadd.f32 0.0, %v5086
        %v5088 = vpop.f32.mrb[0].mxu0
        %v5089 = vadd.f32 0.0, %v5088
        %v5090 = vpop.f32.mrb[0].mxu0
        %v5091 = vadd.f32 0.0, %v5090
        %v5092 = vpop.f32.mrb[0].mxu0
        %v5093 = vadd.f32 0.0, %v5092
        %5094 = vmatprep.mubr.bf16.mxu0 0
        %5095 = vmatmul.mubr.bf16.gmra.mrb[0].mxu0 %v4519
        %v5096 = vpop.f32.mrb[0].mxu0
        %v5097 = vadd.f32 0.0, %v5096
        %v5098 = vpop.f32.mrb[0].mxu0
        %v5099 = vadd.f32 0.0, %v5098
        %v5100 = vpop.f32.mrb[0].mxu0
        %v5101 = vadd.f32 0.0, %v5100
        %v5102 = vpop.f32.mrb[0].mxu0
        %v5103 = vadd.f32 0.0, %v5102
        %5104 = vdwg.mxu0
        %v5105 = vmax.f32 %v4556, 0.0
        %v5106 = vmax.f32 %v4558, 0.0
        %v5107 = vmax.f32 %v4629, 0.0
        %v5108 = vmax.f32 %v4631, 0.0
        %v5109 = vmax.f32 %v4702, 0.0
        %v5110 = vmax.f32 %v4704, 0.0
        %v5111 = vmax.f32 %v4775, 0.0
        %v5112 = vmax.f32 %v4777, 0.0
        %v5113 = vmax.f32 %v4848, 0.0
        %v5114 = vmax.f32 %v4850, 0.0
        %v5115 = vmax.f32 %v4921, 0.0
        %v5116 = vmax.f32 %v4923, 0.0
        %v5117 = vmax.f32 %v4994, 0.0
        %v5118 = vmax.f32 %v4996, 0.0
        %v5119 = vmax.f32 %v5067, 0.0
        %v5120 = vmax.f32 %v5069, 0.0
        %v5121 = vmax.f32 %v4560, 0.0
        %v5122 = vmax.f32 %v4562, 0.0
        %v5123 = vmax.f32 %v4633, 0.0
        %v5124 = vmax.f32 %v4635, 0.0
        %v5125 = vmax.f32 %v4706, 0.0
        %v5126 = vmax.f32 %v4708, 0.0
        %v5127 = vmax.f32 %v4779, 0.0
        %v5128 = vmax.f32 %v4781, 0.0
        %v5129 = vmax.f32 %v4852, 0.0
        %v5130 = vmax.f32 %v4854, 0.0
        %v5131 = vmax.f32 %v4925, 0.0
        %v5132 = vmax.f32 %v4927, 0.0
        %v5133 = vmax.f32 %v4998, 0.0
        %v5134 = vmax.f32 %v5000, 0.0
        %v5135 = vmax.f32 %v5071, 0.0
        %v5136 = vmax.f32 %v5073, 0.0
        %v5137 = vmax.f32 %v4566, 0.0
        %v5138 = vmax.f32 %v4568, 0.0
        %v5139 = vmax.f32 %v4639, 0.0
        %v5140 = vmax.f32 %v4641, 0.0
        %v5141 = vmax.f32 %v4712, 0.0
        %v5142 = vmax.f32 %v4714, 0.0
        %v5143 = vmax.f32 %v4785, 0.0
        %v5144 = vmax.f32 %v4787, 0.0
        %v5145 = vmax.f32 %v4858, 0.0
        %v5146 = vmax.f32 %v4860, 0.0
        %v5147 = vmax.f32 %v4931, 0.0
        %v5148 = vmax.f32 %v4933, 0.0
        %v5149 = vmax.f32 %v5004, 0.0
        %v5150 = vmax.f32 %v5006, 0.0
        %v5151 = vmax.f32 %v5077, 0.0
        %v5152 = vmax.f32 %v5079, 0.0
        %v5153 = vmax.f32 %v4570, 0.0
        %v5154 = vmax.f32 %v4572, 0.0
        %v5155 = vmax.f32 %v4643, 0.0
        %v5156 = vmax.f32 %v4645, 0.0
        %v5157 = vmax.f32 %v4716, 0.0
        %v5158 = vmax.f32 %v4718, 0.0
        %v5159 = vmax.f32 %v4789, 0.0
        %v5160 = vmax.f32 %v4791, 0.0
        %v5161 = vmax.f32 %v4862, 0.0
        %v5162 = vmax.f32 %v4864, 0.0
        %v5163 = vmax.f32 %v4935, 0.0
        %v5164 = vmax.f32 %v4937, 0.0
        %v5165 = vmax.f32 %v5008, 0.0
        %v5166 = vmax.f32 %v5010, 0.0
        %v5167 = vmax.f32 %v5081, 0.0
        %v5168 = vmax.f32 %v5083, 0.0
        %v5169 = vmax.f32 %v4576, 0.0
        %v5170 = vmax.f32 %v4578, 0.0
        %v5171 = vmax.f32 %v4649, 0.0
        %v5172 = vmax.f32 %v4651, 0.0
        %v5173 = vmax.f32 %v4722, 0.0
        %v5174 = vmax.f32 %v4724, 0.0
        %v5175 = vmax.f32 %v4795, 0.0
        %v5176 = vmax.f32 %v4797, 0.0
        %v5177 = vmax.f32 %v4868, 0.0
        %v5178 = vmax.f32 %v4870, 0.0
        %v5179 = vmax.f32 %v4941, 0.0
        %v5180 = vmax.f32 %v4943, 0.0
        %v5181 = vmax.f32 %v5014, 0.0
        %v5182 = vmax.f32 %v5016, 0.0
        %v5183 = vmax.f32 %v5087, 0.0
        %v5184 = vmax.f32 %v5089, 0.0
        %v5185 = vmax.f32 %v4580, 0.0
        %v5186 = vmax.f32 %v4582, 0.0
        %v5187 = vmax.f32 %v4653, 0.0
        %v5188 = vmax.f32 %v4655, 0.0
        %v5189 = vmax.f32 %v4726, 0.0
        %v5190 = vmax.f32 %v4728, 0.0
        %v5191 = vmax.f32 %v4799, 0.0
        %v5192 = vmax.f32 %v4801, 0.0
        %v5193 = vmax.f32 %v4872, 0.0
        %v5194 = vmax.f32 %v4874, 0.0
        %v5195 = vmax.f32 %v4945, 0.0
        %v5196 = vmax.f32 %v4947, 0.0
        %v5197 = vmax.f32 %v5018, 0.0
        %v5198 = vmax.f32 %v5020, 0.0
        %v5199 = vmax.f32 %v5091, 0.0
        %v5200 = vmax.f32 %v5093, 0.0
        %v5201 = vmax.f32 %v4586, 0.0
        %v5202 = vmax.f32 %v4588, 0.0
        %v5203 = vmax.f32 %v4659, 0.0
        %v5204 = vmax.f32 %v4661, 0.0
        %v5205 = vmax.f32 %v4732, 0.0
        %v5206 = vmax.f32 %v4734, 0.0
        %v5207 = vmax.f32 %v4805, 0.0
        %v5208 = vmax.f32 %v4807, 0.0
        %v5209 = vmax.f32 %v4878, 0.0
        %v5210 = vmax.f32 %v4880, 0.0
        %v5211 = vmax.f32 %v4951, 0.0
        %v5212 = vmax.f32 %v4953, 0.0
        %v5213 = vmax.f32 %v5024, 0.0
        %v5214 = vmax.f32 %v5026, 0.0
        %v5215 = vmax.f32 %v5097, 0.0
        %v5216 = vmax.f32 %v5099, 0.0
        %v5217 = vmax.f32 %v4590, 0.0
        %v5218 = vmax.f32 %v4592, 0.0
        %v5219 = vmax.f32 %v4663, 0.0
        %v5220 = vmax.f32 %v4665, 0.0
        %v5221 = vmax.f32 %v4736, 0.0
        %v5222 = vmax.f32 %v4738, 0.0
        %v5223 = vmax.f32 %v4809, 0.0
        %v5224 = vmax.f32 %v4811, 0.0
        %v5225 = vmax.f32 %v4882, 0.0
        %v5226 = vmax.f32 %v4884, 0.0
        %v5227 = vmax.f32 %v4955, 0.0
        %v5228 = vmax.f32 %v4957, 0.0
        %v5229 = vmax.f32 %v5028, 0.0
        %v5230 = vmax.f32 %v5030, 0.0
        %v5231 = vmax.f32 %v5101, 0.0
        %v5232 = vmax.f32 %v5103, 0.0
        %v5233 = vld [vmem:[%s5] sm:$0x3]
        %v5234 = vpack.c.bf16 %v5121, %v5105
        %v5235 = vpack.c.bf16 %v5122, %v5106
        %v5236 = vpack.c.bf16 %v5123, %v5107
        %v5237 = vpack.c.bf16 %v5124, %v5108
        %v5238 = vpack.c.bf16 %v5125, %v5109
        %v5239 = vpack.c.bf16 %v5126, %v5110
        %v5240 = vpack.c.bf16 %v5127, %v5111
        %v5241 = vpack.c.bf16 %v5128, %v5112
        %v5242 = vpack.c.bf16 %v5129, %v5113
        %v5243 = vpack.c.bf16 %v5130, %v5114
        %v5244 = vpack.c.bf16 %v5131, %v5115
        %v5245 = vpack.c.bf16 %v5132, %v5116
        %v5246 = vpack.c.bf16 %v5133, %v5117
        %v5247 = vpack.c.bf16 %v5134, %v5118
        %v5248 = vpack.c.bf16 %v5135, %v5119
        %v5249 = vpack.c.bf16 %v5136, %v5120
        %v5250 = vpack.c.bf16 %v5153, %v5137
        %v5251 = vpack.c.bf16 %v5154, %v5138
        %v5252 = vpack.c.bf16 %v5155, %v5139
        %v5253 = vpack.c.bf16 %v5156, %v5140
        %v5254 = vpack.c.bf16 %v5157, %v5141
        %v5255 = vpack.c.bf16 %v5158, %v5142
        %v5256 = vpack.c.bf16 %v5159, %v5143
        %v5257 = vpack.c.bf16 %v5160, %v5144
        %v5258 = vpack.c.bf16 %v5161, %v5145
        %v5259 = vpack.c.bf16 %v5162, %v5146
        %v5260 = vpack.c.bf16 %v5163, %v5147
        %v5261 = vpack.c.bf16 %v5164, %v5148
        %v5262 = vpack.c.bf16 %v5165, %v5149
        %v5263 = vpack.c.bf16 %v5166, %v5150
        %v5264 = vpack.c.bf16 %v5167, %v5151
        %v5265 = vpack.c.bf16 %v5168, %v5152
        %v5266 = vpack.c.bf16 %v5185, %v5169
        %v5267 = vpack.c.bf16 %v5186, %v5170
        %v5268 = vpack.c.bf16 %v5187, %v5171
        %v5269 = vpack.c.bf16 %v5188, %v5172
        %v5270 = vpack.c.bf16 %v5189, %v5173
        %v5271 = vpack.c.bf16 %v5190, %v5174
        %v5272 = vpack.c.bf16 %v5191, %v5175
        %v5273 = vpack.c.bf16 %v5192, %v5176
        %v5274 = vpack.c.bf16 %v5193, %v5177
        %v5275 = vpack.c.bf16 %v5194, %v5178
        %v5276 = vpack.c.bf16 %v5195, %v5179
        %v5277 = vpack.c.bf16 %v5196, %v5180
        %v5278 = vpack.c.bf16 %v5197, %v5181
        %v5279 = vpack.c.bf16 %v5198, %v5182
        %v5280 = vpack.c.bf16 %v5199, %v5183
        %v5281 = vpack.c.bf16 %v5200, %v5184
        %v5282 = vpack.c.bf16 %v5217, %v5201
        %v5283 = vpack.c.bf16 %v5218, %v5202
        %v5284 = vpack.c.bf16 %v5219, %v5203
        %v5285 = vpack.c.bf16 %v5220, %v5204
        %v5286 = vpack.c.bf16 %v5221, %v5205
        %v5287 = vpack.c.bf16 %v5222, %v5206
        %v5288 = vpack.c.bf16 %v5223, %v5207
        %v5289 = vpack.c.bf16 %v5224, %v5208
        %v5290 = vpack.c.bf16 %v5225, %v5209
        %v5291 = vpack.c.bf16 %v5226, %v5210
        %v5292 = vpack.c.bf16 %v5227, %v5211
        %v5293 = vpack.c.bf16 %v5228, %v5212
        %v5294 = vpack.c.bf16 %v5229, %v5213
        %v5295 = vpack.c.bf16 %v5230, %v5214
        %v5296 = vpack.c.bf16 %v5231, %v5215
        %v5297 = vpack.c.bf16 %v5232, %v5216
        %v5299 = vsel %vm2078, %v5233, 0
        %5301 = vmatprep.subr.bf16.mxu0 %v5235
        %5302 = vmatpush1.bf16.msra.mxu0 %v5234
        %5303 = vmatprep.subr.bf16.mxu0 %v5251
        %5304 = vmatpush1.bf16.msra.mxu0 %v5250
        %5305 = vmatprep.subr.bf16.mxu0 %v5267
        %5306 = vmatpush1.bf16.msra.mxu0 %v5266
        %5307 = vmatprep.subr.bf16.mxu0 %v5283
        %5308 = vmatpush1.bf16.msra.mxu0 %v5282
        %5309 = vmatprep.subr.bf16.mxu0 0
        %5310 = vmatpush1.bf16.msra.mxu0 0
        %5311 = vmatprep.subr.bf16.mxu0 0
        %5312 = vmatpush1.bf16.msra.mxu0 0
        %5313 = vmatprep.subr.bf16.mxu0 0
        %5314 = vmatpush1.bf16.msra.mxu0 0
        %5315 = vmatprep.subr.bf16.mxu0 0
        %5316 = vmatpush1.bf16.msra.mxu0 0
        %5317 = vmatprep.subr.bf16.mxu0 0
        %5318 = vmatpush1.bf16.msra.mxu0 0
        %5319 = vmatprep.subr.bf16.mxu0 0
        %5320 = vmatpush1.bf16.msra.mxu0 0
        %5321 = vmatprep.subr.bf16.mxu0 0
        %5322 = vmatpush1.bf16.msra.mxu0 0
        %5323 = vmatprep.subr.bf16.mxu0 0
        %5324 = vmatpush1.bf16.msra.mxu0 0
        %5325 = vmatprep.subr.bf16.mxu0 0
        %5326 = vmatpush1.bf16.msra.mxu0 0
        %5327 = vmatprep.subr.bf16.mxu0 0
        %5328 = vmatpush1.bf16.msra.mxu0 0
        %5329 = vmatprep.subr.bf16.mxu0 0
        %5330 = vmatpush1.bf16.msra.mxu0 0
        %5331 = vmatprep.subr.bf16.mxu0 0
        %5332 = vmatpush1.bf16.msra.mxu0 0
        %5333 = vmatprep.mubr.bf16.mxu0 0
        %5334 = vmatmul.mubr.bf16.gmra.mrb[0].mxu0 %v5299
        %v5335 = vpop.f32.mrb[0].mxu0
        %v5336 = vadd.f32 0.0, %v5335
        %v5337 = vpop.f32.mrb[0].mxu0
        %v5338 = vadd.f32 0.0, %v5337
        %v5339 = vpop.f32.mrb[0].mxu0
        %v5340 = vpop.f32.mrb[0].mxu0
        %5341 = vdwg.mxu0
        %5342 = vmatprep.subr.bf16.mxu0 %v5237
        %5343 = vmatpush1.bf16.msra.mxu0 %v5236
        %5344 = vmatprep.subr.bf16.mxu0 %v5253
        %5345 = vmatpush1.bf16.msra.mxu0 %v5252
        %5346 = vmatprep.subr.bf16.mxu0 %v5269
        %5347 = vmatpush1.bf16.msra.mxu0 %v5268
        %5348 = vmatprep.subr.bf16.mxu0 %v5285
        %5349 = vmatpush1.bf16.msra.mxu0 %v5284
        %5350 = vmatprep.subr.bf16.mxu0 0
        %5351 = vmatpush1.bf16.msra.mxu0 0
        %5352 = vmatprep.subr.bf16.mxu0 0
        %5353 = vmatpush1.bf16.msra.mxu0 0
        %5354 = vmatprep.subr.bf16.mxu0 0
        %5355 = vmatpush1.bf16.msra.mxu0 0
        %5356 = vmatprep.subr.bf16.mxu0 0
        %5357 = vmatpush1.bf16.msra.mxu0 0
        %5358 = vmatprep.subr.bf16.mxu0 0
        %5359 = vmatpush1.bf16.msra.mxu0 0
        %5360 = vmatprep.subr.bf16.mxu0 0
        %5361 = vmatpush1.bf16.msra.mxu0 0
        %5362 = vmatprep.subr.bf16.mxu0 0
        %5363 = vmatpush1.bf16.msra.mxu0 0
        %5364 = vmatprep.subr.bf16.mxu0 0
        %5365 = vmatpush1.bf16.msra.mxu0 0
        %5366 = vmatprep.subr.bf16.mxu0 0
        %5367 = vmatpush1.bf16.msra.mxu0 0
        %5368 = vmatprep.subr.bf16.mxu0 0
        %5369 = vmatpush1.bf16.msra.mxu0 0
        %5370 = vmatprep.subr.bf16.mxu0 0
        %5371 = vmatpush1.bf16.msra.mxu0 0
        %5372 = vmatprep.subr.bf16.mxu0 0
        %5373 = vmatpush1.bf16.msra.mxu0 0
        %5374 = vmatprep.mubr.bf16.mxu0 0
        %5375 = vmatmul.mubr.bf16.gmra.mrb[0].mxu0 %v5299
        %v5376 = vpop.f32.mrb[0].mxu0
        %v5377 = vadd.f32 0.0, %v5376
        %v5378 = vpop.f32.mrb[0].mxu0
        %v5379 = vadd.f32 0.0, %v5378
        %v5380 = vpop.f32.mrb[0].mxu0
        %v5381 = vpop.f32.mrb[0].mxu0
        %5382 = vdwg.mxu0
        %5383 = vmatprep.subr.bf16.mxu0 %v5239
        %5384 = vmatpush1.bf16.msra.mxu0 %v5238
        %5385 = vmatprep.subr.bf16.mxu0 %v5255
        %5386 = vmatpush1.bf16.msra.mxu0 %v5254
        %5387 = vmatprep.subr.bf16.mxu0 %v5271
        %5388 = vmatpush1.bf16.msra.mxu0 %v5270
        %5389 = vmatprep.subr.bf16.mxu0 %v5287
        %5390 = vmatpush1.bf16.msra.mxu0 %v5286
        %5391 = vmatprep.subr.bf16.mxu0 0
        %5392 = vmatpush1.bf16.msra.mxu0 0
        %5393 = vmatprep.subr.bf16.mxu0 0
        %5394 = vmatpush1.bf16.msra.mxu0 0
        %5395 = vmatprep.subr.bf16.mxu0 0
        %5396 = vmatpush1.bf16.msra.mxu0 0
        %5397 = vmatprep.subr.bf16.mxu0 0
        %5398 = vmatpush1.bf16.msra.mxu0 0
        %5399 = vmatprep.subr.bf16.mxu0 0
        %5400 = vmatpush1.bf16.msra.mxu0 0
        %5401 = vmatprep.subr.bf16.mxu0 0
        %5402 = vmatpush1.bf16.msra.mxu0 0
        %5403 = vmatprep.subr.bf16.mxu0 0
        %5404 = vmatpush1.bf16.msra.mxu0 0
        %5405 = vmatprep.subr.bf16.mxu0 0
        %5406 = vmatpush1.bf16.msra.mxu0 0
        %5407 = vmatprep.subr.bf16.mxu0 0
        %5408 = vmatpush1.bf16.msra.mxu0 0
        %5409 = vmatprep.subr.bf16.mxu0 0
        %5410 = vmatpush1.bf16.msra.mxu0 0
        %5411 = vmatprep.subr.bf16.mxu0 0
        %5412 = vmatpush1.bf16.msra.mxu0 0
        %5413 = vmatprep.subr.bf16.mxu0 0
        %5414 = vmatpush1.bf16.msra.mxu0 0
        %5415 = vmatprep.mubr.bf16.mxu0 0
        %5416 = vmatmul.mubr.bf16.gmra.mrb[0].mxu0 %v5299
        %v5417 = vpop.f32.mrb[0].mxu0
        %v5418 = vadd.f32 0.0, %v5417
        %v5419 = vpop.f32.mrb[0].mxu0
        %v5420 = vadd.f32 0.0, %v5419
        %v5421 = vpop.f32.mrb[0].mxu0
        %v5422 = vpop.f32.mrb[0].mxu0
        %5423 = vdwg.mxu0
        %5424 = vmatprep.subr.bf16.mxu0 %v5241
        %5425 = vmatpush1.bf16.msra.mxu0 %v5240
        %5426 = vmatprep.subr.bf16.mxu0 %v5257
        %5427 = vmatpush1.bf16.msra.mxu0 %v5256
        %5428 = vmatprep.subr.bf16.mxu0 %v5273
        %5429 = vmatpush1.bf16.msra.mxu0 %v5272
        %5430 = vmatprep.subr.bf16.mxu0 %v5289
        %5431 = vmatpush1.bf16.msra.mxu0 %v5288
        %5432 = vmatprep.subr.bf16.mxu0 0
        %5433 = vmatpush1.bf16.msra.mxu0 0
        %5434 = vmatprep.subr.bf16.mxu0 0
        %5435 = vmatpush1.bf16.msra.mxu0 0
        %5436 = vmatprep.subr.bf16.mxu0 0
        %5437 = vmatpush1.bf16.msra.mxu0 0
        %5438 = vmatprep.subr.bf16.mxu0 0
        %5439 = vmatpush1.bf16.msra.mxu0 0
        %5440 = vmatprep.subr.bf16.mxu0 0
        %5441 = vmatpush1.bf16.msra.mxu0 0
        %5442 = vmatprep.subr.bf16.mxu0 0
        %5443 = vmatpush1.bf16.msra.mxu0 0
        %5444 = vmatprep.subr.bf16.mxu0 0
        %5445 = vmatpush1.bf16.msra.mxu0 0
        %5446 = vmatprep.subr.bf16.mxu0 0
        %5447 = vmatpush1.bf16.msra.mxu0 0
        %5448 = vmatprep.subr.bf16.mxu0 0
        %5449 = vmatpush1.bf16.msra.mxu0 0
        %5450 = vmatprep.subr.bf16.mxu0 0
        %5451 = vmatpush1.bf16.msra.mxu0 0
        %5452 = vmatprep.subr.bf16.mxu0 0
        %5453 = vmatpush1.bf16.msra.mxu0 0
        %5454 = vmatprep.subr.bf16.mxu0 0
        %5455 = vmatpush1.bf16.msra.mxu0 0
        %5456 = vmatprep.mubr.bf16.mxu0 0
        %5457 = vmatmul.mubr.bf16.gmra.mrb[0].mxu0 %v5299
        %v5458 = vpop.f32.mrb[0].mxu0
        %v5459 = vadd.f32 0.0, %v5458
        %v5460 = vpop.f32.mrb[0].mxu0
        %v5461 = vadd.f32 0.0, %v5460
        %v5462 = vpop.f32.mrb[0].mxu0
        %v5463 = vpop.f32.mrb[0].mxu0
        %5464 = vdwg.mxu0
        %5465 = vmatprep.subr.bf16.mxu0 %v5243
        %5466 = vmatpush1.bf16.msra.mxu0 %v5242
        %5467 = vmatprep.subr.bf16.mxu0 %v5259
        %5468 = vmatpush1.bf16.msra.mxu0 %v5258
        %5469 = vmatprep.subr.bf16.mxu0 %v5275
        %5470 = vmatpush1.bf16.msra.mxu0 %v5274
        %5471 = vmatprep.subr.bf16.mxu0 %v5291
        %5472 = vmatpush1.bf16.msra.mxu0 %v5290
        %5473 = vmatprep.subr.bf16.mxu0 0
        %5474 = vmatpush1.bf16.msra.mxu0 0
        %5475 = vmatprep.subr.bf16.mxu0 0
        %5476 = vmatpush1.bf16.msra.mxu0 0
        %5477 = vmatprep.subr.bf16.mxu0 0
        %5478 = vmatpush1.bf16.msra.mxu0 0
        %5479 = vmatprep.subr.bf16.mxu0 0
        %5480 = vmatpush1.bf16.msra.mxu0 0
        %5481 = vmatprep.subr.bf16.mxu0 0
        %5482 = vmatpush1.bf16.msra.mxu0 0
        %5483 = vmatprep.subr.bf16.mxu0 0
        %5484 = vmatpush1.bf16.msra.mxu0 0
        %5485 = vmatprep.subr.bf16.mxu0 0
        %5486 = vmatpush1.bf16.msra.mxu0 0
        %5487 = vmatprep.subr.bf16.mxu0 0
        %5488 = vmatpush1.bf16.msra.mxu0 0
        %5489 = vmatprep.subr.bf16.mxu0 0
        %5490 = vmatpush1.bf16.msra.mxu0 0
        %5491 = vmatprep.subr.bf16.mxu0 0
        %5492 = vmatpush1.bf16.msra.mxu0 0
        %5493 = vmatprep.subr.bf16.mxu0 0
        %5494 = vmatpush1.bf16.msra.mxu0 0
        %5495 = vmatprep.subr.bf16.mxu0 0
        %5496 = vmatpush1.bf16.msra.mxu0 0
        %5497 = vmatprep.mubr.bf16.mxu0 0
        %5498 = vmatmul.mubr.bf16.gmra.mrb[0].mxu0 %v5299
        %v5499 = vpop.f32.mrb[0].mxu0
        %v5500 = vadd.f32 0.0, %v5499
        %v5501 = vpop.f32.mrb[0].mxu0
        %v5502 = vadd.f32 0.0, %v5501
        %v5503 = vpop.f32.mrb[0].mxu0
        %v5504 = vpop.f32.mrb[0].mxu0
        %5505 = vdwg.mxu0
        %5506 = vmatprep.subr.bf16.mxu0 %v5245
        %5507 = vmatpush1.bf16.msra.mxu0 %v5244
        %5508 = vmatprep.subr.bf16.mxu0 %v5261
        %5509 = vmatpush1.bf16.msra.mxu0 %v5260
        %5510 = vmatprep.subr.bf16.mxu0 %v5277
        %5511 = vmatpush1.bf16.msra.mxu0 %v5276
        %5512 = vmatprep.subr.bf16.mxu0 %v5293
        %5513 = vmatpush1.bf16.msra.mxu0 %v5292
        %5514 = vmatprep.subr.bf16.mxu0 0
        %5515 = vmatpush1.bf16.msra.mxu0 0
        %5516 = vmatprep.subr.bf16.mxu0 0
        %5517 = vmatpush1.bf16.msra.mxu0 0
        %5518 = vmatprep.subr.bf16.mxu0 0
        %5519 = vmatpush1.bf16.msra.mxu0 0
        %5520 = vmatprep.subr.bf16.mxu0 0
        %5521 = vmatpush1.bf16.msra.mxu0 0
        %5522 = vmatprep.subr.bf16.mxu0 0
        %5523 = vmatpush1.bf16.msra.mxu0 0
        %5524 = vmatprep.subr.bf16.mxu0 0
        %5525 = vmatpush1.bf16.msra.mxu0 0
        %5526 = vmatprep.subr.bf16.mxu0 0
        %5527 = vmatpush1.bf16.msra.mxu0 0
        %5528 = vmatprep.subr.bf16.mxu0 0
        %5529 = vmatpush1.bf16.msra.mxu0 0
        %5530 = vmatprep.subr.bf16.mxu0 0
        %5531 = vmatpush1.bf16.msra.mxu0 0
        %5532 = vmatprep.subr.bf16.mxu0 0
        %5533 = vmatpush1.bf16.msra.mxu0 0
        %5534 = vmatprep.subr.bf16.mxu0 0
        %5535 = vmatpush1.bf16.msra.mxu0 0
        %5536 = vmatprep.subr.bf16.mxu0 0
        %5537 = vmatpush1.bf16.msra.mxu0 0
        %5538 = vmatprep.mubr.bf16.mxu0 0
        %5539 = vmatmul.mubr.bf16.gmra.mrb[0].mxu0 %v5299
        %v5540 = vpop.f32.mrb[0].mxu0
        %v5541 = vadd.f32 0.0, %v5540
        %v5542 = vpop.f32.mrb[0].mxu0
        %v5543 = vadd.f32 0.0, %v5542
        %v5544 = vpop.f32.mrb[0].mxu0
        %v5545 = vpop.f32.mrb[0].mxu0
        %5546 = vdwg.mxu0
        %5547 = vmatprep.subr.bf16.mxu0 %v5247
        %5548 = vmatpush1.bf16.msra.mxu0 %v5246
        %5549 = vmatprep.subr.bf16.mxu0 %v5263
        %5550 = vmatpush1.bf16.msra.mxu0 %v5262
        %5551 = vmatprep.subr.bf16.mxu0 %v5279
        %5552 = vmatpush1.bf16.msra.mxu0 %v5278
        %5553 = vmatprep.subr.bf16.mxu0 %v5295
        %5554 = vmatpush1.bf16.msra.mxu0 %v5294
        %5555 = vmatprep.subr.bf16.mxu0 0
        %5556 = vmatpush1.bf16.msra.mxu0 0
        %5557 = vmatprep.subr.bf16.mxu0 0
        %5558 = vmatpush1.bf16.msra.mxu0 0
        %5559 = vmatprep.subr.bf16.mxu0 0
        %5560 = vmatpush1.bf16.msra.mxu0 0
        %5561 = vmatprep.subr.bf16.mxu0 0
        %5562 = vmatpush1.bf16.msra.mxu0 0
        %5563 = vmatprep.subr.bf16.mxu0 0
        %5564 = vmatpush1.bf16.msra.mxu0 0
        %5565 = vmatprep.subr.bf16.mxu0 0
        %5566 = vmatpush1.bf16.msra.mxu0 0
        %5567 = vmatprep.subr.bf16.mxu0 0
        %5568 = vmatpush1.bf16.msra.mxu0 0
        %5569 = vmatprep.subr.bf16.mxu0 0
        %5570 = vmatpush1.bf16.msra.mxu0 0
        %5571 = vmatprep.subr.bf16.mxu0 0
        %5572 = vmatpush1.bf16.msra.mxu0 0
        %5573 = vmatprep.subr.bf16.mxu0 0
        %5574 = vmatpush1.bf16.msra.mxu0 0
        %5575 = vmatprep.subr.bf16.mxu0 0
        %5576 = vmatpush1.bf16.msra.mxu0 0
        %5577 = vmatprep.subr.bf16.mxu0 0
        %5578 = vmatpush1.bf16.msra.mxu0 0
        %5579 = vmatprep.mubr.bf16.mxu0 0
        %5580 = vmatmul.mubr.bf16.gmra.mrb[0].mxu0 %v5299
        %v5581 = vpop.f32.mrb[0].mxu0
        %v5582 = vadd.f32 0.0, %v5581
        %v5583 = vpop.f32.mrb[0].mxu0
        %v5584 = vadd.f32 0.0, %v5583
        %v5585 = vpop.f32.mrb[0].mxu0
        %v5586 = vpop.f32.mrb[0].mxu0
        %5587 = vdwg.mxu0
        %5588 = vmatprep.subr.bf16.mxu0 %v5249
        %5589 = vmatpush1.bf16.msra.mxu0 %v5248
        %5590 = vmatprep.subr.bf16.mxu0 %v5265
        %5591 = vmatpush1.bf16.msra.mxu0 %v5264
        %5592 = vmatprep.subr.bf16.mxu0 %v5281
        %5593 = vmatpush1.bf16.msra.mxu0 %v5280
        %5594 = vmatprep.subr.bf16.mxu0 %v5297
        %5595 = vmatpush1.bf16.msra.mxu0 %v5296
        %5596 = vmatprep.subr.bf16.mxu0 0
        %5597 = vmatpush1.bf16.msra.mxu0 0
        %5598 = vmatprep.subr.bf16.mxu0 0
        %5599 = vmatpush1.bf16.msra.mxu0 0
        %5600 = vmatprep.subr.bf16.mxu0 0
        %5601 = vmatpush1.bf16.msra.mxu0 0
        %5602 = vmatprep.subr.bf16.mxu0 0
        %5603 = vmatpush1.bf16.msra.mxu0 0
        %5604 = vmatprep.subr.bf16.mxu0 0
        %5605 = vmatpush1.bf16.msra.mxu0 0
        %5606 = vmatprep.subr.bf16.mxu0 0
        %5607 = vmatpush1.bf16.msra.mxu0 0
        %5608 = vmatprep.subr.bf16.mxu0 0
        %5609 = vmatpush1.bf16.msra.mxu0 0
        %5610 = vmatprep.subr.bf16.mxu0 0
        %5611 = vmatpush1.bf16.msra.mxu0 0
        %5612 = vmatprep.subr.bf16.mxu0 0
        %5613 = vmatpush1.bf16.msra.mxu0 0
        %5614 = vmatprep.subr.bf16.mxu0 0
        %5615 = vmatpush1.bf16.msra.mxu0 0
        %5616 = vmatprep.subr.bf16.mxu0 0
        %5617 = vmatpush1.bf16.msra.mxu0 0
        %5618 = vmatprep.subr.bf16.mxu0 0
        %5619 = vmatpush1.bf16.msra.mxu0 0
        %5620 = vmatprep.mubr.bf16.mxu0 0
        %5621 = vmatmul.mubr.bf16.gmra.mrb[0].mxu0 %v5299
        %v5622 = vpop.f32.mrb[0].mxu0
        %v5623 = vadd.f32 0.0, %v5622
        %v5624 = vpop.f32.mrb[0].mxu0
        %v5625 = vadd.f32 0.0, %v5624
        %v5626 = vpop.f32.mrb[0].mxu0
        %v5627 = vpop.f32.mrb[0].mxu0
        %5628 = vdwg.mxu0
        %v5629 = vmax.f32 %v5336, 0.0
        %v5630 = vmax.f32 %v5338, 0.0
        %v5631 = vmax.f32 %v5377, 0.0
        %v5632 = vmax.f32 %v5379, 0.0
        %v5633 = vmax.f32 %v5418, 0.0
        %v5634 = vmax.f32 %v5420, 0.0
        %v5635 = vmax.f32 %v5459, 0.0
        %v5636 = vmax.f32 %v5461, 0.0
        %v5637 = vmax.f32 %v5500, 0.0
        %v5638 = vmax.f32 %v5502, 0.0
        %v5639 = vmax.f32 %v5541, 0.0
        %v5640 = vmax.f32 %v5543, 0.0
        %v5641 = vmax.f32 %v5582, 0.0
        %v5642 = vmax.f32 %v5584, 0.0
        %v5643 = vmax.f32 %v5623, 0.0
        %v5644 = vmax.f32 %v5625, 0.0
        %v5645 = vlaneseq
        %v5646 = vshrl.u32 %v5645, 7
        %v5647 = vsub.s32 0, %v5646
        %v5648 = vrot.slane %v4433, %v5647
        %v5649 = vlaneseq
        %v5650 = vshrl.u32 %v5649, 7
        %v5651 = vsub.s32 0, %v5650
        %v5652 = vrot.slane %v4435, %v5651
        %v5653 = vlaneseq
        %v5654 = vshrl.u32 %v5653, 7
        %v5655 = vsub.s32 0, %v5654
        %v5656 = vrot.slane %v4437, %v5655
        %v5657 = vlaneseq
        %v5658 = vshrl.u32 %v5657, 7
        %v5659 = vsub.s32 0, %v5658
        %v5660 = vrot.slane %v4439, %v5659
        %v5661 = vlaneseq
        %v5662 = vshrl.u32 %v5661, 7
        %v5663 = vsub.s32 0, %v5662
        %v5664 = vrot.slane %v4441, %v5663
        %v5665 = vlaneseq
        %v5666 = vshrl.u32 %v5665, 7
        %v5667 = vsub.s32 0, %v5666
        %v5668 = vrot.slane %v4443, %v5667
        %v5669 = vlaneseq
        %v5670 = vshrl.u32 %v5669, 7
        %v5671 = vsub.s32 0, %v5670
        %v5672 = vrot.slane %v4445, %v5671
        %v5673 = vlaneseq
        %v5674 = vshrl.u32 %v5673, 7
        %v5675 = vsub.s32 0, %v5674
        %v5676 = vrot.slane %v4447, %v5675
        %v5677 = vlaneseq
        %v5678 = vshrl.u32 %v5677, 7
        %v5679 = vsub.s32 0, %v5678
        %v5680 = vrot.slane %v4449, %v5679
        %v5681 = vlaneseq
        %v5682 = vshrl.u32 %v5681, 7
        %v5683 = vsub.s32 0, %v5682
        %v5684 = vrot.slane %v4451, %v5683
        %v5685 = vlaneseq
        %v5686 = vshrl.u32 %v5685, 7
        %v5687 = vsub.s32 0, %v5686
        %v5688 = vrot.slane %v4453, %v5687
        %v5689 = vlaneseq
        %v5690 = vshrl.u32 %v5689, 7
        %v5691 = vsub.s32 0, %v5690
        %v5692 = vrot.slane %v4455, %v5691
        %v5693 = vlaneseq
        %v5694 = vshrl.u32 %v5693, 7
        %v5695 = vsub.s32 0, %v5694
        %v5696 = vrot.slane %v4457, %v5695
        %v5697 = vlaneseq
        %v5698 = vshrl.u32 %v5697, 7
        %v5699 = vsub.s32 0, %v5698
        %v5700 = vrot.slane %v4459, %v5699
        %v5701 = vlaneseq
        %v5702 = vshrl.u32 %v5701, 7
        %v5703 = vsub.s32 0, %v5702
        %v5704 = vrot.slane %v4461, %v5703
        %v5705 = vlaneseq
        %v5706 = vshrl.u32 %v5705, 7
        %v5707 = vsub.s32 0, %v5706
        %v5708 = vrot.slane %v4463, %v5707
        %v5709 = vmul.f32 %v5629, %v5648
        %v5710 = vmul.f32 %v5630, %v5652
        %v5711 = vmul.f32 %v5631, %v5656
        %v5712 = vmul.f32 %v5632, %v5660
        %v5713 = vmul.f32 %v5633, %v5664
        %v5714 = vmul.f32 %v5634, %v5668
        %v5715 = vmul.f32 %v5635, %v5672
        %v5716 = vmul.f32 %v5636, %v5676
        %v5717 = vmul.f32 %v5637, %v5680
        %v5718 = vmul.f32 %v5638, %v5684
        %v5719 = vmul.f32 %v5639, %v5688
        %v5720 = vmul.f32 %v5640, %v5692
        %v5721 = vmul.f32 %v5641, %v5696
        %v5722 = vmul.f32 %v5642, %v5700
        %v5723 = vmul.f32 %v5643, %v5704
        %v5724 = vmul.f32 %v5644, %v5708
        %v5741 = vrot.slane %v4337, 5
        %v5742 = vrot.slane %v4339, 5
        %v5743 = vrot.slane %v4341, 5
        %v5744 = vrot.slane %v4343, 5
        %v5745 = vrot.slane %v4345, 5
        %v5746 = vrot.slane %v4347, 5
        %v5747 = vrot.slane %v4349, 5
        %v5748 = vrot.slane %v4351, 5
        %v5749 = vrot.slane %v4353, 5
        %v5750 = vrot.slane %v4355, 5
        %v5751 = vrot.slane %v4357, 5
        %v5752 = vrot.slane %v4359, 5
        %v5753 = vrot.slane %v4361, 5
        %v5754 = vrot.slane %v4363, 5
        %v5755 = vrot.slane %v4365, 5
        %v5756 = vrot.slane %v4367, 5
        %v5789 = vrot.slane %v4433, 4
        %v5790 = vrot.slane %v4435, 4
        %v5791 = vrot.slane %v4437, 4
        %v5792 = vrot.slane %v4439, 4
        %v5793 = vrot.slane %v4441, 4
        %v5794 = vrot.slane %v4443, 4
        %v5795 = vrot.slane %v4445, 4
        %v5796 = vrot.slane %v4447, 4
        %v5797 = vrot.slane %v4449, 4
        %v5798 = vrot.slane %v4451, 4
        %v5799 = vrot.slane %v4453, 4
        %v5800 = vrot.slane %v4455, 4
        %v5801 = vrot.slane %v4457, 4
        %v5802 = vrot.slane %v4459, 4
        %v5803 = vrot.slane %v4461, 4
        %v5804 = vrot.slane %v4463, 4
        %vm5821 = vcmask 1042432
        %v5822 = vsel %vm5821, %v5709, %v5741
        %v5823 = vsel %vm5821, %v5710, %v5742
        %v5824 = vsel %vm5821, %v5711, %v5743
        %v5825 = vsel %vm5821, %v5712, %v5744
        %v5826 = vsel %vm5821, %v5713, %v5745
        %v5827 = vsel %vm5821, %v5714, %v5746
        %v5828 = vsel %vm5821, %v5715, %v5747
        %v5829 = vsel %vm5821, %v5716, %v5748
        %v5830 = vsel %vm5821, %v5717, %v5749
        %v5831 = vsel %vm5821, %v5718, %v5750
        %v5832 = vsel %vm5821, %v5719, %v5751
        %v5833 = vsel %vm5821, %v5720, %v5752
        %v5834 = vsel %vm5821, %v5721, %v5753
        %v5835 = vsel %vm5821, %v5722, %v5754
        %v5836 = vsel %vm5821, %v5723, %v5755
        %v5837 = vsel %vm5821, %v5724, %v5756
        %v5838 = vsel %vm1624, %v5822, %v5789
        %v5839 = vsel %vm1624, %v5823, %v5790
        %v5840 = vsel %vm1624, %v5824, %v5791
        %v5841 = vsel %vm1624, %v5825, %v5792
        %v5842 = vsel %vm1624, %v5826, %v5793
        %v5843 = vsel %vm1624, %v5827, %v5794
        %v5844 = vsel %vm1624, %v5828, %v5795
        %v5845 = vsel %vm1624, %v5829, %v5796
        %v5846 = vsel %vm1624, %v5830, %v5797
        %v5847 = vsel %vm1624, %v5831, %v5798
        %v5848 = vsel %vm1624, %v5832, %v5799
        %v5849 = vsel %vm1624, %v5833, %v5800
        %v5850 = vsel %vm1624, %v5834, %v5801
        %v5851 = vsel %vm1624, %v5835, %v5802
        %v5852 = vsel %vm1624, %v5836, %v5803
        %v5853 = vsel %vm1624, %v5837, %v5804
        %vm5854 = vcmask 1044480
        %v5855 = vsel %vm5854, %v5838, 0.0
        %v5856 = vsel %vm5854, %v5839, 0.0
        %v5857 = vsel %vm5854, %v5840, 0.0
        %v5858 = vsel %vm5854, %v5841, 0.0
        %v5859 = vsel %vm5854, %v5842, 0.0
        %v5860 = vsel %vm5854, %v5843, 0.0
        %v5861 = vsel %vm5854, %v5844, 0.0
        %v5862 = vsel %vm5854, %v5845, 0.0
        %v5863 = vsel %vm5854, %v5846, 0.0
        %v5864 = vsel %vm5854, %v5847, 0.0
        %v5865 = vsel %vm5854, %v5848, 0.0
        %v5866 = vsel %vm5854, %v5849, 0.0
        %v5867 = vsel %vm5854, %v5850, 0.0
        %v5868 = vsel %vm5854, %v5851, 0.0
        %v5869 = vsel %vm5854, %v5852, 0.0
        %v5870 = vsel %vm5854, %v5853, 0.0
        %5871 = vst [vmem:[%s356] sm:$0xff] %v5855
        %5872 = vst [vmem:[%s356 + $0x8] sm:$0xff] %v5856
        %5873 = vst [vmem:[%s356 + $0x10] sm:$0xff] %v5857
        %5874 = vst [vmem:[%s356 + $0x18] sm:$0xff] %v5858
        %5875 = vst [vmem:[%s356 + $0x20] sm:$0xff] %v5859
        %5876 = vst [vmem:[%s356 + $0x28] sm:$0xff] %v5860
        %5877 = vst [vmem:[%s356 + $0x30] sm:$0xff] %v5861
        %5878 = vst [vmem:[%s356 + $0x38] sm:$0xff] %v5862
        %5879 = vst [vmem:[%s356 + $0x40] sm:$0xff] %v5863
        %5880 = vst [vmem:[%s356 + $0x48] sm:$0xff] %v5864
        %5881 = vst [vmem:[%s356 + $0x50] sm:$0xff] %v5865
        %5882 = vst [vmem:[%s356 + $0x58] sm:$0xff] %v5866
        %5883 = vst [vmem:[%s356 + $0x60] sm:$0xff] %v5867
        %5884 = vst [vmem:[%s356 + $0x68] sm:$0xff] %v5868
        %5885 = vst [vmem:[%s356 + $0x70] sm:$0xff] %v5869
        %5886 = vst [vmem:[%s356 + $0x78] sm:$0xff] %v5870
        %s5887 = smul.u32 16, %s17
        %p5888 = scmp.lt.s32.totalorder %s5887, 31
        %s5889 = scalar_select %p5888, %s5887, 31
        %s5890 = smul.addr %s5889, 8
        %s5891 = scalar_lea.vmem %s6, %s5890
        // Predicated region
        $region68: #{_lambda_.1} parent=62 // pred_check
          %p5892 = pneg %p171
        $region69: #{_lambda_.1} parent=62 // pred_check_branch
          %5894 = sbr.rel (%p5892) target = $region71
        $region70: #{_lambda_.1} parent=62 // pred_region
          %s5895 = smul.u32 16, %s17
        $region71: #{_lambda_.1} parent=62 // pred_fallthru
          _
      $region63: #{_lambda_.1} parent=5 // pred_fallthru
        _
      %p5896 = scmp.le.s32.totalorder 2, %s12
      // Predicated region
      $region72: #{_lambda_.1} parent=5 // pred_check
        %p5897 = pneg %p5896
      $region73: #{_lambda_.1} parent=5 // pred_check_branch
        %5899 = sbr.rel (%p5897) target = $region75
      $region74: #{_lambda_.1} parent=5 // pred_region
        %s5900 = ssub.s32 %s12, 2
        // Predicated region
        $region76: #{_lambda_.1} parent=74 // pred_check
          %p5901 = pneg %p177
        $region77: #{_lambda_.1} parent=74 // pred_check_branch
          %5903 = sbr.rel (%p5901) target = $region79
        $region78: #{_lambda_.1} parent=74 // pred_region
          %s5904 = smul.u32 16, %s18
          %p5905 = scmp.lt.s32.totalorder %s5904, 31
          %s5906 = scalar_select %p5905, %s5904, 31
          %s5907 = smul.addr %s5906, 8
          %s5908 = scalar_lea.vmem %s6, %s5907
        $region79: #{_lambda_.1} parent=74 // pred_fallthru
          _
      $region75: #{_lambda_.1} parent=5 // pred_fallthru
        _
    $region6: #{_lambda_.1} parent=1 // loop_footer
      %s16 = sadd.s32 1, %s12
    $region7: #{_lambda_.1} parent=1 // loop_footer_branch
      %11 = sbr.rel target = $region3
    $region8: #{_lambda_.1} parent=1 // loop_exit
      _

</llo_original>
